<compile_context>
chip_gen: v7x
topology: tpu7x:2x2x1
jax: 0.10.0
libtpu: 0.0.40
codegen_flags: <defaults>
</compile_context>

<pallas_src>
import functools

import jax
import jax.numpy as jnp
from jax import lax
from jax.experimental import pallas as pl
from jax.experimental.pallas import tpu as pltpu


def _round_up(n, m):
    return ((n + m - 1) // m) * m


# ----------------------------------------------------------------------------
# Pallas kernels
# ----------------------------------------------------------------------------
def _dense_relu_kernel(x_ref, w_ref, b_ref, o_ref):
    # x_ref: (B, nz) bf16, w_ref: (nz, TF) bf16, b_ref: (1, TF) f32,
    # o_ref: (B, TF) bf16
    y = jnp.dot(x_ref[...], w_ref[...], preferred_element_type=jnp.float32)
    y = jnp.maximum(y + b_ref[...], 0.0)
    o_ref[...] = y.astype(o_ref.dtype)


def _conv_up_kernel(x_ref, w_ref, b_ref, o_ref, *, TH, W_out, apply_leaky):
    # Fused nearest-2x-upsample(H) + 3x3/s1/p1 conv (+ optional LeakyReLU 0.2)
    # for one (batch item, output row band) grid step.
    #   x_ref: (1, H_in+2, Wp, Cp)  width-upsampled, zero-bordered input (bf16)
    #   w_ref: (9*Cp, Cop)          tap-folded, channel-padded weights (bf16)
    #   b_ref: (1, Cop)             channel-padded bias (f32)
    #   o_ref: (1, TH, W_out, Cop)  output row band
    Cp = x_ref.shape[3]
    Cop = o_ref.shape[3]
    Wp = x_ref.shape[2]
    half = TH // 2

    # Rows of the (already width-upsampled, row-bordered) source needed by this
    # output band: one contiguous slice of half+2 rows starting at band*half.
    q0 = pl.program_id(1) * half
    xb = x_ref[0, pl.ds(q0, half + 2), :, :]            # (half+2, Wp, Cp)

    # Nearest-neighbour 2x upsample along height (+ top/bottom zero rows come
    # for free from the border rows of xb):  U_pad[t] = xb[(t+1)//2]
    # == interleave(xb[:-1], xb[1:])  -> built with a leading-dims reshape only.
    u = jnp.stack([xb[:-1], xb[1:]], axis=1)            # (half+1, 2, Wp, Cp)
    u = u.reshape(TH + 2, Wp, Cp)                       # (TH+2, Wp, Cp)

    # im2col band: concat the 9 shifted views on the lane axis -> one deep
    # matmul with K = 9*Cp (matches w_ref's (kh, kw, ci) row-major folding).
    patch = jnp.concatenate(
        [u[kh:kh + TH, kw:kw + W_out, :] for kh in range(3) for kw in range(3)],
        axis=-1)                                        # (TH, W_out, 9*Cp)
    patch = patch.reshape(TH * W_out, 9 * Cp)

    acc = jnp.dot(patch, w_ref[...], preferred_element_type=jnp.float32)
    acc = acc + b_ref[...]
    if apply_leaky:
        acc = jnp.where(acc > 0.0, acc, 0.2 * acc)
    o_ref[...] = acc.reshape(1, TH, W_out, Cop).astype(o_ref.dtype)


# ----------------------------------------------------------------------------
# Wrappers around pallas_call
# ----------------------------------------------------------------------------
def dense_relu(z, w, b, *, tile_f=2048):
    """z: (B, nz) bf16; w: (nz, F) bf16; b: (1, F) f32 -> (B, F) bf16, ReLU."""
    B, K = z.shape
    F = w.shape[1]
    TF = min(tile_f, F)
    assert F % TF == 0, (F, TF)
    flops = 2 * B * K * F
    bytes_accessed = int(z.size * 2 + w.size * 2 + F * 4 + B * F * 2)
    return pl.pallas_call(
        _dense_relu_kernel,
        out_shape=jax.ShapeDtypeStruct((B, F), jnp.bfloat16),
        grid=(F // TF,),
        in_specs=[
            pl.BlockSpec((B, K), lambda j: (0, 0)),
            pl.BlockSpec((K, TF), lambda j: (0, j)),
            pl.BlockSpec((1, TF), lambda j: (0, j)),
        ],
        out_specs=pl.BlockSpec((B, TF), lambda j: (0, j)),
        compiler_params=pltpu.CompilerParams(
            dimension_semantics=("parallel",),
            vmem_limit_bytes=32 * 1024 * 1024),
        cost_estimate=pl.CostEstimate(flops=flops, transcendentals=0,
                                      bytes_accessed=bytes_accessed),
    )(z, w, b)


def conv3x3_up2(x, w_hwio, b, *, apply_leaky, out_dtype=jnp.bfloat16):
    """Fused nearest-2x upsample + 3x3/s1/p1 conv (+LeakyReLU 0.2).

    x:      (B, H, W, Cp)  channel-padded NHWC activations (bf16), Cp % 128 == 0
    w_hwio: (3, 3, Cin, Cout) unpadded f32 weights, Cin <= Cp
    b:      (Cout,) f32 bias
    returns (B, 2H, 2W, Cop) with Cop = round_up(Cout, 128); padded channels = 0.
    """
    B, H, W, Cp = x.shape
    Cin, Cout = w_hwio.shape[2], w_hwio.shape[3]
    Cop = _round_up(Cout, 128)
    H_out, W_out = 2 * H, 2 * W
    Wp = W_out + 2
    TH = min(8, H_out)                 # even, divides H_out (powers of two)
    n_bands = H_out // TH

    # Fold 3x3 taps + channel padding into a single lane-dense matmul operand.
    wf = jnp.zeros((3, 3, Cp, Cop), jnp.float32).at[:, :, :Cin, :Cout].set(w_hwio)
    wf = wf.reshape(9 * Cp, Cop).astype(jnp.bfloat16)
    bf = jnp.zeros((1, Cop), jnp.float32).at[:, :Cout].set(b)

    # Width upsample + 1px zero border (XLA glue on the half-size tensor);
    # the height upsample / halo is generated inside the kernel.
    # TODO(synk): fold the width upsample into the kernel as well (needs a
    # sublane-axis interleave) to remove this last intermediate HBM round trip.
    xp = jnp.pad(jnp.repeat(x, 2, axis=2), ((0, 0), (1, 1), (1, 1), (0, 0)))
    # xp: (B, H+2, Wp, Cp)

    kernel = functools.partial(_conv_up_kernel, TH=TH, W_out=W_out,
                               apply_leaky=apply_leaky)
    flops = 2 * B * H_out * W_out * 9 * Cp * Cop
    bytes_accessed = int(xp.size * 2 + wf.size * 2 +
                         B * H_out * W_out * Cop * jnp.dtype(out_dtype).itemsize)
    return pl.pallas_call(
        kernel,
        out_shape=jax.ShapeDtypeStruct((B, H_out, W_out, Cop), out_dtype),
        grid=(B, n_bands),
        in_specs=[
            pl.BlockSpec((1, H + 2, Wp, Cp), lambda bi, ri: (bi, 0, 0, 0)),
            pl.BlockSpec((9 * Cp, Cop), lambda bi, ri: (0, 0)),
            pl.BlockSpec((1, Cop), lambda bi, ri: (0, 0)),
        ],
        out_specs=pl.BlockSpec((1, TH, W_out, Cop), lambda bi, ri: (bi, ri, 0, 0)),
        compiler_params=pltpu.CompilerParams(
            dimension_semantics=("parallel", "parallel"),
            vmem_limit_bytes=32 * 1024 * 1024),
        cost_estimate=pl.CostEstimate(flops=flops, transcendentals=0,
                                      bytes_accessed=bytes_accessed),
    )(xp, wf, bf)


# ----------------------------------------------------------------------------
# Parameter construction (deterministic, matches nn.Module shapes)
# ----------------------------------------------------------------------------
def init_decoder_params(key, nc, ndf, nz, isize):
    out_size = isize // 16
    feat = ndf * 8 * out_size * out_size
    keys = jax.random.split(key, 10)

    def init(k, shape, fan_in):
        return (jax.random.normal(k, shape) / jnp.sqrt(fan_in)).astype(jnp.float32)

    params = {
        # nn.Linear(nz, feat): weight (feat, nz) -> stored transposed (nz, feat)
        "dense_w": init(keys[0], (nz, feat), nz),
        "dense_b": init(keys[1], (feat,), nz),
    }
    conv_dims = [(ndf * 8, ndf * 4), (ndf * 4, ndf * 2), (ndf * 2, ndf), (ndf, nc)]
    for i, (cin, cout) in enumerate(conv_dims):
        # nn.Conv2d weight is (Cout, Cin, 3, 3); stored as HWIO (3, 3, Cin, Cout)
        params[f"conv{i}_w"] = init(keys[2 + 2 * i], (3, 3, cin, cout), 9 * cin)
        params[f"conv{i}_b"] = init(keys[3 + 2 * i], (cout,), 9 * cin)
    return params


# ----------------------------------------------------------------------------
# Forward pass (mirrors Decoder.forward)
# ----------------------------------------------------------------------------
def decoder_forward(params, z, *, nc, ndf, nz, isize):
    B = z.shape[0]
    os_ = isize // 16
    C0 = ndf * 8
    C0p = _round_up(C0, 128)

    # decoder_dense: Linear + ReLU. The NCHW view -> NHWC transpose and the
    # channel padding to 128 lanes are folded into a one-time column
    # permutation/padding of the weight, so the kernel output is already a
    # lane-dense NHWC feature map.
    dw = params["dense_w"].reshape(nz, C0, os_, os_).transpose(0, 2, 3, 1)
    dw = jnp.pad(dw, ((0, 0), (0, 0), (0, 0), (0, C0p - C0)))
    dw = dw.reshape(nz, os_ * os_ * C0p).astype(jnp.bfloat16)
    db = params["dense_b"].reshape(C0, os_, os_).transpose(1, 2, 0)
    db = jnp.pad(db, ((0, 0), (0, 0), (0, C0p - C0)))
    db = db.reshape(1, os_ * os_ * C0p).astype(jnp.float32)

    hidden = dense_relu(z.astype(jnp.bfloat16), dw, db)
    x = hidden.reshape(B, os_, os_, C0p)            # NHWC, channel-padded

    # decoder_conv: 4 x (upsample x2, conv3x3); LeakyReLU(0.2) on first three
    for i in range(4):
        last = (i == 3)
        x = conv3x3_up2(x, params[f"conv{i}_w"], params[f"conv{i}_b"],
                        apply_leaky=not last,
                        out_dtype=jnp.float32 if last else jnp.bfloat16)

    # strip channel padding, back to NCHW to match the PyTorch convention
    return jnp.transpose(x[..., :nc], (0, 3, 1, 2))


# ----------------------------------------------------------------------------
# Pure-JAX reference (for a correctness sanity check)
# ----------------------------------------------------------------------------
def decoder_forward_ref(params, z, *, nc, ndf, nz, isize):
    B = z.shape[0]
    out_size = isize // 16
    hidden = jnp.maximum(z @ params["dense_w"] + params["dense_b"], 0.0)
    x = jnp.transpose(hidden.reshape(B, ndf * 8, out_size, out_size),
                      (0, 2, 3, 1))
    for i in range(4):
        x = jnp.repeat(jnp.repeat(x, 2, axis=1), 2, axis=2)
        x = lax.conv_general_dilated(
            x, params[f"conv{i}_w"], window_strides=(1, 1), padding="SAME",
            dimension_numbers=("NHWC", "HWIO", "NHWC"))
        x = x + params[f"conv{i}_b"]
        if i < 3:
            x = jnp.where(x > 0.0, x, 0.2 * x)
    return jnp.transpose(x, (0, 3, 1, 2))


# ----------------------------------------------------------------------------
if __name__ == "__main__":
    # Small shapes consistent with the module: isize must be a multiple of 16.
    nc, ndf, nz, isize = 3, 8, 16, 16
    batch = 2

    key = jax.random.PRNGKey(0)
    pkey, zkey = jax.random.split(key)
    params = init_decoder_params(pkey, nc, ndf, nz, isize)
    z = jax.random.normal(zkey, (batch, nz), dtype=jnp.float32)

    fwd = jax.jit(functools.partial(decoder_forward, nc=nc, ndf=ndf, nz=nz,
                                    isize=isize))
    out = jax.block_until_ready(fwd(params, z))
    assert out.shape == (batch, nc, isize, isize), out.shape

    ref = jax.block_until_ready(
        decoder_forward_ref(params, z, nc=nc, ndf=ndf, nz=nz, isize=isize))
    err = float(jnp.max(jnp.abs(out - ref)))
    scale = float(jnp.max(jnp.abs(ref)))
    # bf16 activations/weights with f32 accumulation vs f32 reference.
    assert err <= 5e-2 * scale + 1e-3, (err, scale)

    print("KERNEL_OK")
</pallas_src>

<mosaic_0001>
module attributes {stable_mosaic.version = 11 : i64} {
  func.func @_dense_relu_kernel(%arg0: i32, %arg1: memref<2x16xbf16, #tpu.memory_space<vmem>>, %arg2: memref<16x128xbf16, #tpu.memory_space<vmem>>, %arg3: memref<1x128xf32, #tpu.memory_space<vmem>>, %arg4: memref<2x128xbf16, #tpu.memory_space<vmem>>) attributes {dimension_semantics = [#tpu.dimension_semantics<parallel>], iteration_bounds = array<i64: 1>, scalar_prefetch = 0 : i64, scratch_operands = 0 : i64, tpu.core_type = #tpu.core_type<tc>, window_params = [{pipeline_mode = #tpu.pipeline_mode<synchronous>, transform_indices = @transform_0, window_bounds = array<i64: 2, 16>}, {transform_indices = @transform_1, window_bounds = array<i64: 16, 128>}, {transform_indices = @transform_2, window_bounds = array<i64: 1, 128>}, {transform_indices = @transform_3, window_bounds = array<i64: 2, 128>}]} {
    %c0 = arith.constant 0 : index
    %c0_0 = arith.constant 0 : index
    %0 = vector.load %arg1[%c0, %c0_0] : memref<2x16xbf16, #tpu.memory_space<vmem>>, vector<2x16xbf16>
    %c0_1 = arith.constant 0 : index
    %c0_2 = arith.constant 0 : index
    %1 = vector.load %arg2[%c0_1, %c0_2] : memref<16x128xbf16, #tpu.memory_space<vmem>>, vector<16x128xbf16>
    %cst = arith.constant dense<0.000000e+00> : vector<2x128xf32>
    %2 = tpu.matmul %0, %1, %cst {dimension_numbers = #tpu.dot_dimension_numbers<[1], [0], [0], [1], [0, 0, 1, 1], [], []>} : vector<2x16xbf16>, vector<16x128xbf16>, vector<2x128xf32> -> vector<2x128xf32>
    %c0_3 = arith.constant 0 : index
    %c0_4 = arith.constant 0 : index
    %3 = vector.load %arg3[%c0_3, %c0_4] : memref<1x128xf32, #tpu.memory_space<vmem>>, vector<1x128xf32>
    %4 = vector.broadcast %3 : vector<1x128xf32> to vector<2x128xf32>
    %5 = arith.addf %2, %4 : vector<2x128xf32>
    %cst_5 = arith.constant 0.000000e+00 : f32
    %6 = vector.broadcast %cst_5 : f32 to vector<2x128xf32>
    %7 = arith.maximumf %5, %6 : vector<2x128xf32>
    %8 = arith.truncf %7 : vector<2x128xf32> to vector<2x128xbf16>
    %c0_6 = arith.constant 0 : index
    %c0_7 = arith.constant 0 : index
    %9 = vector.load %arg4[%c0_6, %c0_7] : memref<2x128xbf16, #tpu.memory_space<vmem>>, vector<2x128xbf16>
    tpu.vector_store %arg4[%c0_6, %c0_7], %8 {strides = array<i32>} : memref<2x128xbf16, #tpu.memory_space<vmem>>, vector<2x128xbf16>,
    return
  }
  func.func @transform_0(%arg0: i32) -> (i32, i32) {
    %c0_i32 = arith.constant 0 : i32
    %c0_i32_0 = arith.constant 0 : i32
    %c0_i32_1 = arith.constant 0 : i32
    return %c0_i32, %c0_i32_0 : i32, i32
  }
  func.func @transform_1(%arg0: i32) -> (i32, i32) {
    %c0_i32 = arith.constant 0 : i32
    %c0_i32_0 = arith.constant 0 : i32
    return %c0_i32, %arg0 : i32, i32
  }
  func.func @transform_2(%arg0: i32) -> (i32, i32) {
    %c0_i32 = arith.constant 0 : i32
    %c0_i32_0 = arith.constant 0 : i32
    return %c0_i32, %arg0 : i32, i32
  }
  func.func @transform_3(%arg0: i32) -> (i32, i32) {
    %c0_i32 = arith.constant 0 : i32
    %c0_i32_0 = arith.constant 0 : i32
    return %c0_i32, %arg0 : i32, i32
  }
}

module attributes {stable_mosaic.version = 11 : i64} {
  func.func @_conv_up_kernel(%arg0: i32, %arg1: i32, %arg2: memref<1x3x4x128xbf16, #tpu.memory_space<vmem>>, %arg3: memref<1152x128xbf16, #tpu.memory_space<vmem>>, %arg4: memref<1x128xf32, #tpu.memory_space<vmem>>, %arg5: memref<1x2x2x128xbf16, #tpu.memory_space<vmem>>) attributes {dimension_semantics = [#tpu.dimension_semantics<parallel>, #tpu.dimension_semantics<parallel>], iteration_bounds = array<i64: 2, 1>, scalar_prefetch = 0 : i64, scratch_operands = 0 : i64, tpu.core_type = #tpu.core_type<tc>, window_params = [{transform_indices = @transform_0, window_bounds = array<i64: 1, 3, 4, 128>}, {pipeline_mode = #tpu.pipeline_mode<synchronous>, transform_indices = @transform_1, window_bounds = array<i64: 1152, 128>}, {pipeline_mode = #tpu.pipeline_mode<synchronous>, transform_indices = @transform_2, window_bounds = array<i64: 1, 128>}, {transform_indices = @transform_3, window_bounds = array<i64: 1, 2, 2, 128>}]} {
    %c1_i32 = arith.constant 1 : i32
    %0 = arith.muli %arg1, %c1_i32 : i32
    %c0 = arith.constant 0 : index
    %1 = arith.index_cast %0 : i32 to index
    %c0_0 = arith.constant 0 : index
    %c0_1 = arith.constant 0 : index
    %2 = vector.load %arg2[%c0, %1, %c0_0, %c0_1] : memref<1x3x4x128xbf16, #tpu.memory_space<vmem>>, vector<1x3x4x128xbf16>
    %3 = vector.shape_cast %2 : vector<1x3x4x128xbf16> to vector<3x4x128xbf16>
    %4 = vector.extract_strided_slice %3 {offsets = [0, 0, 0], sizes = [2, 4, 128], strides = [1, 1, 1]} : vector<3x4x128xbf16> to vector<2x4x128xbf16>
    %5 = vector.extract_strided_slice %3 {offsets = [1, 0, 0], sizes = [2, 4, 128], strides = [1, 1, 1]} : vector<3x4x128xbf16> to vector<2x4x128xbf16>
    %6 = vector.shape_cast %4 : vector<2x4x128xbf16> to vector<2x1x4x128xbf16>
    %7 = vector.shape_cast %5 : vector<2x4x128xbf16> to vector<2x1x4x128xbf16>
    %8 = tpu.concatenate %6, %7 in 1 : vector<2x1x4x128xbf16>, vector<2x1x4x128xbf16> -> vector<2x2x4x128xbf16>
    %9 = vector.shape_cast %8 : vector<2x2x4x128xbf16> to vector<4x4x128xbf16>
    %10 = vector.extract_strided_slice %9 {offsets = [0, 0, 0], sizes = [2, 2, 128], strides = [1, 1, 1]} : vector<4x4x128xbf16> to vector<2x2x128xbf16>
    %11 = vector.extract_strided_slice %9 {offsets = [0, 1, 0], sizes = [2, 2, 128], strides = [1, 1, 1]} : vector<4x4x128xbf16> to vector<2x2x128xbf16>
    %12 = vector.extract_strided_slice %9 {offsets = [0, 2, 0], sizes = [2, 2, 128], strides = [1, 1, 1]} : vector<4x4x128xbf16> to vector<2x2x128xbf16>
    %13 = vector.extract_strided_slice %9 {offsets = [1, 0, 0], sizes = [2, 2, 128], strides = [1, 1, 1]} : vector<4x4x128xbf16> to vector<2x2x128xbf16>
    %14 = vector.extract_strided_slice %9 {offsets = [1, 1, 0], sizes = [2, 2, 128], strides = [1, 1, 1]} : vector<4x4x128xbf16> to vector<2x2x128xbf16>
    %15 = vector.extract_strided_slice %9 {offsets = [1, 2, 0], sizes = [2, 2, 128], strides = [1, 1, 1]} : vector<4x4x128xbf16> to vector<2x2x128xbf16>
    %16 = vector.extract_strided_slice %9 {offsets = [2, 0, 0], sizes = [2, 2, 128], strides = [1, 1, 1]} : vector<4x4x128xbf16> to vector<2x2x128xbf16>
    %17 = vector.extract_strided_slice %9 {offsets = [2, 1, 0], sizes = [2, 2, 128], strides = [1, 1, 1]} : vector<4x4x128xbf16> to vector<2x2x128xbf16>
    %18 = vector.extract_strided_slice %9 {offsets = [2, 2, 0], sizes = [2, 2, 128], strides = [1, 1, 1]} : vector<4x4x128xbf16> to vector<2x2x128xbf16>
    %19 = tpu.concatenate %10, %11, %12, %13, %14, %15, %16, %17, %18 in 2 : vector<2x2x128xbf16>, vector<2x2x128xbf16>, vector<2x2x128xbf16>, vector<2x2x128xbf16>, vector<2x2x128xbf16>, vector<2x2x128xbf16>, vector<2x2x128xbf16>, vector<2x2x128xbf16>, vector<2x2x128xbf16> -> vector<2x2x1152xbf16>
    %20 = vector.shape_cast %19 : vector<2x2x1152xbf16> to vector<4x1152xbf16>
    %c0_2 = arith.constant 0 : index
    %c0_3 = arith.constant 0 : index
    %21 = vector.load %arg3[%c0_2, %c0_3] : memref<1152x128xbf16, #tpu.memory_space<vmem>>, vector<1152x128xbf16>
    %cst = arith.constant dense<0.000000e+00> : vector<4x128xf32>
    %22 = tpu.matmul %20, %21, %cst {dimension_numbers = #tpu.dot_dimension_numbers<[1], [0], [0], [1], [0, 0, 1, 1], [], []>} : vector<4x1152xbf16>, vector<1152x128xbf16>, vector<4x128xf32> -> vector<4x128xf32>
    %c0_4 = arith.constant 0 : index
    %c0_5 = arith.constant 0 : index
    %23 = vector.load %arg4[%c0_4, %c0_5] : memref<1x128xf32, #tpu.memory_space<vmem>>, vector<1x128xf32>
    %24 = vector.broadcast %23 : vector<1x128xf32> to vector<4x128xf32>
    %25 = arith.addf %22, %24 : vector<4x128xf32>
    %cst_6 = arith.constant 0.000000e+00 : f32
    %26 = vector.broadcast %cst_6 : f32 to vector<4x128xf32>
    %27 = arith.cmpf ogt, %25, %26 : vector<4x128xf32>
    %cst_7 = arith.constant 2.000000e-01 : f32
    %28 = vector.broadcast %cst_7 : f32 to vector<4x128xf32>
    %29 = arith.mulf %28, %25 : vector<4x128xf32>
    %30 = arith.select %27, %25, %29 : vector<4x128xi1>, vector<4x128xf32>
    %31 = vector.shape_cast %30 : vector<4x128xf32> to vector<1x2x2x128xf32>
    %32 = arith.truncf %31 : vector<1x2x2x128xf32> to vector<1x2x2x128xbf16>
    %c0_8 = arith.constant 0 : index
    %c0_9 = arith.constant 0 : index
    %c0_10 = arith.constant 0 : index
    %c0_11 = arith.constant 0 : index
    %33 = vector.load %arg5[%c0_8, %c0_9, %c0_10, %c0_11] : memref<1x2x2x128xbf16, #tpu.memory_space<vmem>>, vector<1x2x2x128xbf16>
    tpu.vector_store %arg5[%c0_8, %c0_9, %c0_10, %c0_11], %32 {strides = array<i32>} : memref<1x2x2x128xbf16, #tpu.memory_space<vmem>>, vector<1x2x2x128xbf16>,
    return
  }
  func.func @transform_0(%arg0: i32, %arg1: i32) -> (i32, i32, i32, i32) {
    %c0_i32 = arith.constant 0 : i32
    %c0_i32_0 = arith.constant 0 : i32
    %c0_i32_1 = arith.constant 0 : i32
    %c0_i32_2 = arith.constant 0 : i32
    return %arg0, %c0_i32, %c0_i32_0, %c0_i32_1 : i32, i32, i32, i32
  }
  func.func @transform_1(%arg0: i32, %arg1: i32) -> (i32, i32) {
    %c0_i32 = arith.constant 0 : i32
    %c0_i32_0 = arith.constant 0 : i32
    %c0_i32_1 = arith.constant 0 : i32
    return %c0_i32, %c0_i32_0 : i32, i32
  }
  func.func @transform_2(%arg0: i32, %arg1: i32) -> (i32, i32) {
    %c0_i32 = arith.constant 0 : i32
    %c0_i32_0 = arith.constant 0 : i32
    %c0_i32_1 = arith.constant 0 : i32
    return %c0_i32, %c0_i32_0 : i32, i32
  }
  func.func @transform_3(%arg0: i32, %arg1: i32) -> (i32, i32, i32, i32) {
    %c0_i32 = arith.constant 0 : i32
    %c0_i32_0 = arith.constant 0 : i32
    %c0_i32_1 = arith.constant 0 : i32
    return %arg0, %arg1, %c0_i32, %c0_i32_0 : i32, i32, i32, i32
  }
}

module attributes {stable_mosaic.version = 11 : i64} {
  func.func @_conv_up_kernel(%arg0: i32, %arg1: i32, %arg2: memref<1x4x6x128xbf16, #tpu.memory_space<vmem>>, %arg3: memref<1152x128xbf16, #tpu.memory_space<vmem>>, %arg4: memref<1x128xf32, #tpu.memory_space<vmem>>, %arg5: memref<1x4x4x128xbf16, #tpu.memory_space<vmem>>) attributes {dimension_semantics = [#tpu.dimension_semantics<parallel>, #tpu.dimension_semantics<parallel>], iteration_bounds = array<i64: 2, 1>, scalar_prefetch = 0 : i64, scratch_operands = 0 : i64, tpu.core_type = #tpu.core_type<tc>, window_params = [{transform_indices = @transform_0, window_bounds = array<i64: 1, 4, 6, 128>}, {pipeline_mode = #tpu.pipeline_mode<synchronous>, transform_indices = @transform_1, window_bounds = array<i64: 1152, 128>}, {pipeline_mode = #tpu.pipeline_mode<synchronous>, transform_indices = @transform_2, window_bounds = array<i64: 1, 128>}, {transform_indices = @transform_3, window_bounds = array<i64: 1, 4, 4, 128>}]} {
    %c2_i32 = arith.constant 2 : i32
    %0 = arith.muli %arg1, %c2_i32 : i32
    %c0 = arith.constant 0 : index
    %1 = arith.index_cast %0 : i32 to index
    %c0_0 = arith.constant 0 : index
    %c0_1 = arith.constant 0 : index
    %2 = vector.load %arg2[%c0, %1, %c0_0, %c0_1] : memref<1x4x6x128xbf16, #tpu.memory_space<vmem>>, vector<1x4x6x128xbf16>
    %3 = vector.shape_cast %2 : vector<1x4x6x128xbf16> to vector<4x6x128xbf16>
    %4 = vector.extract_strided_slice %3 {offsets = [0, 0, 0], sizes = [3, 6, 128], strides = [1, 1, 1]} : vector<4x6x128xbf16> to vector<3x6x128xbf16>
    %5 = vector.extract_strided_slice %3 {offsets = [1, 0, 0], sizes = [3, 6, 128], strides = [1, 1, 1]} : vector<4x6x128xbf16> to vector<3x6x128xbf16>
    %6 = vector.shape_cast %4 : vector<3x6x128xbf16> to vector<3x1x6x128xbf16>
    %7 = vector.shape_cast %5 : vector<3x6x128xbf16> to vector<3x1x6x128xbf16>
    %8 = tpu.concatenate %6, %7 in 1 : vector<3x1x6x128xbf16>, vector<3x1x6x128xbf16> -> vector<3x2x6x128xbf16>
    %9 = vector.shape_cast %8 : vector<3x2x6x128xbf16> to vector<6x6x128xbf16>
    %10 = vector.extract_strided_slice %9 {offsets = [0, 0, 0], sizes = [4, 4, 128], strides = [1, 1, 1]} : vector<6x6x128xbf16> to vector<4x4x128xbf16>
    %11 = vector.extract_strided_slice %9 {offsets = [0, 1, 0], sizes = [4, 4, 128], strides = [1, 1, 1]} : vector<6x6x128xbf16> to vector<4x4x128xbf16>
    %12 = vector.extract_strided_slice %9 {offsets = [0, 2, 0], sizes = [4, 4, 128], strides = [1, 1, 1]} : vector<6x6x128xbf16> to vector<4x4x128xbf16>
    %13 = vector.extract_strided_slice %9 {offsets = [1, 0, 0], sizes = [4, 4, 128], strides = [1, 1, 1]} : vector<6x6x128xbf16> to vector<4x4x128xbf16>
    %14 = vector.extract_strided_slice %9 {offsets = [1, 1, 0], sizes = [4, 4, 128], strides = [1, 1, 1]} : vector<6x6x128xbf16> to vector<4x4x128xbf16>
    %15 = vector.extract_strided_slice %9 {offsets = [1, 2, 0], sizes = [4, 4, 128], strides = [1, 1, 1]} : vector<6x6x128xbf16> to vector<4x4x128xbf16>
    %16 = vector.extract_strided_slice %9 {offsets = [2, 0, 0], sizes = [4, 4, 128], strides = [1, 1, 1]} : vector<6x6x128xbf16> to vector<4x4x128xbf16>
    %17 = vector.extract_strided_slice %9 {offsets = [2, 1, 0], sizes = [4, 4, 128], strides = [1, 1, 1]} : vector<6x6x128xbf16> to vector<4x4x128xbf16>
    %18 = vector.extract_strided_slice %9 {offsets = [2, 2, 0], sizes = [4, 4, 128], strides = [1, 1, 1]} : vector<6x6x128xbf16> to vector<4x4x128xbf16>
    %19 = tpu.concatenate %10, %11, %12, %13, %14, %15, %16, %17, %18 in 2 : vector<4x4x128xbf16>, vector<4x4x128xbf16>, vector<4x4x128xbf16>, vector<4x4x128xbf16>, vector<4x4x128xbf16>, vector<4x4x128xbf16>, vector<4x4x128xbf16>, vector<4x4x128xbf16>, vector<4x4x128xbf16> -> vector<4x4x1152xbf16>
    %20 = vector.shape_cast %19 : vector<4x4x1152xbf16> to vector<16x1152xbf16>
    %c0_2 = arith.constant 0 : index
    %c0_3 = arith.constant 0 : index
    %21 = vector.load %arg3[%c0_2, %c0_3] : memref<1152x128xbf16, #tpu.memory_space<vmem>>, vector<1152x128xbf16>
    %cst = arith.constant dense<0.000000e+00> : vector<16x128xf32>
    %22 = tpu.matmul %20, %21, %cst {dimension_numbers = #tpu.dot_dimension_numbers<[1], [0], [0], [1], [0, 0, 1, 1], [], []>} : vector<16x1152xbf16>, vector<1152x128xbf16>, vector<16x128xf32> -> vector<16x128xf32>
    %c0_4 = arith.constant 0 : index
    %c0_5 = arith.constant 0 : index
    %23 = vector.load %arg4[%c0_4, %c0_5] : memref<1x128xf32, #tpu.memory_space<vmem>>, vector<1x128xf32>
    %24 = vector.broadcast %23 : vector<1x128xf32> to vector<16x128xf32>
    %25 = arith.addf %22, %24 : vector<16x128xf32>
    %cst_6 = arith.constant 0.000000e+00 : f32
    %26 = vector.broadcast %cst_6 : f32 to vector<16x128xf32>
    %27 = arith.cmpf ogt, %25, %26 : vector<16x128xf32>
    %cst_7 = arith.constant 2.000000e-01 : f32
    %28 = vector.broadcast %cst_7 : f32 to vector<16x128xf32>
    %29 = arith.mulf %28, %25 : vector<16x128xf32>
    %30 = arith.select %27, %25, %29 : vector<16x128xi1>, vector<16x128xf32>
    %31 = vector.shape_cast %30 : vector<16x128xf32> to vector<1x4x4x128xf32>
    %32 = arith.truncf %31 : vector<1x4x4x128xf32> to vector<1x4x4x128xbf16>
    %c0_8 = arith.constant 0 : index
    %c0_9 = arith.constant 0 : index
    %c0_10 = arith.constant 0 : index
    %c0_11 = arith.constant 0 : index
    %33 = vector.load %arg5[%c0_8, %c0_9, %c0_10, %c0_11] : memref<1x4x4x128xbf16, #tpu.memory_space<vmem>>, vector<1x4x4x128xbf16>
    tpu.vector_store %arg5[%c0_8, %c0_9, %c0_10, %c0_11], %32 {strides = array<i32>} : memref<1x4x4x128xbf16, #tpu.memory_space<vmem>>, vector<1x4x4x128xbf16>,
    return
  }
  func.func @transform_0(%arg0: i32, %arg1: i32) -> (i32, i32, i32, i32) {
    %c0_i32 = arith.constant 0 : i32
    %c0_i32_0 = arith.constant 0 : i32
    %c0_i32_1 = arith.constant 0 : i32
    %c0_i32_2 = arith.constant 0 : i32
    return %arg0, %c0_i32, %c0_i32_0, %c0_i32_1 : i32, i32, i32, i32
  }
  func.func @transform_1(%arg0: i32, %arg1: i32) -> (i32, i32) {
    %c0_i32 = arith.constant 0 : i32
    %c0_i32_0 = arith.constant 0 : i32
    %c0_i32_1 = arith.constant 0 : i32
    return %c0_i32, %c0_i32_0 : i32, i32
  }
  func.func @transform_2(%arg0: i32, %arg1: i32) -> (i32, i32) {
    %c0_i32 = arith.constant 0 : i32
    %c0_i32_0 = arith.constant 0 : i32
    %c0_i32_1 = arith.constant 0 : i32
    return %c0_i32, %c0_i32_0 : i32, i32
  }
  func.func @transform_3(%arg0: i32, %arg1: i32) -> (i32, i32, i32, i32) {
    %c0_i32 = arith.constant 0 : i32
    %c0_i32_0 = arith.constant 0 : i32
    %c0_i32_1 = arith.constant 0 : i32
    return %arg0, %arg1, %c0_i32, %c0_i32_0 : i32, i32, i32, i32
  }
}

module attributes {stable_mosaic.version = 11 : i64} {
  func.func @_conv_up_kernel(%arg0: i32, %arg1: i32, %arg2: memref<1x6x10x128xbf16, #tpu.memory_space<vmem>>, %arg3: memref<1152x128xbf16, #tpu.memory_space<vmem>>, %arg4: memref<1x128xf32, #tpu.memory_space<vmem>>, %arg5: memref<1x8x8x128xbf16, #tpu.memory_space<vmem>>) attributes {dimension_semantics = [#tpu.dimension_semantics<parallel>, #tpu.dimension_semantics<parallel>], iteration_bounds = array<i64: 2, 1>, scalar_prefetch = 0 : i64, scratch_operands = 0 : i64, tpu.core_type = #tpu.core_type<tc>, window_params = [{transform_indices = @transform_0, window_bounds = array<i64: 1, 6, 10, 128>}, {pipeline_mode = #tpu.pipeline_mode<synchronous>, transform_indices = @transform_1, window_bounds = array<i64: 1152, 128>}, {pipeline_mode = #tpu.pipeline_mode<synchronous>, transform_indices = @transform_2, window_bounds = array<i64: 1, 128>}, {transform_indices = @transform_3, window_bounds = array<i64: 1, 8, 8, 128>}]} {
    %c4_i32 = arith.constant 4 : i32
    %0 = arith.muli %arg1, %c4_i32 : i32
    %c0 = arith.constant 0 : index
    %1 = arith.index_cast %0 : i32 to index
    %c0_0 = arith.constant 0 : index
    %c0_1 = arith.constant 0 : index
    %2 = vector.load %arg2[%c0, %1, %c0_0, %c0_1] : memref<1x6x10x128xbf16, #tpu.memory_space<vmem>>, vector<1x6x10x128xbf16>
    %3 = vector.shape_cast %2 : vector<1x6x10x128xbf16> to vector<6x10x128xbf16>
    %4 = vector.extract_strided_slice %3 {offsets = [0, 0, 0], sizes = [5, 10, 128], strides = [1, 1, 1]} : vector<6x10x128xbf16> to vector<5x10x128xbf16>
    %5 = vector.extract_strided_slice %3 {offsets = [1, 0, 0], sizes = [5, 10, 128], strides = [1, 1, 1]} : vector<6x10x128xbf16> to vector<5x10x128xbf16>
    %6 = vector.shape_cast %4 : vector<5x10x128xbf16> to vector<5x1x10x128xbf16>
    %7 = vector.shape_cast %5 : vector<5x10x128xbf16> to vector<5x1x10x128xbf16>
    %8 = tpu.concatenate %6, %7 in 1 : vector<5x1x10x128xbf16>, vector<5x1x10x128xbf16> -> vector<5x2x10x128xbf16>
    %9 = vector.shape_cast %8 : vector<5x2x10x128xbf16> to vector<10x10x128xbf16>
    %10 = vector.extract_strided_slice %9 {offsets = [0, 0, 0], sizes = [8, 8, 128], strides = [1, 1, 1]} : vector<10x10x128xbf16> to vector<8x8x128xbf16>
    %11 = vector.extract_strided_slice %9 {offsets = [0, 1, 0], sizes = [8, 8, 128], strides = [1, 1, 1]} : vector<10x10x128xbf16> to vector<8x8x128xbf16>
    %12 = vector.extract_strided_slice %9 {offsets = [0, 2, 0], sizes = [8, 8, 128], strides = [1, 1, 1]} : vector<10x10x128xbf16> to vector<8x8x128xbf16>
    %13 = vector.extract_strided_slice %9 {offsets = [1, 0, 0], sizes = [8, 8, 128], strides = [1, 1, 1]} : vector<10x10x128xbf16> to vector<8x8x128xbf16>
    %14 = vector.extract_strided_slice %9 {offsets = [1, 1, 0], sizes = [8, 8, 128], strides = [1, 1, 1]} : vector<10x10x128xbf16> to vector<8x8x128xbf16>
    %15 = vector.extract_strided_slice %9 {offsets = [1, 2, 0], sizes = [8, 8, 128], strides = [1, 1, 1]} : vector<10x10x128xbf16> to vector<8x8x128xbf16>
    %16 = vector.extract_strided_slice %9 {offsets = [2, 0, 0], sizes = [8, 8, 128], strides = [1, 1, 1]} : vector<10x10x128xbf16> to vector<8x8x128xbf16>
    %17 = vector.extract_strided_slice %9 {offsets = [2, 1, 0], sizes = [8, 8, 128], strides = [1, 1, 1]} : vector<10x10x128xbf16> to vector<8x8x128xbf16>
    %18 = vector.extract_strided_slice %9 {offsets = [2, 2, 0], sizes = [8, 8, 128], strides = [1, 1, 1]} : vector<10x10x128xbf16> to vector<8x8x128xbf16>
    %19 = tpu.concatenate %10, %11, %12, %13, %14, %15, %16, %17, %18 in 2 : vector<8x8x128xbf16>, vector<8x8x128xbf16>, vector<8x8x128xbf16>, vector<8x8x128xbf16>, vector<8x8x128xbf16>, vector<8x8x128xbf16>, vector<8x8x128xbf16>, vector<8x8x128xbf16>, vector<8x8x128xbf16> -> vector<8x8x1152xbf16>
    %20 = vector.shape_cast %19 : vector<8x8x1152xbf16> to vector<64x1152xbf16>
    %c0_2 = arith.constant 0 : index
    %c0_3 = arith.constant 0 : index
    %21 = vector.load %arg3[%c0_2, %c0_3] : memref<1152x128xbf16, #tpu.memory_space<vmem>>, vector<1152x128xbf16>
    %cst = arith.constant dense<0.000000e+00> : vector<64x128xf32>
    %22 = tpu.matmul %20, %21, %cst {dimension_numbers = #tpu.dot_dimension_numbers<[1], [0], [0], [1], [0, 0, 1, 1], [], []>} : vector<64x1152xbf16>, vector<1152x128xbf16>, vector<64x128xf32> -> vector<64x128xf32>
    %c0_4 = arith.constant 0 : index
    %c0_5 = arith.constant 0 : index
    %23 = vector.load %arg4[%c0_4, %c0_5] : memref<1x128xf32, #tpu.memory_space<vmem>>, vector<1x128xf32>
    %24 = vector.broadcast %23 : vector<1x128xf32> to vector<64x128xf32>
    %25 = arith.addf %22, %24 : vector<64x128xf32>
    %cst_6 = arith.constant 0.000000e+00 : f32
    %26 = vector.broadcast %cst_6 : f32 to vector<64x128xf32>
    %27 = arith.cmpf ogt, %25, %26 : vector<64x128xf32>
    %cst_7 = arith.constant 2.000000e-01 : f32
    %28 = vector.broadcast %cst_7 : f32 to vector<64x128xf32>
    %29 = arith.mulf %28, %25 : vector<64x128xf32>
    %30 = arith.select %27, %25, %29 : vector<64x128xi1>, vector<64x128xf32>
    %31 = vector.shape_cast %30 : vector<64x128xf32> to vector<1x8x8x128xf32>
    %32 = arith.truncf %31 : vector<1x8x8x128xf32> to vector<1x8x8x128xbf16>
    %c0_8 = arith.constant 0 : index
    %c0_9 = arith.constant 0 : index
    %c0_10 = arith.constant 0 : index
    %c0_11 = arith.constant 0 : index
    %33 = vector.load %arg5[%c0_8, %c0_9, %c0_10, %c0_11] : memref<1x8x8x128xbf16, #tpu.memory_space<vmem>>, vector<1x8x8x128xbf16>
    tpu.vector_store %arg5[%c0_8, %c0_9, %c0_10, %c0_11], %32 {strides = array<i32>} : memref<1x8x8x128xbf16, #tpu.memory_space<vmem>>, vector<1x8x8x128xbf16>,
    return
  }
  func.func @transform_0(%arg0: i32, %arg1: i32) -> (i32, i32, i32, i32) {
    %c0_i32 = arith.constant 0 : i32
    %c0_i32_0 = arith.constant 0 : i32
    %c0_i32_1 = arith.constant 0 : i32
    %c0_i32_2 = arith.constant 0 : i32
    return %arg0, %c0_i32, %c0_i32_0, %c0_i32_1 : i32, i32, i32, i32
  }
  func.func @transform_1(%arg0: i32, %arg1: i32) -> (i32, i32) {
    %c0_i32 = arith.constant 0 : i32
    %c0_i32_0 = arith.constant 0 : i32
    %c0_i32_1 = arith.constant 0 : i32
    return %c0_i32, %c0_i32_0 : i32, i32
  }
  func.func @transform_2(%arg0: i32, %arg1: i32) -> (i32, i32) {
    %c0_i32 = arith.constant 0 : i32
    %c0_i32_0 = arith.constant 0 : i32
    %c0_i32_1 = arith.constant 0 : i32
    return %c0_i32, %c0_i32_0 : i32, i32
  }
  func.func @transform_3(%arg0: i32, %arg1: i32) -> (i32, i32, i32, i32) {
    %c0_i32 = arith.constant 0 : i32
    %c0_i32_0 = arith.constant 0 : i32
    %c0_i32_1 = arith.constant 0 : i32
    return %arg0, %arg1, %c0_i32, %c0_i32_0 : i32, i32, i32, i32
  }
}

module attributes {stable_mosaic.version = 11 : i64} {
  func.func @_conv_up_kernel(%arg0: i32, %arg1: i32, %arg2: memref<1x10x18x128xbf16, #tpu.memory_space<vmem>>, %arg3: memref<1152x128xbf16, #tpu.memory_space<vmem>>, %arg4: memref<1x128xf32, #tpu.memory_space<vmem>>, %arg5: memref<1x8x16x128xf32, #tpu.memory_space<vmem>>) attributes {dimension_semantics = [#tpu.dimension_semantics<parallel>, #tpu.dimension_semantics<parallel>], iteration_bounds = array<i64: 2, 2>, scalar_prefetch = 0 : i64, scratch_operands = 0 : i64, tpu.core_type = #tpu.core_type<tc>, window_params = [{transform_indices = @transform_0, window_bounds = array<i64: 1, 10, 18, 128>}, {pipeline_mode = #tpu.pipeline_mode<synchronous>, transform_indices = @transform_1, window_bounds = array<i64: 1152, 128>}, {pipeline_mode = #tpu.pipeline_mode<synchronous>, transform_indices = @transform_2, window_bounds = array<i64: 1, 128>}, {transform_indices = @transform_3, window_bounds = array<i64: 1, 8, 16, 128>}]} {
    %c4_i32 = arith.constant 4 : i32
    %0 = arith.muli %arg1, %c4_i32 : i32
    %c0 = arith.constant 0 : index
    %1 = arith.index_cast %0 : i32 to index
    %c0_0 = arith.constant 0 : index
    %c0_1 = arith.constant 0 : index
    %2 = vector.load %arg2[%c0, %1, %c0_0, %c0_1] : memref<1x10x18x128xbf16, #tpu.memory_space<vmem>>, vector<1x6x18x128xbf16>
    %3 = vector.shape_cast %2 : vector<1x6x18x128xbf16> to vector<6x18x128xbf16>
    %4 = vector.extract_strided_slice %3 {offsets = [0, 0, 0], sizes = [5, 18, 128], strides = [1, 1, 1]} : vector<6x18x128xbf16> to vector<5x18x128xbf16>
    %5 = vector.extract_strided_slice %3 {offsets = [1, 0, 0], sizes = [5, 18, 128], strides = [1, 1, 1]} : vector<6x18x128xbf16> to vector<5x18x128xbf16>
    %6 = vector.shape_cast %4 : vector<5x18x128xbf16> to vector<5x1x18x128xbf16>
    %7 = vector.shape_cast %5 : vector<5x18x128xbf16> to vector<5x1x18x128xbf16>
    %8 = tpu.concatenate %6, %7 in 1 : vector<5x1x18x128xbf16>, vector<5x1x18x128xbf16> -> vector<5x2x18x128xbf16>
    %9 = vector.shape_cast %8 : vector<5x2x18x128xbf16> to vector<10x18x128xbf16>
    %10 = vector.extract_strided_slice %9 {offsets = [0, 0, 0], sizes = [8, 16, 128], strides = [1, 1, 1]} : vector<10x18x128xbf16> to vector<8x16x128xbf16>
    %11 = vector.extract_strided_slice %9 {offsets = [0, 1, 0], sizes = [8, 16, 128], strides = [1, 1, 1]} : vector<10x18x128xbf16> to vector<8x16x128xbf16>
    %12 = vector.extract_strided_slice %9 {offsets = [0, 2, 0], sizes = [8, 16, 128], strides = [1, 1, 1]} : vector<10x18x128xbf16> to vector<8x16x128xbf16>
    %13 = vector.extract_strided_slice %9 {offsets = [1, 0, 0], sizes = [8, 16, 128], strides = [1, 1, 1]} : vector<10x18x128xbf16> to vector<8x16x128xbf16>
    %14 = vector.extract_strided_slice %9 {offsets = [1, 1, 0], sizes = [8, 16, 128], strides = [1, 1, 1]} : vector<10x18x128xbf16> to vector<8x16x128xbf16>
    %15 = vector.extract_strided_slice %9 {offsets = [1, 2, 0], sizes = [8, 16, 128], strides = [1, 1, 1]} : vector<10x18x128xbf16> to vector<8x16x128xbf16>
    %16 = vector.extract_strided_slice %9 {offsets = [2, 0, 0], sizes = [8, 16, 128], strides = [1, 1, 1]} : vector<10x18x128xbf16> to vector<8x16x128xbf16>
    %17 = vector.extract_strided_slice %9 {offsets = [2, 1, 0], sizes = [8, 16, 128], strides = [1, 1, 1]} : vector<10x18x128xbf16> to vector<8x16x128xbf16>
    %18 = vector.extract_strided_slice %9 {offsets = [2, 2, 0], sizes = [8, 16, 128], strides = [1, 1, 1]} : vector<10x18x128xbf16> to vector<8x16x128xbf16>
    %19 = tpu.concatenate %10, %11, %12, %13, %14, %15, %16, %17, %18 in 2 : vector<8x16x128xbf16>, vector<8x16x128xbf16>, vector<8x16x128xbf16>, vector<8x16x128xbf16>, vector<8x16x128xbf16>, vector<8x16x128xbf16>, vector<8x16x128xbf16>, vector<8x16x128xbf16>, vector<8x16x128xbf16> -> vector<8x16x1152xbf16>
    %20 = vector.shape_cast %19 : vector<8x16x1152xbf16> to vector<128x1152xbf16>
    %c0_2 = arith.constant 0 : index
    %c0_3 = arith.constant 0 : index
    %21 = vector.load %arg3[%c0_2, %c0_3] : memref<1152x128xbf16, #tpu.memory_space<vmem>>, vector<1152x128xbf16>
    %cst = arith.constant dense<0.000000e+00> : vector<128x128xf32>
    %22 = tpu.matmul %20, %21, %cst {dimension_numbers = #tpu.dot_dimension_numbers<[1], [0], [0], [1], [0, 0, 1, 1], [], []>} : vector<128x1152xbf16>, vector<1152x128xbf16>, vector<128x128xf32> -> vector<128x128xf32>
    %c0_4 = arith.constant 0 : index
    %c0_5 = arith.constant 0 : index
    %23 = vector.load %arg4[%c0_4, %c0_5] : memref<1x128xf32, #tpu.memory_space<vmem>>, vector<1x128xf32>
    %24 = vector.broadcast %23 : vector<1x128xf32> to vector<128x128xf32>
    %25 = arith.addf %22, %24 : vector<128x128xf32>
    %26 = vector.shape_cast %25 : vector<128x128xf32> to vector<1x8x16x128xf32>
    %c0_6 = arith.constant 0 : index
    %c0_7 = arith.constant 0 : index
    %c0_8 = arith.constant 0 : index
    %c0_9 = arith.constant 0 : index
    %27 = vector.load %arg5[%c0_6, %c0_7, %c0_8, %c0_9] : memref<1x8x16x128xf32, #tpu.memory_space<vmem>>, vector<1x8x16x128xf32>
    tpu.vector_store %arg5[%c0_6, %c0_7, %c0_8, %c0_9], %26 {strides = array<i32>} : memref<1x8x16x128xf32, #tpu.memory_space<vmem>>, vector<1x8x16x128xf32>,
    return
  }
  func.func @transform_0(%arg0: i32, %arg1: i32) -> (i32, i32, i32, i32) {
    %c0_i32 = arith.constant 0 : i32
    %c0_i32_0 = arith.constant 0 : i32
    %c0_i32_1 = arith.constant 0 : i32
    %c0_i32_2 = arith.constant 0 : i32
    return %arg0, %c0_i32, %c0_i32_0, %c0_i32_1 : i32, i32, i32, i32
  }
  func.func @transform_1(%arg0: i32, %arg1: i32) -> (i32, i32) {
    %c0_i32 = arith.constant 0 : i32
    %c0_i32_0 = arith.constant 0 : i32
    %c0_i32_1 = arith.constant 0 : i32
    return %c0_i32, %c0_i32_0 : i32, i32
  }
  func.func @transform_2(%arg0: i32, %arg1: i32) -> (i32, i32) {
    %c0_i32 = arith.constant 0 : i32
    %c0_i32_0 = arith.constant 0 : i32
    %c0_i32_1 = arith.constant 0 : i32
    return %c0_i32, %c0_i32_0 : i32, i32
  }
  func.func @transform_3(%arg0: i32, %arg1: i32) -> (i32, i32, i32, i32) {
    %c0_i32 = arith.constant 0 : i32
    %c0_i32_0 = arith.constant 0 : i32
    %c0_i32_1 = arith.constant 0 : i32
    return %arg0, %arg1, %c0_i32, %c0_i32_0 : i32, i32, i32, i32
  }
}

</mosaic_0001>

<llo_original>
// kernel: decoder_forward.5
$region0: #{decoder_forward.5}
  #allocation0 [shape = 'u32[]', space=smem, size = 0x4, offset = 0x4, fixed_abs, tag = 'smem constant byte address 0x4 - core index']
  #allocation1 [shape = 'u32[144,128]{1,0:T(1,128)}', space=vmem, size = 0x12000, scoped, tag = 'internal scratch']
  %s0 = inlined_call_operand.vmem [shape: bf16[2,16], index: 0, kind: input, shape index: {}]
  %s1 = inlined_call_operand.vmem [shape: bf16[16,128], index: 1, kind: input, shape index: {}]
  %s2 = inlined_call_operand.vmem [shape: f32[1,128], index: 2, kind: input, shape index: {}]
  %s3 = inlined_call_operand.vmem [shape: bf16[2,128], index: 3, kind: output, shape index: {}]
  %s4 = sld [smem:[#allocation0]]
  $region22: #{decoder_forward.5} parent=0
    _
  %s6 = ssub.s32 1, %s4
  %s7 = scalar_select 0, %s6, %s4
  // Predicated region
  $region2: #{decoder_forward.5} parent=0 // pred_check
    _
  $region3: #{decoder_forward.5} parent=0 // pred_check_branch
    %9 = sbr.rel (0) target = $region5
  $region4: #{decoder_forward.5} parent=0 // pred_region
    _
  $region5: #{decoder_forward.5} parent=0 // pred_fallthru
    _
  // Predicated region
  $region6: #{decoder_forward.5} parent=0 // pred_check
    _
  $region7: #{decoder_forward.5} parent=0 // pred_check_branch
    %11 = sbr.rel (0) target = $region9
  $region8: #{decoder_forward.5} parent=0 // pred_region
    _
  $region9: #{decoder_forward.5} parent=0 // pred_fallthru
    _
  // Predicated region
  $region10: #{decoder_forward.5} parent=0 // pred_check
    _
  $region11: #{decoder_forward.5} parent=0 // pred_check_branch
    %13 = sbr.rel (0) target = $region13
  $region12: #{decoder_forward.5} parent=0 // pred_region
    _
  $region13: #{decoder_forward.5} parent=0 // pred_fallthru
    _
  %v15 = vld [vmem:[%s0] sm:$0x1]
  %v16 = vld [vmem:[%s1] sm:$0xf]
  %v17 = vld [vmem:[%s1 + $0x4] sm:$0xf]
  %v18 = vld [vmem:[%s2] sm:$0x1]
  %v20 = vlaneseq
  %v21 = vshrl.u32 %v20, 7
  %v22 = vsub.s32 0, %v21
  %v23 = vrot.slane %v18, %v22
  %v27 = vunpack.c.l.b16 %v16
  %v28 = vunpack.c.l.b16 %v17
  %v29 = vpack.c.b16 %v28, %v27
  %vm31 = vcmask 130048
  %v33 = vsel %vm31, %v15, 0
  %35 = vmatprep.subr.bf16.mxu0 0
  %36 = vmatpush1.bf16.msra.mxu0 %v29
  %37 = vmatprep.subr.bf16.mxu0 0
  %38 = vmatpush1.bf16.msra.mxu0 0
  %39 = vmatprep.subr.bf16.mxu0 0
  %40 = vmatpush1.bf16.msra.mxu0 0
  %41 = vmatprep.subr.bf16.mxu0 0
  %42 = vmatpush1.bf16.msra.mxu0 0
  %43 = vmatprep.subr.bf16.mxu0 0
  %44 = vmatpush1.bf16.msra.mxu0 0
  %45 = vmatprep.subr.bf16.mxu0 0
  %46 = vmatpush1.bf16.msra.mxu0 0
  %47 = vmatprep.subr.bf16.mxu0 0
  %48 = vmatpush1.bf16.msra.mxu0 0
  %49 = vmatprep.subr.bf16.mxu0 0
  %50 = vmatpush1.bf16.msra.mxu0 0
  %51 = vmatprep.subr.bf16.mxu0 0
  %52 = vmatpush1.bf16.msra.mxu0 0
  %53 = vmatprep.subr.bf16.mxu0 0
  %54 = vmatpush1.bf16.msra.mxu0 0
  %55 = vmatprep.subr.bf16.mxu0 0
  %56 = vmatpush1.bf16.msra.mxu0 0
  %57 = vmatprep.subr.bf16.mxu0 0
  %58 = vmatpush1.bf16.msra.mxu0 0
  %59 = vmatprep.subr.bf16.mxu0 0
  %60 = vmatpush1.bf16.msra.mxu0 0
  %61 = vmatprep.subr.bf16.mxu0 0
  %62 = vmatpush1.bf16.msra.mxu0 0
  %63 = vmatprep.subr.bf16.mxu0 0
  %64 = vmatpush1.bf16.msra.mxu0 0
  %65 = vmatprep.subr.bf16.mxu0 0
  %66 = vmatpush1.bf16.msra.mxu0 0
  %67 = vmatprep.mubr.bf16.mxu0 0
  %68 = vmatmul.mubr.bf16.gmra.mrb[0].mxu0 %v33
  %v69 = vpop.f32.mrb[0].mxu0
  %v70 = vadd.f32 %v23, %v69
  %v71 = vpop.f32.mrb[0].mxu0
  %v72 = vpop.f32.mrb[0].mxu0
  %v73 = vpop.f32.mrb[0].mxu0
  %74 = vdwg.mxu0
  %v75 = vmax.f32 %v70, 0.0
  %v76 = vpack.c.bf16 %v75, %v75
  %77 = vst [vmem:[%s3] sm:$0x1] %v76
  // Predicated region
  $region14: #{decoder_forward.5} parent=0 // pred_check
    _
  $region15: #{decoder_forward.5} parent=0 // pred_check_branch
    %79 = sbr.rel (0) target = $region17
  $region16: #{decoder_forward.5} parent=0 // pred_region
    _
  $region17: #{decoder_forward.5} parent=0 // pred_fallthru
    _
  // Predicated region
  $region18: #{decoder_forward.5} parent=0 // pred_check
    _
  $region19: #{decoder_forward.5} parent=0 // pred_check_branch
    %81 = sbr.rel (0) target = $region21
  $region20: #{decoder_forward.5} parent=0 // pred_region
    _
  $region21: #{decoder_forward.5} parent=0 // pred_fallthru
    _

// kernel: decoder_forward.7
$region0: #{decoder_forward.7}
  #allocation0 [shape = 'u32[]', space=smem, size = 0x4, offset = 0x4, fixed_abs, tag = 'smem constant byte address 0x4 - core index']
  #allocation1 [shape = 'u32[144,128]{1,0:T(1,128)}', space=vmem, size = 0x12000, scoped, tag = 'internal scratch']
  %s0 = inlined_call_operand.vmem [shape: bf16[2,4,6,128], index: 0, kind: input, shape index: {}]
  %s1 = inlined_call_operand.vmem [shape: bf16[1152,128], index: 1, kind: input, shape index: {}]
  %s2 = inlined_call_operand.vmem [shape: f32[1,128], index: 2, kind: input, shape index: {}]
  %s3 = inlined_call_operand.vmem [shape: bf16[2,4,4,128], index: 3, kind: output, shape index: {}]
  %s4 = sld [smem:[#allocation0]]
  $region45: #{decoder_forward.7} parent=0
    _
  %s6 = ssub.s32 1, %s4
  %s7 = scalar_select 0, %s6, %s4
  loop: start=0, step=1, limit=4
  $region2: #{decoder_forward.7} parent=0 // loop_pre_header
    _
  $region3: #{decoder_forward.7} parent=0 // loop_header
    %s9 = sphi 0, %s13
    %p10 = scmp.ge.s32.totalorder %s9, 4
    %s16 = sphi 0, %s28
    %s17 = sphi 0, %s24
    %s18 = sphi 0, %s16
    %s19 = sphi 0, %s17
    %s20 = sphi 0, %s18
    %s21 = sphi 0, %s19
    %s31 = sphi 0, %s33
    %s34 = sphi 0, %s31
    %s35 = sphi 0, %s34
    %s51 = sphi 0, %s35
    %s55 = sphi 0, %s55
    %s57 = sphi 0, %s55
    %s58 = sphi 0, %s57
    %s72 = sphi 0, %s58
    %s76 = sphi 0, %s76
    %s78 = sphi 0, %s76
    %s79 = sphi 0, %s78
    %s93 = sphi 0, %s79
    %s101 = sphi 0, %s103
    %s104 = sphi 0, %s101
    %s105 = sphi 0, %s104
    %s121 = sphi 0, %s105
  $region4: #{decoder_forward.7} parent=0 // loop_header_branch
    %12 = sbr.rel (%p10) target = $region8
  $region5: #{decoder_forward.7} parent=0 // loop_body
    %s14 = ssub.s32 %s9, 1
    %s15 = ssub.s32 %s9, 2
    %s22 = sadd.s32 1, %s17
    %p23 = scmp.ge.s32.totalorder %s22, 1
    %s24 = scalar_select %p23, 0, %s22
    %s25 = sadd.s32 1, %s16
    %s26 = scalar_select %p23, %s25, %s16
    %p27 = scmp.ge.s32.totalorder %s26, 2
    %s28 = scalar_select %p27, 0, %s26
    %s29 = ssub.s32 %s16, %s28
    %p30 = scmp.eq.s32.totalorder %s29, 0
    %s32 = sadd.s32 %s31, 1
    %s33 = scalar_select %p30, %s31, %s32
    %p36 = pneg %p30
    %p37 = scmp.eq.s32.totalorder %s9, 1
    %p38 = por %p36, %p37
    %p39 = scmp.ne.s32.totalorder %s31, %s34
    %p40 = scmp.eq.s32.totalorder %s9, 0
    %p41 = por %p39, %p40
    %p42 = scmp.ne.s32.totalorder %s31, %s34
    %p43 = scmp.eq.s32.totalorder %s14, 1
    %p44 = por %p42, %p43
    %p45 = scmp.ne.s32.totalorder %s34, %s35
    %p46 = scmp.eq.s32.totalorder %s14, 0
    %p47 = por %p45, %p46
    %p48 = scmp.ne.s32.totalorder %s34, %s35
    %p49 = scmp.eq.s32.totalorder %s15, 1
    %p50 = por %p48, %p49
    %p52 = scmp.ne.s32.totalorder %s35, %s51
    %p53 = scmp.eq.s32.totalorder %s15, 0
    %p54 = por %p52, %p53
    %s56 = sadd.s32 %s55, 1
    %p59 = scmp.eq.s32.totalorder %s9, 1
    %p60 = scmp.ne.s32.totalorder %s55, %s57
    %p61 = scmp.eq.s32.totalorder %s9, 0
    %p62 = por %p60, %p61
    %p63 = scmp.ne.s32.totalorder %s55, %s57
    %p64 = scmp.eq.s32.totalorder %s14, 1
    %p65 = por %p63, %p64
    %p66 = scmp.ne.s32.totalorder %s57, %s58
    %p67 = scmp.eq.s32.totalorder %s14, 0
    %p68 = por %p66, %p67
    %p69 = scmp.ne.s32.totalorder %s57, %s58
    %p70 = scmp.eq.s32.totalorder %s15, 1
    %p71 = por %p69, %p70
    %p73 = scmp.ne.s32.totalorder %s58, %s72
    %p74 = scmp.eq.s32.totalorder %s15, 0
    %p75 = por %p73, %p74
    %s77 = sadd.s32 %s76, 1
    %p80 = scmp.eq.s32.totalorder %s9, 1
    %p81 = scmp.ne.s32.totalorder %s76, %s78
    %p82 = scmp.eq.s32.totalorder %s9, 0
    %p83 = por %p81, %p82
    %p84 = scmp.ne.s32.totalorder %s76, %s78
    %p85 = scmp.eq.s32.totalorder %s14, 1
    %p86 = por %p84, %p85
    %p87 = scmp.ne.s32.totalorder %s78, %s79
    %p88 = scmp.eq.s32.totalorder %s14, 0
    %p89 = por %p87, %p88
    %p90 = scmp.ne.s32.totalorder %s78, %s79
    %p91 = scmp.eq.s32.totalorder %s15, 1
    %p92 = por %p90, %p91
    %p94 = scmp.ne.s32.totalorder %s79, %s93
    %p95 = scmp.eq.s32.totalorder %s15, 0
    %p96 = por %p94, %p95
    %s97 = ssub.s32 %s16, %s28
    %s98 = ssub.s32 %s17, %s24
    %s99 = sor.u32 %s97, %s98
    %p100 = scmp.eq.s32.totalorder %s99, 0
    %s102 = sadd.s32 %s101, 1
    %s103 = scalar_select %p100, %s101, %s102
    %p106 = pneg %p100
    %p107 = scmp.eq.s32.totalorder %s9, 1
    %p108 = por %p106, %p107
    %p109 = scmp.ne.s32.totalorder %s101, %s104
    %p110 = scmp.eq.s32.totalorder %s9, 0
    %p111 = por %p109, %p110
    %p112 = scmp.ne.s32.totalorder %s101, %s104
    %p113 = scmp.eq.s32.totalorder %s14, 1
    %p114 = por %p112, %p113
    %p115 = scmp.ne.s32.totalorder %s104, %s105
    %p116 = scmp.eq.s32.totalorder %s14, 0
    %p117 = por %p115, %p116
    %p118 = scmp.ne.s32.totalorder %s104, %s105
    %p119 = scmp.eq.s32.totalorder %s15, 1
    %p120 = por %p118, %p119
    %p122 = scmp.ne.s32.totalorder %s105, %s121
    %p123 = scmp.eq.s32.totalorder %s15, 0
    %p124 = por %p122, %p123
    %p125 = scmp.le.s32.totalorder 1, %s9
    %p126 = scmp.lt.s32.totalorder %s9, 3
    %p127 = pnand %p125, %p126
    %p128 = pneg %p127
    // Predicated region
    $region9: #{decoder_forward.7} parent=5 // pred_check
      _
    $region10: #{decoder_forward.7} parent=5 // pred_check_branch
      %130 = sbr.rel (%p127) target = $region12
    $region11: #{decoder_forward.7} parent=5 // pred_region
      %s131 = ssub.s32 %s9, 1
      // Predicated region
      $region13: #{decoder_forward.7} parent=11 // pred_check
        %p132 = pneg %p68
      $region14: #{decoder_forward.7} parent=11 // pred_check_branch
        %134 = sbr.rel (%p132) target = $region16
      $region15: #{decoder_forward.7} parent=11 // pred_region
        _
      $region16: #{decoder_forward.7} parent=11 // pred_fallthru
        _
      // Predicated region
      $region17: #{decoder_forward.7} parent=11 // pred_check
        %p135 = pneg %p89
      $region18: #{decoder_forward.7} parent=11 // pred_check_branch
        %137 = sbr.rel (%p135) target = $region20
      $region19: #{decoder_forward.7} parent=11 // pred_region
        _
      $region20: #{decoder_forward.7} parent=11 // pred_fallthru
        _
    $region12: #{decoder_forward.7} parent=5 // pred_fallthru
      _
    %p138 = scmp.lt.s32.totalorder %s9, 2
    // Predicated region
    $region21: #{decoder_forward.7} parent=5 // pred_check
      %p139 = pneg %p138
    $region22: #{decoder_forward.7} parent=5 // pred_check_branch
      %141 = sbr.rel (%p139) target = $region24
    $region23: #{decoder_forward.7} parent=5 // pred_region
      // Predicated region
      $region25: #{decoder_forward.7} parent=23 // pred_check
        %p142 = pneg %p41
      $region26: #{decoder_forward.7} parent=23 // pred_check_branch
        %144 = sbr.rel (%p142) target = $region28
      $region27: #{decoder_forward.7} parent=23 // pred_region
        %p145 = scmp.lt.s32.totalorder %s16, 1
        %s146 = scalar_select %p145, %s16, 1
        %s147 = smul.addr %s146, 4
        %s148 = smul.addr %s147, 4
        %s149 = scalar_lea.vmem %s0, %s148
      $region28: #{decoder_forward.7} parent=23 // pred_fallthru
        _
    $region24: #{decoder_forward.7} parent=5 // pred_fallthru
      _
    %p150 = scmp.le.s32.totalorder 1, %s9
    %p151 = scmp.lt.s32.totalorder %s9, 3
    %p152 = pnand %p150, %p151
    %p153 = pneg %p152
    // Predicated region
    $region29: #{decoder_forward.7} parent=5 // pred_check
      _
    $region30: #{decoder_forward.7} parent=5 // pred_check_branch
      %155 = sbr.rel (%p152) target = $region32
    $region31: #{decoder_forward.7} parent=5 // pred_region
      %s156 = ssub.s32 %s9, 1
      %p157 = scmp.lt.s32.totalorder %s18, 1
      %s158 = scalar_select %p157, %s18, 1
      %s159 = smul.addr %s158, 4
      %s160 = smul.addr %s159, 4
      %s161 = scalar_lea.vmem %s0, %s160
      %p162 = pneg %p47
      %p163 = pneg %p44
      %p164 = pneg %p68
      %p165 = pneg %p65
      %p166 = pneg %p89
      %p167 = pneg %p86
      %p168 = pneg %p117
      %p169 = pneg %p114
      %s170 = smul.u32 4, %s19
      %p171 = scmp.lt.s32.totalorder %s18, 1
      %s172 = scalar_select %p171, %s18, 1
      %p173 = scmp.lt.s32.totalorder %s170, 3
      %s174 = scalar_select %p173, %s170, 3
      %s175 = smul.addr %s172, 4
      %s176 = sadd.s32 %s174, %s175
      %s177 = smul.addr %s176, 2
      %s178 = scalar_lea.vmem %s3, %s177
      %p179 = scmp.lt.s32.totalorder %s18, 1
      %s180 = scalar_select %p179, %s18, 1
      %s181 = smul.addr %s180, 4
      %s182 = smul.addr %s181, 4
      %s183 = scalar_lea.vmem %s0, %s182
      %s184 = smul.u32 4, %s19
      %p185 = scmp.lt.s32.totalorder %s18, 1
      %s186 = scalar_select %p185, %s18, 1
      %p187 = scmp.lt.s32.totalorder %s184, 3
      %s188 = scalar_select %p187, %s184, 3
      %s189 = smul.addr %s186, 4
      %s190 = sadd.s32 %s188, %s189
      %s191 = smul.addr %s190, 2
      %s192 = scalar_lea.vmem %s3, %s191
      %s193 = smul.u32 4, %s19
      %s195 = smul.u32 %s19, 2
      %s196 = smul.addr %s195, 4
      %s197 = scalar_lea.vmem %s183, %s196
      %v198 = vld [vmem:[%s197] sm:$0x7]
      %v199 = vld [vmem:[%s197 + $0x4] sm:$0x7]
      %v200 = vld [vmem:[%s197 + $0x8] sm:$0x7]
      %v201 = vld [vmem:[%s197 + $0xc] sm:$0x7]
      %v205 = vunpack.c.l.b16 %v198
      %v206 = vunpack.c.l.b16 %v199
      %v207 = vunpack.c.l.b16 %v200
      %v208 = vpack.c.b16 %v205, %v205
      %v209 = vpack.c.b16 %v206, %v206
      %v210 = vpack.c.b16 %v207, %v207
      %v212 = vshrl.u32 %v208, 16
      %v214 = vshll.u32 %v208, 16
      %v216 = vrot.slane %v214, 1
      %v217 = vor.u32 %v212, %v216
      %v219 = vshrl.u32 %v209, 16
      %v221 = vshll.u32 %v209, 16
      %v223 = vrot.slane %v221, 1
      %v224 = vor.u32 %v219, %v223
      %v226 = vshrl.u32 %v210, 16
      %v228 = vshll.u32 %v210, 16
      %v230 = vrot.slane %v228, 1
      %v231 = vor.u32 %v226, %v230
      %v232 = vrot.slane %v208, 1
      %v233 = vrot.slane %v209, 1
      %v234 = vrot.slane %v210, 1
      %v236 = vunpack.c.l.b16 %v201
      %v237 = vpack.c.b16 %v236, %v236
      %v239 = vshrl.u32 %v237, 16
      %v241 = vshll.u32 %v237, 16
      %v243 = vrot.slane %v241, 1
      %v244 = vor.u32 %v239, %v243
      %v245 = vrot.slane %v237, 1
      %v246 = vcombine.low %v198, %v217
      %v247 = vcombine.low %v232, %v199
      %v249 = vunpack.c.l.s4 1983009808
      %v250 = vunpack.c.0.s8 %v249
      %v251 = vlaneseq
      %v252 = vshrl.u32 %v251, 7
      %v253 = vsub.s32 %v250, %v252
      %v254 = vrot.slane %v246, %v253
      %v256 = vunpack.c.l.s4 1983009808
      %v257 = vunpack.c.0.s8 %v256
      %v258 = vlaneseq
      %v259 = vshrl.u32 %v258, 7
      %v260 = vsub.s32 %v257, %v259
      %v261 = vrot.slane %v247, %v260
      %v262 = vcombine.low %v254, %v261
      %v263 = vcombine.low %v224, %v233
      %v264 = vcombine.low %v199, %v224
      %v266 = vunpack.c.l.s4 1983009808
      %v267 = vunpack.c.0.s8 %v266
      %v268 = vlaneseq
      %v269 = vshrl.u32 %v268, 7
      %v270 = vsub.s32 %v267, %v269
      %v271 = vrot.slane %v263, %v270
      %v273 = vunpack.c.l.s4 1983009808
      %v274 = vunpack.c.0.s8 %v273
      %v275 = vlaneseq
      %v276 = vshrl.u32 %v275, 7
      %v277 = vsub.s32 %v274, %v276
      %v278 = vrot.slane %v264, %v277
      %v279 = vcombine.low %v271, %v278
      %v281 = vunpack.c.l.s4 1983009808
      %v282 = vunpack.c.0.s8 %v281
      %v283 = vlaneseq
      %v284 = vshrl.u32 %v283, 7
      %v285 = vsub.s32 %v282, %v284
      %v286 = vrot.slane %v233, %v285
      %v287 = vcombine.low %v233, %v199
      %v289 = vunpack.c.l.s4 1983009808
      %v290 = vunpack.c.0.s8 %v289
      %v291 = vlaneseq
      %v292 = vshrl.u32 %v291, 7
      %v293 = vsub.s32 %v290, %v292
      %v294 = vrot.slane %v287, %v293
      %v295 = vcombine.low %v278, %v294
      %v296 = vcombine.low %v200, %v231
      %v298 = vunpack.c.l.s4 1983009808
      %v299 = vunpack.c.0.s8 %v298
      %v300 = vlaneseq
      %v301 = vshrl.u32 %v300, 7
      %v302 = vsub.s32 %v299, %v301
      %v303 = vrot.slane %v296, %v302
      %v304 = vcombine.low %v271, %v303
      %v306 = vunpack.c.l.s4 1983009808
      %v307 = vunpack.c.0.s8 %v306
      %v308 = vlaneseq
      %v309 = vshrl.u32 %v308, 7
      %v310 = vsub.s32 %v307, %v309
      %v311 = vrot.slane %v234, %v310
      %v312 = vcombine.low %v233, %v200
      %v314 = vunpack.c.l.s4 1983009808
      %v315 = vunpack.c.0.s8 %v314
      %v316 = vlaneseq
      %v317 = vshrl.u32 %v316, 7
      %v318 = vsub.s32 %v315, %v317
      %v319 = vrot.slane %v312, %v318
      %v320 = vcombine.low %v278, %v319
      %v321 = vcombine.low %v231, %v234
      %v323 = vunpack.c.l.s4 1983009808
      %v324 = vunpack.c.0.s8 %v323
      %v325 = vlaneseq
      %v326 = vshrl.u32 %v325, 7
      %v327 = vsub.s32 %v324, %v326
      %v328 = vrot.slane %v321, %v327
      %v329 = vcombine.low %v328, %v303
      %v330 = vcombine.low %v234, %v200
      %v332 = vunpack.c.l.s4 1983009808
      %v333 = vunpack.c.0.s8 %v332
      %v334 = vlaneseq
      %v335 = vshrl.u32 %v334, 7
      %v336 = vsub.s32 %v333, %v335
      %v337 = vrot.slane %v330, %v336
      %v338 = vcombine.low %v303, %v337
      %v339 = vcombine.low %v201, %v244
      %v341 = vunpack.c.l.s4 1983009808
      %v342 = vunpack.c.0.s8 %v341
      %v343 = vlaneseq
      %v344 = vshrl.u32 %v343, 7
      %v345 = vsub.s32 %v342, %v344
      %v346 = vrot.slane %v339, %v345
      %v347 = vcombine.low %v328, %v346
      %v349 = vunpack.c.l.s4 1983009808
      %v350 = vunpack.c.0.s8 %v349
      %v351 = vlaneseq
      %v352 = vshrl.u32 %v351, 7
      %v353 = vsub.s32 %v350, %v352
      %v354 = vrot.slane %v245, %v353
      %v355 = vld [vmem:[%s1] sm:$0xf]
      %v356 = vld [vmem:[%s1 + $0x4] sm:$0xf]
      %v357 = vld [vmem:[%s1 + $0x8] sm:$0xf]
      %v358 = vld [vmem:[%s1 + $0xc] sm:$0xf]
      %v359 = vld [vmem:[%s1 + $0x10] sm:$0xf]
      %v360 = vld [vmem:[%s1 + $0x14] sm:$0xf]
      %v361 = vld [vmem:[%s1 + $0x18] sm:$0xf]
      %v362 = vld [vmem:[%s1 + $0x1c] sm:$0xf]
      %v363 = vld [vmem:[%s1 + $0x20] sm:$0xf]
      %v364 = vld [vmem:[%s1 + $0x24] sm:$0xf]
      %v365 = vld [vmem:[%s1 + $0x28] sm:$0xf]
      %v366 = vld [vmem:[%s1 + $0x2c] sm:$0xf]
      %v367 = vld [vmem:[%s1 + $0x30] sm:$0xf]
      %v368 = vld [vmem:[%s1 + $0x34] sm:$0xf]
      %v369 = vld [vmem:[%s1 + $0x38] sm:$0xf]
      %v370 = vld [vmem:[%s1 + $0x3c] sm:$0xf]
      %v371 = vld [vmem:[%s1 + $0x40] sm:$0xf]
      %v372 = vld [vmem:[%s1 + $0x44] sm:$0xf]
      %v373 = vld [vmem:[%s1 + $0x48] sm:$0xf]
      %v374 = vld [vmem:[%s1 + $0x4c] sm:$0xf]
      %v375 = vld [vmem:[%s1 + $0x50] sm:$0xf]
      %v376 = vld [vmem:[%s1 + $0x54] sm:$0xf]
      %v377 = vld [vmem:[%s1 + $0x58] sm:$0xf]
      %v378 = vld [vmem:[%s1 + $0x5c] sm:$0xf]
      %v379 = vld [vmem:[%s1 + $0x60] sm:$0xf]
      %v380 = vld [vmem:[%s1 + $0x64] sm:$0xf]
      %v381 = vld [vmem:[%s1 + $0x68] sm:$0xf]
      %v382 = vld [vmem:[%s1 + $0x6c] sm:$0xf]
      %v383 = vld [vmem:[%s1 + $0x70] sm:$0xf]
      %v384 = vld [vmem:[%s1 + $0x74] sm:$0xf]
      %v385 = vld [vmem:[%s1 + $0x78] sm:$0xf]
      %v386 = vld [vmem:[%s1 + $0x7c] sm:$0xf]
      %v387 = vld [vmem:[%s1 + $0x80] sm:$0xf]
      %v388 = vld [vmem:[%s1 + $0x84] sm:$0xf]
      %v389 = vld [vmem:[%s1 + $0x88] sm:$0xf]
      %v390 = vld [vmem:[%s1 + $0x8c] sm:$0xf]
      %v391 = vld [vmem:[%s1 + $0x90] sm:$0xf]
      %v392 = vld [vmem:[%s1 + $0x94] sm:$0xf]
      %v393 = vld [vmem:[%s1 + $0x98] sm:$0xf]
      %v394 = vld [vmem:[%s1 + $0x9c] sm:$0xf]
      %v395 = vld [vmem:[%s1 + $0xa0] sm:$0xf]
      %v396 = vld [vmem:[%s1 + $0xa4] sm:$0xf]
      %v397 = vld [vmem:[%s1 + $0xa8] sm:$0xf]
      %v398 = vld [vmem:[%s1 + $0xac] sm:$0xf]
      %v399 = vld [vmem:[%s1 + $0xb0] sm:$0xf]
      %v400 = vld [vmem:[%s1 + $0xb4] sm:$0xf]
      %v401 = vld [vmem:[%s1 + $0xb8] sm:$0xf]
      %v402 = vld [vmem:[%s1 + $0xbc] sm:$0xf]
      %v403 = vld [vmem:[%s1 + $0xc0] sm:$0xf]
      %v404 = vld [vmem:[%s1 + $0xc4] sm:$0xf]
      %v405 = vld [vmem:[%s1 + $0xc8] sm:$0xf]
      %v406 = vld [vmem:[%s1 + $0xcc] sm:$0xf]
      %v407 = vld [vmem:[%s1 + $0xd0] sm:$0xf]
      %v408 = vld [vmem:[%s1 + $0xd4] sm:$0xf]
      %v409 = vld [vmem:[%s1 + $0xd8] sm:$0xf]
      %v410 = vld [vmem:[%s1 + $0xdc] sm:$0xf]
      %v411 = vld [vmem:[%s1 + $0xe0] sm:$0xf]
      %v412 = vld [vmem:[%s1 + $0xe4] sm:$0xf]
      %v413 = vld [vmem:[%s1 + $0xe8] sm:$0xf]
      %v414 = vld [vmem:[%s1 + $0xec] sm:$0xf]
      %v415 = vld [vmem:[%s1 + $0xf0] sm:$0xf]
      %v416 = vld [vmem:[%s1 + $0xf4] sm:$0xf]
      %v417 = vld [vmem:[%s1 + $0xf8] sm:$0xf]
      %v418 = vld [vmem:[%s1 + $0xfc] sm:$0xf]
      %v419 = vld [vmem:[%s1 + $0x100] sm:$0xf]
      %v420 = vld [vmem:[%s1 + $0x104] sm:$0xf]
      %v421 = vld [vmem:[%s1 + $0x108] sm:$0xf]
      %v422 = vld [vmem:[%s1 + $0x10c] sm:$0xf]
      %v423 = vld [vmem:[%s1 + $0x110] sm:$0xf]
      %v424 = vld [vmem:[%s1 + $0x114] sm:$0xf]
      %v425 = vld [vmem:[%s1 + $0x118] sm:$0xf]
      %v426 = vld [vmem:[%s1 + $0x11c] sm:$0xf]
      %v427 = vld [vmem:[%s1 + $0x120] sm:$0xf]
      %v428 = vld [vmem:[%s1 + $0x124] sm:$0xf]
      %v429 = vld [vmem:[%s1 + $0x128] sm:$0xf]
      %v430 = vld [vmem:[%s1 + $0x12c] sm:$0xf]
      %v431 = vld [vmem:[%s1 + $0x130] sm:$0xf]
      %v432 = vld [vmem:[%s1 + $0x134] sm:$0xf]
      %v433 = vld [vmem:[%s1 + $0x138] sm:$0xf]
      %v434 = vld [vmem:[%s1 + $0x13c] sm:$0xf]
      %v435 = vld [vmem:[%s1 + $0x140] sm:$0xf]
      %v436 = vld [vmem:[%s1 + $0x144] sm:$0xf]
      %v437 = vld [vmem:[%s1 + $0x148] sm:$0xf]
      %v438 = vld [vmem:[%s1 + $0x14c] sm:$0xf]
      %v439 = vld [vmem:[%s1 + $0x150] sm:$0xf]
      %v440 = vld [vmem:[%s1 + $0x154] sm:$0xf]
      %v441 = vld [vmem:[%s1 + $0x158] sm:$0xf]
      %v442 = vld [vmem:[%s1 + $0x15c] sm:$0xf]
      %v443 = vld [vmem:[%s1 + $0x160] sm:$0xf]
      %v444 = vld [vmem:[%s1 + $0x164] sm:$0xf]
      %v445 = vld [vmem:[%s1 + $0x168] sm:$0xf]
      %v446 = vld [vmem:[%s1 + $0x16c] sm:$0xf]
      %v447 = vld [vmem:[%s1 + $0x170] sm:$0xf]
      %v448 = vld [vmem:[%s1 + $0x174] sm:$0xf]
      %v449 = vld [vmem:[%s1 + $0x178] sm:$0xf]
      %v450 = vld [vmem:[%s1 + $0x17c] sm:$0xf]
      %v451 = vld [vmem:[%s1 + $0x180] sm:$0xf]
      %v452 = vld [vmem:[%s1 + $0x184] sm:$0xf]
      %v453 = vld [vmem:[%s1 + $0x188] sm:$0xf]
      %v454 = vld [vmem:[%s1 + $0x18c] sm:$0xf]
      %v455 = vld [vmem:[%s1 + $0x190] sm:$0xf]
      %v456 = vld [vmem:[%s1 + $0x194] sm:$0xf]
      %v457 = vld [vmem:[%s1 + $0x198] sm:$0xf]
      %v458 = vld [vmem:[%s1 + $0x19c] sm:$0xf]
      %v459 = vld [vmem:[%s1 + $0x1a0] sm:$0xf]
      %v460 = vld [vmem:[%s1 + $0x1a4] sm:$0xf]
      %v461 = vld [vmem:[%s1 + $0x1a8] sm:$0xf]
      %v462 = vld [vmem:[%s1 + $0x1ac] sm:$0xf]
      %v463 = vld [vmem:[%s1 + $0x1b0] sm:$0xf]
      %v464 = vld [vmem:[%s1 + $0x1b4] sm:$0xf]
      %v465 = vld [vmem:[%s1 + $0x1b8] sm:$0xf]
      %v466 = vld [vmem:[%s1 + $0x1bc] sm:$0xf]
      %v467 = vld [vmem:[%s1 + $0x1c0] sm:$0xf]
      %v468 = vld [vmem:[%s1 + $0x1c4] sm:$0xf]
      %v469 = vld [vmem:[%s1 + $0x1c8] sm:$0xf]
      %v470 = vld [vmem:[%s1 + $0x1cc] sm:$0xf]
      %v471 = vld [vmem:[%s1 + $0x1d0] sm:$0xf]
      %v472 = vld [vmem:[%s1 + $0x1d4] sm:$0xf]
      %v473 = vld [vmem:[%s1 + $0x1d8] sm:$0xf]
      %v474 = vld [vmem:[%s1 + $0x1dc] sm:$0xf]
      %v475 = vld [vmem:[%s1 + $0x1e0] sm:$0xf]
      %v476 = vld [vmem:[%s1 + $0x1e4] sm:$0xf]
      %v477 = vld [vmem:[%s1 + $0x1e8] sm:$0xf]
      %v478 = vld [vmem:[%s1 + $0x1ec] sm:$0xf]
      %v479 = vld [vmem:[%s1 + $0x1f0] sm:$0xf]
      %v480 = vld [vmem:[%s1 + $0x1f4] sm:$0xf]
      %v481 = vld [vmem:[%s1 + $0x1f8] sm:$0xf]
      %v482 = vld [vmem:[%s1 + $0x1fc] sm:$0xf]
      %v483 = vld [vmem:[%s1 + $0x200] sm:$0xf]
      %v484 = vld [vmem:[%s1 + $0x204] sm:$0xf]
      %v485 = vld [vmem:[%s1 + $0x208] sm:$0xf]
      %v486 = vld [vmem:[%s1 + $0x20c] sm:$0xf]
      %v487 = vld [vmem:[%s1 + $0x210] sm:$0xf]
      %v488 = vld [vmem:[%s1 + $0x214] sm:$0xf]
      %v489 = vld [vmem:[%s1 + $0x218] sm:$0xf]
      %v490 = vld [vmem:[%s1 + $0x21c] sm:$0xf]
      %v491 = vld [vmem:[%s1 + $0x220] sm:$0xf]
      %v492 = vld [vmem:[%s1 + $0x224] sm:$0xf]
      %v493 = vld [vmem:[%s1 + $0x228] sm:$0xf]
      %v494 = vld [vmem:[%s1 + $0x22c] sm:$0xf]
      %v495 = vld [vmem:[%s1 + $0x230] sm:$0xf]
      %v496 = vld [vmem:[%s1 + $0x234] sm:$0xf]
      %v497 = vld [vmem:[%s1 + $0x238] sm:$0xf]
      %v498 = vld [vmem:[%s1 + $0x23c] sm:$0xf]
      %v499 = vld [vmem:[%s2] sm:$0x1]
      %v501 = vlaneseq
      %v502 = vshrl.u32 %v501, 7
      %v503 = vsub.s32 0, %v502
      %v504 = vrot.slane %v499, %v503
      %v506 = vcombine.low %v262, %v295
      %v507 = vcombine.high %v262, %v295
      %v508 = vcombine.low %v320, %v338
      %v509 = vcombine.high %v320, %v338
      %v511 = vunpack.c.l.s4 1983009808
      %v512 = vunpack.c.0.s8 %v511
      %v513 = vlaneseq
      %v514 = vshrl.u32 %v513, 7
      %v515 = vsub.s32 %v512, %v514
      %v516 = vrot.slane %v506, %v515
      %v518 = vunpack.c.l.s4 1983009808
      %v519 = vunpack.c.0.s8 %v518
      %v520 = vlaneseq
      %v521 = vshrl.u32 %v520, 7
      %v522 = vsub.s32 %v519, %v521
      %v523 = vrot.slane %v507, %v522
      %v525 = vunpack.c.l.s4 1983009808
      %v526 = vunpack.c.0.s8 %v525
      %v527 = vlaneseq
      %v528 = vshrl.u32 %v527, 7
      %v529 = vsub.s32 %v526, %v528
      %v530 = vrot.slane %v508, %v529
      %v532 = vunpack.c.l.s4 1983009808
      %v533 = vunpack.c.0.s8 %v532
      %v534 = vlaneseq
      %v535 = vshrl.u32 %v534, 7
      %v536 = vsub.s32 %v533, %v535
      %v537 = vrot.slane %v509, %v536
      %v538 = vcombine.low %v516, %v530
      %v539 = vcombine.high %v516, %v530
      %v540 = vcombine.low %v523, %v537
      %v541 = vcombine.high %v523, %v537
      %v542 = vcombine.low %v279, %v304
      %v543 = vcombine.high %v279, %v304
      %v544 = vcombine.low %v329, %v347
      %v545 = vcombine.high %v329, %v347
      %v547 = vunpack.c.l.s4 1983009808
      %v548 = vunpack.c.0.s8 %v547
      %v549 = vlaneseq
      %v550 = vshrl.u32 %v549, 7
      %v551 = vsub.s32 %v548, %v550
      %v552 = vrot.slane %v542, %v551
      %v554 = vunpack.c.l.s4 1983009808
      %v555 = vunpack.c.0.s8 %v554
      %v556 = vlaneseq
      %v557 = vshrl.u32 %v556, 7
      %v558 = vsub.s32 %v555, %v557
      %v559 = vrot.slane %v543, %v558
      %v561 = vunpack.c.l.s4 1983009808
      %v562 = vunpack.c.0.s8 %v561
      %v563 = vlaneseq
      %v564 = vshrl.u32 %v563, 7
      %v565 = vsub.s32 %v562, %v564
      %v566 = vrot.slane %v544, %v565
      %v568 = vunpack.c.l.s4 1983009808
      %v569 = vunpack.c.0.s8 %v568
      %v570 = vlaneseq
      %v571 = vshrl.u32 %v570, 7
      %v572 = vsub.s32 %v569, %v571
      %v573 = vrot.slane %v545, %v572
      %v574 = vcombine.low %v552, %v566
      %v575 = vcombine.high %v552, %v566
      %v576 = vcombine.low %v559, %v573
      %v577 = vcombine.high %v559, %v573
      %v578 = vcombine.low %v286, %v311
      %v579 = vcombine.low %v311, %v354
      %v581 = vunpack.c.l.s4 1983009808
      %v582 = vunpack.c.0.s8 %v581
      %v583 = vlaneseq
      %v584 = vshrl.u32 %v583, 7
      %v585 = vsub.s32 %v582, %v584
      %v586 = vrot.slane %v578, %v585
      %v588 = vunpack.c.l.s4 1983009808
      %v589 = vunpack.c.0.s8 %v588
      %v590 = vlaneseq
      %v591 = vshrl.u32 %v590, 7
      %v592 = vsub.s32 %v589, %v591
      %v593 = vrot.slane %v579, %v592
      %v594 = vcombine.low %v586, %v593
      %v748 = vunpack.c.l.b16 %v355
      %v749 = vunpack.c.l.b16 %v356
      %v750 = vunpack.c.l.b16 %v357
      %v751 = vunpack.c.l.b16 %v358
      %v752 = vunpack.c.l.b16 %v359
      %v753 = vunpack.c.l.b16 %v360
      %v754 = vunpack.c.l.b16 %v361
      %v755 = vunpack.c.l.b16 %v362
      %v756 = vunpack.c.l.b16 %v363
      %v757 = vunpack.c.l.b16 %v364
      %v758 = vunpack.c.l.b16 %v365
      %v759 = vunpack.c.l.b16 %v366
      %v760 = vunpack.c.l.b16 %v367
      %v761 = vunpack.c.l.b16 %v368
      %v762 = vunpack.c.l.b16 %v369
      %v763 = vunpack.c.l.b16 %v370
      %v764 = vunpack.c.l.b16 %v371
      %v765 = vunpack.c.l.b16 %v372
      %v766 = vunpack.c.l.b16 %v373
      %v767 = vunpack.c.l.b16 %v374
      %v768 = vunpack.c.l.b16 %v375
      %v769 = vunpack.c.l.b16 %v376
      %v770 = vunpack.c.l.b16 %v377
      %v771 = vunpack.c.l.b16 %v378
      %v772 = vunpack.c.l.b16 %v379
      %v773 = vunpack.c.l.b16 %v380
      %v774 = vunpack.c.l.b16 %v381
      %v775 = vunpack.c.l.b16 %v382
      %v776 = vunpack.c.l.b16 %v383
      %v777 = vunpack.c.l.b16 %v384
      %v778 = vunpack.c.l.b16 %v385
      %v779 = vunpack.c.l.b16 %v386
      %v780 = vunpack.c.l.b16 %v387
      %v781 = vunpack.c.l.b16 %v388
      %v782 = vunpack.c.l.b16 %v389
      %v783 = vunpack.c.l.b16 %v390
      %v784 = vunpack.c.l.b16 %v391
      %v785 = vunpack.c.l.b16 %v392
      %v786 = vunpack.c.l.b16 %v393
      %v787 = vunpack.c.l.b16 %v394
      %v788 = vunpack.c.l.b16 %v395
      %v789 = vunpack.c.l.b16 %v396
      %v790 = vunpack.c.l.b16 %v397
      %v791 = vunpack.c.l.b16 %v398
      %v792 = vunpack.c.l.b16 %v399
      %v793 = vunpack.c.l.b16 %v400
      %v794 = vunpack.c.l.b16 %v401
      %v795 = vunpack.c.l.b16 %v402
      %v796 = vunpack.c.l.b16 %v403
      %v797 = vunpack.c.l.b16 %v404
      %v798 = vunpack.c.l.b16 %v405
      %v799 = vunpack.c.l.b16 %v406
      %v800 = vunpack.c.l.b16 %v407
      %v801 = vunpack.c.l.b16 %v408
      %v802 = vunpack.c.l.b16 %v409
      %v803 = vunpack.c.l.b16 %v410
      %v804 = vunpack.c.l.b16 %v411
      %v805 = vunpack.c.l.b16 %v412
      %v806 = vunpack.c.l.b16 %v413
      %v807 = vunpack.c.l.b16 %v414
      %v808 = vunpack.c.l.b16 %v415
      %v809 = vunpack.c.l.b16 %v416
      %v810 = vunpack.c.l.b16 %v417
      %v811 = vunpack.c.l.b16 %v418
      %v812 = vunpack.c.l.b16 %v419
      %v813 = vunpack.c.l.b16 %v420
      %v814 = vunpack.c.l.b16 %v421
      %v815 = vunpack.c.l.b16 %v422
      %v816 = vunpack.c.l.b16 %v423
      %v817 = vunpack.c.l.b16 %v424
      %v818 = vunpack.c.l.b16 %v425
      %v819 = vunpack.c.l.b16 %v426
      %v820 = vunpack.c.l.b16 %v427
      %v821 = vunpack.c.l.b16 %v428
      %v822 = vunpack.c.l.b16 %v429
      %v823 = vunpack.c.l.b16 %v430
      %v824 = vunpack.c.l.b16 %v431
      %v825 = vunpack.c.l.b16 %v432
      %v826 = vunpack.c.l.b16 %v433
      %v827 = vunpack.c.l.b16 %v434
      %v828 = vunpack.c.l.b16 %v435
      %v829 = vunpack.c.l.b16 %v436
      %v830 = vunpack.c.l.b16 %v437
      %v831 = vunpack.c.l.b16 %v438
      %v832 = vunpack.c.l.b16 %v439
      %v833 = vunpack.c.l.b16 %v440
      %v834 = vunpack.c.l.b16 %v441
      %v835 = vunpack.c.l.b16 %v442
      %v836 = vunpack.c.l.b16 %v443
      %v837 = vunpack.c.l.b16 %v444
      %v838 = vunpack.c.l.b16 %v445
      %v839 = vunpack.c.l.b16 %v446
      %v840 = vunpack.c.l.b16 %v447
      %v841 = vunpack.c.l.b16 %v448
      %v842 = vunpack.c.l.b16 %v449
      %v843 = vunpack.c.l.b16 %v450
      %v844 = vunpack.c.l.b16 %v451
      %v845 = vunpack.c.l.b16 %v452
      %v846 = vunpack.c.l.b16 %v453
      %v847 = vunpack.c.l.b16 %v454
      %v848 = vunpack.c.l.b16 %v455
      %v849 = vunpack.c.l.b16 %v456
      %v850 = vunpack.c.l.b16 %v457
      %v851 = vunpack.c.l.b16 %v458
      %v852 = vunpack.c.l.b16 %v459
      %v853 = vunpack.c.l.b16 %v460
      %v854 = vunpack.c.l.b16 %v461
      %v855 = vunpack.c.l.b16 %v462
      %v856 = vunpack.c.l.b16 %v463
      %v857 = vunpack.c.l.b16 %v464
      %v858 = vunpack.c.l.b16 %v465
      %v859 = vunpack.c.l.b16 %v466
      %v860 = vunpack.c.l.b16 %v467
      %v861 = vunpack.c.l.b16 %v468
      %v862 = vunpack.c.l.b16 %v469
      %v863 = vunpack.c.l.b16 %v470
      %v864 = vunpack.c.l.b16 %v471
      %v865 = vunpack.c.l.b16 %v472
      %v866 = vunpack.c.l.b16 %v473
      %v867 = vunpack.c.l.b16 %v474
      %v868 = vunpack.c.l.b16 %v475
      %v869 = vunpack.c.l.b16 %v476
      %v870 = vunpack.c.l.b16 %v477
      %v871 = vunpack.c.l.b16 %v478
      %v872 = vunpack.c.l.b16 %v479
      %v873 = vunpack.c.l.b16 %v480
      %v874 = vunpack.c.l.b16 %v481
      %v875 = vunpack.c.l.b16 %v482
      %v876 = vunpack.c.l.b16 %v483
      %v877 = vunpack.c.l.b16 %v484
      %v878 = vunpack.c.l.b16 %v485
      %v879 = vunpack.c.l.b16 %v486
      %v880 = vunpack.c.l.b16 %v487
      %v881 = vunpack.c.l.b16 %v488
      %v882 = vunpack.c.l.b16 %v489
      %v883 = vunpack.c.l.b16 %v490
      %v884 = vunpack.c.l.b16 %v491
      %v885 = vunpack.c.l.b16 %v492
      %v886 = vunpack.c.l.b16 %v493
      %v887 = vunpack.c.l.b16 %v494
      %v888 = vunpack.c.l.b16 %v495
      %v889 = vunpack.c.l.b16 %v496
      %v890 = vunpack.c.l.b16 %v497
      %v891 = vunpack.c.l.b16 %v498
      %v892 = vpack.c.b16 %v749, %v748
      %v893 = vpack.c.b16 %v751, %v750
      %v894 = vpack.c.b16 %v753, %v752
      %v895 = vpack.c.b16 %v755, %v754
      %v896 = vpack.c.b16 %v757, %v756
      %v897 = vpack.c.b16 %v759, %v758
      %v898 = vpack.c.b16 %v761, %v760
      %v899 = vpack.c.b16 %v763, %v762
      %v900 = vpack.c.b16 %v765, %v764
      %v901 = vpack.c.b16 %v767, %v766
      %v902 = vpack.c.b16 %v769, %v768
      %v903 = vpack.c.b16 %v771, %v770
      %v904 = vpack.c.b16 %v773, %v772
      %v905 = vpack.c.b16 %v775, %v774
      %v906 = vpack.c.b16 %v777, %v776
      %v907 = vpack.c.b16 %v779, %v778
      %v908 = vpack.c.b16 %v781, %v780
      %v909 = vpack.c.b16 %v783, %v782
      %v910 = vpack.c.b16 %v785, %v784
      %v911 = vpack.c.b16 %v787, %v786
      %v912 = vpack.c.b16 %v789, %v788
      %v913 = vpack.c.b16 %v791, %v790
      %v914 = vpack.c.b16 %v793, %v792
      %v915 = vpack.c.b16 %v795, %v794
      %v916 = vpack.c.b16 %v797, %v796
      %v917 = vpack.c.b16 %v799, %v798
      %v918 = vpack.c.b16 %v801, %v800
      %v919 = vpack.c.b16 %v803, %v802
      %v920 = vpack.c.b16 %v805, %v804
      %v921 = vpack.c.b16 %v807, %v806
      %v922 = vpack.c.b16 %v809, %v808
      %v923 = vpack.c.b16 %v811, %v810
      %v924 = vpack.c.b16 %v813, %v812
      %v925 = vpack.c.b16 %v815, %v814
      %v926 = vpack.c.b16 %v817, %v816
      %v927 = vpack.c.b16 %v819, %v818
      %v928 = vpack.c.b16 %v821, %v820
      %v929 = vpack.c.b16 %v823, %v822
      %v930 = vpack.c.b16 %v825, %v824
      %v931 = vpack.c.b16 %v827, %v826
      %v932 = vpack.c.b16 %v829, %v828
      %v933 = vpack.c.b16 %v831, %v830
      %v934 = vpack.c.b16 %v833, %v832
      %v935 = vpack.c.b16 %v835, %v834
      %v936 = vpack.c.b16 %v837, %v836
      %v937 = vpack.c.b16 %v839, %v838
      %v938 = vpack.c.b16 %v841, %v840
      %v939 = vpack.c.b16 %v843, %v842
      %v940 = vpack.c.b16 %v845, %v844
      %v941 = vpack.c.b16 %v847, %v846
      %v942 = vpack.c.b16 %v849, %v848
      %v943 = vpack.c.b16 %v851, %v850
      %v944 = vpack.c.b16 %v853, %v852
      %v945 = vpack.c.b16 %v855, %v854
      %v946 = vpack.c.b16 %v857, %v856
      %v947 = vpack.c.b16 %v859, %v858
      %v948 = vpack.c.b16 %v861, %v860
      %v949 = vpack.c.b16 %v863, %v862
      %v950 = vpack.c.b16 %v865, %v864
      %v951 = vpack.c.b16 %v867, %v866
      %v952 = vpack.c.b16 %v869, %v868
      %v953 = vpack.c.b16 %v871, %v870
      %v954 = vpack.c.b16 %v873, %v872
      %v955 = vpack.c.b16 %v875, %v874
      %v956 = vpack.c.b16 %v877, %v876
      %v957 = vpack.c.b16 %v879, %v878
      %v958 = vpack.c.b16 %v881, %v880
      %v959 = vpack.c.b16 %v883, %v882
      %v960 = vpack.c.b16 %v885, %v884
      %v961 = vpack.c.b16 %v887, %v886
      %v962 = vpack.c.b16 %v889, %v888
      %v963 = vpack.c.b16 %v891, %v890
      %1036 = vmatprep.subr.bf16.mxu0 0
      %1037 = vmatpush1.bf16.msra.mxu0 %v892
      %1038 = vmatprep.subr.bf16.mxu0 0
      %1039 = vmatpush1.bf16.msra.mxu0 %v893
      %1040 = vmatprep.subr.bf16.mxu0 0
      %1041 = vmatpush1.bf16.msra.mxu0 %v894
      %1042 = vmatprep.subr.bf16.mxu0 0
      %1043 = vmatpush1.bf16.msra.mxu0 %v895
      %1044 = vmatprep.subr.bf16.mxu0 0
      %1045 = vmatpush1.bf16.msra.mxu0 %v896
      %1046 = vmatprep.subr.bf16.mxu0 0
      %1047 = vmatpush1.bf16.msra.mxu0 %v897
      %1048 = vmatprep.subr.bf16.mxu0 0
      %1049 = vmatpush1.bf16.msra.mxu0 %v898
      %1050 = vmatprep.subr.bf16.mxu0 0
      %1051 = vmatpush1.bf16.msra.mxu0 %v899
      %1052 = vmatprep.subr.bf16.mxu0 0
      %1053 = vmatpush1.bf16.msra.mxu0 %v900
      %1054 = vmatprep.subr.bf16.mxu0 0
      %1055 = vmatpush1.bf16.msra.mxu0 %v901
      %1056 = vmatprep.subr.bf16.mxu0 0
      %1057 = vmatpush1.bf16.msra.mxu0 %v902
      %1058 = vmatprep.subr.bf16.mxu0 0
      %1059 = vmatpush1.bf16.msra.mxu0 %v903
      %1060 = vmatprep.subr.bf16.mxu0 0
      %1061 = vmatpush1.bf16.msra.mxu0 %v904
      %1062 = vmatprep.subr.bf16.mxu0 0
      %1063 = vmatpush1.bf16.msra.mxu0 %v905
      %1064 = vmatprep.subr.bf16.mxu0 0
      %1065 = vmatpush1.bf16.msra.mxu0 %v906
      %1066 = vmatprep.subr.bf16.mxu0 0
      %1067 = vmatpush1.bf16.msra.mxu0 %v907
      %1068 = vmatprep.mubr.bf16.mxu0 %v539
      %1069 = vmatmul.mubr.bf16.gmra.mrb[0].mxu0 %v538
      %v1070 = vpop.f32.mrb[0].mxu0
      %v1071 = vadd.f32 %v504, %v1070
      %v1072 = vpop.f32.mrb[0].mxu0
      %v1073 = vpop.f32.mrb[0].mxu0
      %v1074 = vadd.f32 %v504, %v1073
      %v1075 = vpop.f32.mrb[0].mxu0
      %1076 = vdwg.mxu0
      %1077 = vmatprep.subr.bf16.mxu0 0
      %1078 = vmatpush1.bf16.msra.mxu0 %v908
      %1079 = vmatprep.subr.bf16.mxu0 0
      %1080 = vmatpush1.bf16.msra.mxu0 %v909
      %1081 = vmatprep.subr.bf16.mxu0 0
      %1082 = vmatpush1.bf16.msra.mxu0 %v910
      %1083 = vmatprep.subr.bf16.mxu0 0
      %1084 = vmatpush1.bf16.msra.mxu0 %v911
      %1085 = vmatprep.subr.bf16.mxu0 0
      %1086 = vmatpush1.bf16.msra.mxu0 %v912
      %1087 = vmatprep.subr.bf16.mxu0 0
      %1088 = vmatpush1.bf16.msra.mxu0 %v913
      %1089 = vmatprep.subr.bf16.mxu0 0
      %1090 = vmatpush1.bf16.msra.mxu0 %v914
      %1091 = vmatprep.subr.bf16.mxu0 0
      %1092 = vmatpush1.bf16.msra.mxu0 %v915
      %1093 = vmatprep.subr.bf16.mxu0 0
      %1094 = vmatpush1.bf16.msra.mxu0 %v916
      %1095 = vmatprep.subr.bf16.mxu0 0
      %1096 = vmatpush1.bf16.msra.mxu0 %v917
      %1097 = vmatprep.subr.bf16.mxu0 0
      %1098 = vmatpush1.bf16.msra.mxu0 %v918
      %1099 = vmatprep.subr.bf16.mxu0 0
      %1100 = vmatpush1.bf16.msra.mxu0 %v919
      %1101 = vmatprep.subr.bf16.mxu0 0
      %1102 = vmatpush1.bf16.msra.mxu0 %v920
      %1103 = vmatprep.subr.bf16.mxu0 0
      %1104 = vmatpush1.bf16.msra.mxu0 %v921
      %1105 = vmatprep.subr.bf16.mxu0 0
      %1106 = vmatpush1.bf16.msra.mxu0 %v922
      %1107 = vmatprep.subr.bf16.mxu0 0
      %1108 = vmatpush1.bf16.msra.mxu0 %v923
      %1109 = vmatprep.mubr.bf16.mxu0 %v541
      %1110 = vmatmul.mubr.bf16.gmra.mrb[0].mxu0 %v540
      %v1111 = vpop.f32.mrb[0].mxu0
      %v1112 = vadd.f32 %v1071, %v1111
      %v1113 = vpop.f32.mrb[0].mxu0
      %v1114 = vpop.f32.mrb[0].mxu0
      %v1115 = vadd.f32 %v1074, %v1114
      %v1116 = vpop.f32.mrb[0].mxu0
      %1117 = vdwg.mxu0
      %1118 = vmatprep.subr.bf16.mxu0 0
      %1119 = vmatpush1.bf16.msra.mxu0 %v924
      %1120 = vmatprep.subr.bf16.mxu0 0
      %1121 = vmatpush1.bf16.msra.mxu0 %v925
      %1122 = vmatprep.subr.bf16.mxu0 0
      %1123 = vmatpush1.bf16.msra.mxu0 %v926
      %1124 = vmatprep.subr.bf16.mxu0 0
      %1125 = vmatpush1.bf16.msra.mxu0 %v927
      %1126 = vmatprep.subr.bf16.mxu0 0
      %1127 = vmatpush1.bf16.msra.mxu0 %v928
      %1128 = vmatprep.subr.bf16.mxu0 0
      %1129 = vmatpush1.bf16.msra.mxu0 %v929
      %1130 = vmatprep.subr.bf16.mxu0 0
      %1131 = vmatpush1.bf16.msra.mxu0 %v930
      %1132 = vmatprep.subr.bf16.mxu0 0
      %1133 = vmatpush1.bf16.msra.mxu0 %v931
      %1134 = vmatprep.subr.bf16.mxu0 0
      %1135 = vmatpush1.bf16.msra.mxu0 %v932
      %1136 = vmatprep.subr.bf16.mxu0 0
      %1137 = vmatpush1.bf16.msra.mxu0 %v933
      %1138 = vmatprep.subr.bf16.mxu0 0
      %1139 = vmatpush1.bf16.msra.mxu0 %v934
      %1140 = vmatprep.subr.bf16.mxu0 0
      %1141 = vmatpush1.bf16.msra.mxu0 %v935
      %1142 = vmatprep.subr.bf16.mxu0 0
      %1143 = vmatpush1.bf16.msra.mxu0 %v936
      %1144 = vmatprep.subr.bf16.mxu0 0
      %1145 = vmatpush1.bf16.msra.mxu0 %v937
      %1146 = vmatprep.subr.bf16.mxu0 0
      %1147 = vmatpush1.bf16.msra.mxu0 %v938
      %1148 = vmatprep.subr.bf16.mxu0 0
      %1149 = vmatpush1.bf16.msra.mxu0 %v939
      %1150 = vmatprep.mubr.bf16.mxu0 %v575
      %1151 = vmatmul.mubr.bf16.gmra.mrb[0].mxu0 %v574
      %v1152 = vpop.f32.mrb[0].mxu0
      %v1153 = vadd.f32 %v1112, %v1152
      %v1154 = vpop.f32.mrb[0].mxu0
      %v1155 = vpop.f32.mrb[0].mxu0
      %v1156 = vadd.f32 %v1115, %v1155
      %v1157 = vpop.f32.mrb[0].mxu0
      %1158 = vdwg.mxu0
      %1159 = vmatprep.subr.bf16.mxu0 0
      %1160 = vmatpush1.bf16.msra.mxu0 %v940
      %1161 = vmatprep.subr.bf16.mxu0 0
      %1162 = vmatpush1.bf16.msra.mxu0 %v941
      %1163 = vmatprep.subr.bf16.mxu0 0
      %1164 = vmatpush1.bf16.msra.mxu0 %v942
      %1165 = vmatprep.subr.bf16.mxu0 0
      %1166 = vmatpush1.bf16.msra.mxu0 %v943
      %1167 = vmatprep.subr.bf16.mxu0 0
      %1168 = vmatpush1.bf16.msra.mxu0 %v944
      %1169 = vmatprep.subr.bf16.mxu0 0
      %1170 = vmatpush1.bf16.msra.mxu0 %v945
      %1171 = vmatprep.subr.bf16.mxu0 0
      %1172 = vmatpush1.bf16.msra.mxu0 %v946
      %1173 = vmatprep.subr.bf16.mxu0 0
      %1174 = vmatpush1.bf16.msra.mxu0 %v947
      %1175 = vmatprep.subr.bf16.mxu0 0
      %1176 = vmatpush1.bf16.msra.mxu0 %v948
      %1177 = vmatprep.subr.bf16.mxu0 0
      %1178 = vmatpush1.bf16.msra.mxu0 %v949
      %1179 = vmatprep.subr.bf16.mxu0 0
      %1180 = vmatpush1.bf16.msra.mxu0 %v950
      %1181 = vmatprep.subr.bf16.mxu0 0
      %1182 = vmatpush1.bf16.msra.mxu0 %v951
      %1183 = vmatprep.subr.bf16.mxu0 0
      %1184 = vmatpush1.bf16.msra.mxu0 %v952
      %1185 = vmatprep.subr.bf16.mxu0 0
      %1186 = vmatpush1.bf16.msra.mxu0 %v953
      %1187 = vmatprep.subr.bf16.mxu0 0
      %1188 = vmatpush1.bf16.msra.mxu0 %v954
      %1189 = vmatprep.subr.bf16.mxu0 0
      %1190 = vmatpush1.bf16.msra.mxu0 %v955
      %1191 = vmatprep.mubr.bf16.mxu0 %v577
      %1192 = vmatmul.mubr.bf16.gmra.mrb[0].mxu0 %v576
      %v1193 = vpop.f32.mrb[0].mxu0
      %v1194 = vadd.f32 %v1153, %v1193
      %v1195 = vpop.f32.mrb[0].mxu0
      %v1196 = vpop.f32.mrb[0].mxu0
      %v1197 = vadd.f32 %v1156, %v1196
      %v1198 = vpop.f32.mrb[0].mxu0
      %1199 = vdwg.mxu0
      %1200 = vmatprep.subr.bf16.mxu0 0
      %1201 = vmatpush1.bf16.msra.mxu0 %v956
      %1202 = vmatprep.subr.bf16.mxu0 0
      %1203 = vmatpush1.bf16.msra.mxu0 %v957
      %1204 = vmatprep.subr.bf16.mxu0 0
      %1205 = vmatpush1.bf16.msra.mxu0 %v958
      %1206 = vmatprep.subr.bf16.mxu0 0
      %1207 = vmatpush1.bf16.msra.mxu0 %v959
      %1208 = vmatprep.subr.bf16.mxu0 0
      %1209 = vmatpush1.bf16.msra.mxu0 %v960
      %1210 = vmatprep.subr.bf16.mxu0 0
      %1211 = vmatpush1.bf16.msra.mxu0 %v961
      %1212 = vmatprep.subr.bf16.mxu0 0
      %1213 = vmatpush1.bf16.msra.mxu0 %v962
      %1214 = vmatprep.subr.bf16.mxu0 0
      %1215 = vmatpush1.bf16.msra.mxu0 %v963
      %1216 = vmatprep.subr.bf16.mxu0 0
      %1217 = vmatpush1.bf16.msra.mxu0 0
      %1218 = vmatprep.subr.bf16.mxu0 0
      %1219 = vmatpush1.bf16.msra.mxu0 0
      %1220 = vmatprep.subr.bf16.mxu0 0
      %1221 = vmatpush1.bf16.msra.mxu0 0
      %1222 = vmatprep.subr.bf16.mxu0 0
      %1223 = vmatpush1.bf16.msra.mxu0 0
      %1224 = vmatprep.subr.bf16.mxu0 0
      %1225 = vmatpush1.bf16.msra.mxu0 0
      %1226 = vmatprep.subr.bf16.mxu0 0
      %1227 = vmatpush1.bf16.msra.mxu0 0
      %1228 = vmatprep.subr.bf16.mxu0 0
      %1229 = vmatpush1.bf16.msra.mxu0 0
      %1230 = vmatprep.subr.bf16.mxu0 0
      %1231 = vmatpush1.bf16.msra.mxu0 0
      %1232 = vmatprep.mubr.bf16.mxu0 0
      %1233 = vmatmul.mubr.bf16.gmra.mrb[0].mxu0 %v594
      %v1234 = vpop.f32.mrb[0].mxu0
      %v1235 = vadd.f32 %v1194, %v1234
      %v1236 = vpop.f32.mrb[0].mxu0
      %v1237 = vpop.f32.mrb[0].mxu0
      %v1238 = vadd.f32 %v1197, %v1237
      %v1239 = vpop.f32.mrb[0].mxu0
      %1240 = vdwg.mxu0
      %vm1241 = vcmp.gt.f32.partialorder %v1235, 0.0
      %vm1242 = vcmp.gt.f32.partialorder %v1238, 0.0
      %v1243 = vmul.f32 %v1235, 0.2
      %v1244 = vmul.f32 %v1238, 0.2
      %v1245 = vsel %vm1241, %v1235, %v1243
      %v1246 = vsel %vm1242, %v1238, %v1244
      %v1249 = vcombine.high %v1245, %v1245
      %v1250 = vcombine.high %v1246, %v1246
      %v1253 = vpack.c.bf16 %v1245, %v1245
      %v1254 = vpack.c.bf16 %v1249, %v1249
      %v1255 = vpack.c.bf16 %v1246, %v1246
      %v1256 = vpack.c.bf16 %v1250, %v1250
      %1257 = vst [vmem:[%s192] sm:$0x3] %v1253
      %1258 = vst [vmem:[%s192 + $0x2] sm:$0x3] %v1254
      %1259 = vst [vmem:[%s192 + $0x4] sm:$0x3] %v1255
      %1260 = vst [vmem:[%s192 + $0x6] sm:$0x3] %v1256
      %s1261 = smul.u32 4, %s19
      %p1262 = scmp.lt.s32.totalorder %s18, 1
      %s1263 = scalar_select %p1262, %s18, 1
      %p1264 = scmp.lt.s32.totalorder %s1261, 3
      %s1265 = scalar_select %p1264, %s1261, 3
      %s1266 = smul.addr %s1263, 4
      %s1267 = sadd.s32 %s1265, %s1266
      %s1268 = smul.addr %s1267, 2
      %s1269 = scalar_lea.vmem %s3, %s1268
      // Predicated region
      $region33: #{decoder_forward.7} parent=31 // pred_check
        %p1270 = pneg %p114
      $region34: #{decoder_forward.7} parent=31 // pred_check_branch
        %1272 = sbr.rel (%p1270) target = $region36
      $region35: #{decoder_forward.7} parent=31 // pred_region
        %s1273 = smul.u32 4, %s19
      $region36: #{decoder_forward.7} parent=31 // pred_fallthru
        _
    $region32: #{decoder_forward.7} parent=5 // pred_fallthru
      _
    %p1274 = scmp.le.s32.totalorder 2, %s9
    // Predicated region
    $region37: #{decoder_forward.7} parent=5 // pred_check
      %p1275 = pneg %p1274
    $region38: #{decoder_forward.7} parent=5 // pred_check_branch
      %1277 = sbr.rel (%p1275) target = $region40
    $region39: #{decoder_forward.7} parent=5 // pred_region
      %s1278 = ssub.s32 %s9, 2
      // Predicated region
      $region41: #{decoder_forward.7} parent=39 // pred_check
        %p1279 = pneg %p120
      $region42: #{decoder_forward.7} parent=39 // pred_check_branch
        %1281 = sbr.rel (%p1279) target = $region44
      $region43: #{decoder_forward.7} parent=39 // pred_region
        %s1282 = smul.u32 4, %s21
        %p1283 = scmp.lt.s32.totalorder %s20, 1
        %s1284 = scalar_select %p1283, %s20, 1
        %p1285 = scmp.lt.s32.totalorder %s1282, 3
        %s1286 = scalar_select %p1285, %s1282, 3
        %s1287 = smul.addr %s1284, 4
        %s1288 = sadd.s32 %s1286, %s1287
        %s1289 = smul.addr %s1288, 2
        %s1290 = scalar_lea.vmem %s3, %s1289
      $region44: #{decoder_forward.7} parent=39 // pred_fallthru
        _
    $region40: #{decoder_forward.7} parent=5 // pred_fallthru
      _
  $region6: #{decoder_forward.7} parent=0 // loop_footer
    %s13 = sadd.s32 1, %s9
  $region7: #{decoder_forward.7} parent=0 // loop_footer_branch
    %8 = sbr.rel target = $region3
  $region8: #{decoder_forward.7} parent=0 // loop_exit
    _

// kernel: decoder_forward.6
$region0: #{decoder_forward.6}
  #allocation0 [shape = 'u32[]', space=smem, size = 0x4, offset = 0x4, fixed_abs, tag = 'smem constant byte address 0x4 - core index']
  #allocation1 [shape = 'u32[144,128]{1,0:T(1,128)}', space=vmem, size = 0x12000, scoped, tag = 'internal scratch']
  %s0 = inlined_call_operand.vmem [shape: bf16[2,3,4,128], index: 0, kind: input, shape index: {}]
  %s1 = inlined_call_operand.vmem [shape: bf16[1152,128], index: 1, kind: input, shape index: {}]
  %s2 = inlined_call_operand.vmem [shape: f32[1,128], index: 2, kind: input, shape index: {}]
  %s3 = inlined_call_operand.vmem [shape: bf16[2,2,2,128], index: 3, kind: output, shape index: {}]
  %s4 = sld [smem:[#allocation0]]
  $region45: #{decoder_forward.6} parent=0
    _
  %s6 = ssub.s32 1, %s4
  %s7 = scalar_select 0, %s6, %s4
  loop: start=0, step=1, limit=4
  $region2: #{decoder_forward.6} parent=0 // loop_pre_header
    _
  $region3: #{decoder_forward.6} parent=0 // loop_header
    %s9 = sphi 0, %s13
    %p10 = scmp.ge.s32.totalorder %s9, 4
    %s16 = sphi 0, %s28
    %s17 = sphi 0, %s24
    %s18 = sphi 0, %s16
    %s19 = sphi 0, %s17
    %s20 = sphi 0, %s18
    %s21 = sphi 0, %s19
    %s31 = sphi 0, %s33
    %s34 = sphi 0, %s31
    %s35 = sphi 0, %s34
    %s51 = sphi 0, %s35
    %s55 = sphi 0, %s55
    %s57 = sphi 0, %s55
    %s58 = sphi 0, %s57
    %s72 = sphi 0, %s58
    %s76 = sphi 0, %s76
    %s78 = sphi 0, %s76
    %s79 = sphi 0, %s78
    %s93 = sphi 0, %s79
    %s101 = sphi 0, %s103
    %s104 = sphi 0, %s101
    %s105 = sphi 0, %s104
    %s121 = sphi 0, %s105
  $region4: #{decoder_forward.6} parent=0 // loop_header_branch
    %12 = sbr.rel (%p10) target = $region8
  $region5: #{decoder_forward.6} parent=0 // loop_body
    %s14 = ssub.s32 %s9, 1
    %s15 = ssub.s32 %s9, 2
    %s22 = sadd.s32 1, %s17
    %p23 = scmp.ge.s32.totalorder %s22, 1
    %s24 = scalar_select %p23, 0, %s22
    %s25 = sadd.s32 1, %s16
    %s26 = scalar_select %p23, %s25, %s16
    %p27 = scmp.ge.s32.totalorder %s26, 2
    %s28 = scalar_select %p27, 0, %s26
    %s29 = ssub.s32 %s16, %s28
    %p30 = scmp.eq.s32.totalorder %s29, 0
    %s32 = sadd.s32 %s31, 1
    %s33 = scalar_select %p30, %s31, %s32
    %p36 = pneg %p30
    %p37 = scmp.eq.s32.totalorder %s9, 1
    %p38 = por %p36, %p37
    %p39 = scmp.ne.s32.totalorder %s31, %s34
    %p40 = scmp.eq.s32.totalorder %s9, 0
    %p41 = por %p39, %p40
    %p42 = scmp.ne.s32.totalorder %s31, %s34
    %p43 = scmp.eq.s32.totalorder %s14, 1
    %p44 = por %p42, %p43
    %p45 = scmp.ne.s32.totalorder %s34, %s35
    %p46 = scmp.eq.s32.totalorder %s14, 0
    %p47 = por %p45, %p46
    %p48 = scmp.ne.s32.totalorder %s34, %s35
    %p49 = scmp.eq.s32.totalorder %s15, 1
    %p50 = por %p48, %p49
    %p52 = scmp.ne.s32.totalorder %s35, %s51
    %p53 = scmp.eq.s32.totalorder %s15, 0
    %p54 = por %p52, %p53
    %s56 = sadd.s32 %s55, 1
    %p59 = scmp.eq.s32.totalorder %s9, 1
    %p60 = scmp.ne.s32.totalorder %s55, %s57
    %p61 = scmp.eq.s32.totalorder %s9, 0
    %p62 = por %p60, %p61
    %p63 = scmp.ne.s32.totalorder %s55, %s57
    %p64 = scmp.eq.s32.totalorder %s14, 1
    %p65 = por %p63, %p64
    %p66 = scmp.ne.s32.totalorder %s57, %s58
    %p67 = scmp.eq.s32.totalorder %s14, 0
    %p68 = por %p66, %p67
    %p69 = scmp.ne.s32.totalorder %s57, %s58
    %p70 = scmp.eq.s32.totalorder %s15, 1
    %p71 = por %p69, %p70
    %p73 = scmp.ne.s32.totalorder %s58, %s72
    %p74 = scmp.eq.s32.totalorder %s15, 0
    %p75 = por %p73, %p74
    %s77 = sadd.s32 %s76, 1
    %p80 = scmp.eq.s32.totalorder %s9, 1
    %p81 = scmp.ne.s32.totalorder %s76, %s78
    %p82 = scmp.eq.s32.totalorder %s9, 0
    %p83 = por %p81, %p82
    %p84 = scmp.ne.s32.totalorder %s76, %s78
    %p85 = scmp.eq.s32.totalorder %s14, 1
    %p86 = por %p84, %p85
    %p87 = scmp.ne.s32.totalorder %s78, %s79
    %p88 = scmp.eq.s32.totalorder %s14, 0
    %p89 = por %p87, %p88
    %p90 = scmp.ne.s32.totalorder %s78, %s79
    %p91 = scmp.eq.s32.totalorder %s15, 1
    %p92 = por %p90, %p91
    %p94 = scmp.ne.s32.totalorder %s79, %s93
    %p95 = scmp.eq.s32.totalorder %s15, 0
    %p96 = por %p94, %p95
    %s97 = ssub.s32 %s16, %s28
    %s98 = ssub.s32 %s17, %s24
    %s99 = sor.u32 %s97, %s98
    %p100 = scmp.eq.s32.totalorder %s99, 0
    %s102 = sadd.s32 %s101, 1
    %s103 = scalar_select %p100, %s101, %s102
    %p106 = pneg %p100
    %p107 = scmp.eq.s32.totalorder %s9, 1
    %p108 = por %p106, %p107
    %p109 = scmp.ne.s32.totalorder %s101, %s104
    %p110 = scmp.eq.s32.totalorder %s9, 0
    %p111 = por %p109, %p110
    %p112 = scmp.ne.s32.totalorder %s101, %s104
    %p113 = scmp.eq.s32.totalorder %s14, 1
    %p114 = por %p112, %p113
    %p115 = scmp.ne.s32.totalorder %s104, %s105
    %p116 = scmp.eq.s32.totalorder %s14, 0
    %p117 = por %p115, %p116
    %p118 = scmp.ne.s32.totalorder %s104, %s105
    %p119 = scmp.eq.s32.totalorder %s15, 1
    %p120 = por %p118, %p119
    %p122 = scmp.ne.s32.totalorder %s105, %s121
    %p123 = scmp.eq.s32.totalorder %s15, 0
    %p124 = por %p122, %p123
    %p125 = scmp.le.s32.totalorder 1, %s9
    %p126 = scmp.lt.s32.totalorder %s9, 3
    %p127 = pnand %p125, %p126
    %p128 = pneg %p127
    // Predicated region
    $region9: #{decoder_forward.6} parent=5 // pred_check
      _
    $region10: #{decoder_forward.6} parent=5 // pred_check_branch
      %130 = sbr.rel (%p127) target = $region12
    $region11: #{decoder_forward.6} parent=5 // pred_region
      %s131 = ssub.s32 %s9, 1
      // Predicated region
      $region13: #{decoder_forward.6} parent=11 // pred_check
        %p132 = pneg %p68
      $region14: #{decoder_forward.6} parent=11 // pred_check_branch
        %134 = sbr.rel (%p132) target = $region16
      $region15: #{decoder_forward.6} parent=11 // pred_region
        _
      $region16: #{decoder_forward.6} parent=11 // pred_fallthru
        _
      // Predicated region
      $region17: #{decoder_forward.6} parent=11 // pred_check
        %p135 = pneg %p89
      $region18: #{decoder_forward.6} parent=11 // pred_check_branch
        %137 = sbr.rel (%p135) target = $region20
      $region19: #{decoder_forward.6} parent=11 // pred_region
        _
      $region20: #{decoder_forward.6} parent=11 // pred_fallthru
        _
    $region12: #{decoder_forward.6} parent=5 // pred_fallthru
      _
    %p138 = scmp.lt.s32.totalorder %s9, 2
    // Predicated region
    $region21: #{decoder_forward.6} parent=5 // pred_check
      %p139 = pneg %p138
    $region22: #{decoder_forward.6} parent=5 // pred_check_branch
      %141 = sbr.rel (%p139) target = $region24
    $region23: #{decoder_forward.6} parent=5 // pred_region
      // Predicated region
      $region25: #{decoder_forward.6} parent=23 // pred_check
        %p142 = pneg %p41
      $region26: #{decoder_forward.6} parent=23 // pred_check_branch
        %144 = sbr.rel (%p142) target = $region28
      $region27: #{decoder_forward.6} parent=23 // pred_region
        %p145 = scmp.lt.s32.totalorder %s16, 1
        %s146 = scalar_select %p145, %s16, 1
        %s147 = smul.addr %s146, 3
        %s148 = smul.addr %s147, 2
        %s149 = scalar_lea.vmem %s0, %s148
      $region28: #{decoder_forward.6} parent=23 // pred_fallthru
        _
    $region24: #{decoder_forward.6} parent=5 // pred_fallthru
      _
    %p150 = scmp.le.s32.totalorder 1, %s9
    %p151 = scmp.lt.s32.totalorder %s9, 3
    %p152 = pnand %p150, %p151
    %p153 = pneg %p152
    // Predicated region
    $region29: #{decoder_forward.6} parent=5 // pred_check
      _
    $region30: #{decoder_forward.6} parent=5 // pred_check_branch
      %155 = sbr.rel (%p152) target = $region32
    $region31: #{decoder_forward.6} parent=5 // pred_region
      %s156 = ssub.s32 %s9, 1
      %p157 = scmp.lt.s32.totalorder %s18, 1
      %s158 = scalar_select %p157, %s18, 1
      %s159 = smul.addr %s158, 3
      %s160 = smul.addr %s159, 2
      %s161 = scalar_lea.vmem %s0, %s160
      %p162 = pneg %p47
      %p163 = pneg %p44
      %p164 = pneg %p68
      %p165 = pneg %p65
      %p166 = pneg %p89
      %p167 = pneg %p86
      %p168 = pneg %p117
      %p169 = pneg %p114
      %s170 = smul.u32 2, %s19
      %p171 = scmp.lt.s32.totalorder %s18, 1
      %s172 = scalar_select %p171, %s18, 1
      %p173 = scmp.lt.s32.totalorder %s170, 1
      %s174 = scalar_select %p173, %s170, 1
      %s175 = smul.addr %s172, 2
      %s176 = sadd.s32 %s174, %s175
      %s177 = scalar_lea.vmem %s3, %s176
      %p178 = scmp.lt.s32.totalorder %s18, 1
      %s179 = scalar_select %p178, %s18, 1
      %s180 = smul.addr %s179, 3
      %s181 = smul.addr %s180, 2
      %s182 = scalar_lea.vmem %s0, %s181
      %s183 = smul.u32 2, %s19
      %p184 = scmp.lt.s32.totalorder %s18, 1
      %s185 = scalar_select %p184, %s18, 1
      %p186 = scmp.lt.s32.totalorder %s183, 1
      %s187 = scalar_select %p186, %s183, 1
      %s188 = smul.addr %s185, 2
      %s189 = sadd.s32 %s187, %s188
      %s190 = scalar_lea.vmem %s3, %s189
      %s191 = smul.u32 2, %s19
      %s193 = smul.addr %s19, 2
      %s194 = scalar_lea.vmem %s182, %s193
      %v195 = vld [vmem:[%s194] sm:$0x3]
      %v196 = vld [vmem:[%s194 + $0x2] sm:$0x3]
      %v197 = vld [vmem:[%s194 + $0x4] sm:$0x3]
      %v201 = vunpack.c.l.s4 1983009808
      %v202 = vunpack.c.0.s8 %v201
      %v203 = vlaneseq
      %v204 = vshrl.u32 %v203, 7
      %v205 = vsub.s32 %v202, %v204
      %v206 = vrot.slane %v195, %v205
      %v208 = vunpack.c.l.s4 1983009808
      %v209 = vunpack.c.0.s8 %v208
      %v210 = vlaneseq
      %v211 = vshrl.u32 %v210, 7
      %v212 = vsub.s32 %v209, %v211
      %v213 = vrot.slane %v196, %v212
      %v215 = vshrl.u32 %v206, 16
      %v217 = vshll.u32 %v206, 16
      %v219 = vrot.slane %v217, 1
      %v220 = vor.u32 %v215, %v219
      %v222 = vshrl.u32 %v213, 16
      %v224 = vshll.u32 %v213, 16
      %v226 = vrot.slane %v224, 1
      %v227 = vor.u32 %v222, %v226
      %v228 = vrot.slane %v206, 1
      %v229 = vrot.slane %v213, 1
      %v232 = vunpack.c.l.s4 1983009808
      %v233 = vunpack.c.0.s8 %v232
      %v234 = vlaneseq
      %v235 = vshrl.u32 %v234, 7
      %v236 = vsub.s32 %v233, %v235
      %v237 = vrot.slane %v197, %v236
      %v239 = vshrl.u32 %v237, 16
      %v241 = vshll.u32 %v237, 16
      %v243 = vrot.slane %v241, 1
      %v244 = vor.u32 %v239, %v243
      %v245 = vrot.slane %v237, 1
      %v246 = vcombine.low %v195, %v220
      %v247 = vcombine.low %v228, %v196
      %v248 = vcombine.low %v227, %v229
      %v249 = vcombine.low %v196, %v227
      %v251 = vunpack.c.l.s4 1966171168
      %v252 = vunpack.c.0.s8 %v251
      %v253 = vlaneseq
      %v254 = vshrl.u32 %v253, 7
      %v255 = vsub.s32 %v252, %v254
      %v256 = vrot.slane %v246, %v255
      %v258 = vunpack.c.l.s4 1966171168
      %v259 = vunpack.c.0.s8 %v258
      %v260 = vlaneseq
      %v261 = vshrl.u32 %v260, 7
      %v262 = vsub.s32 %v259, %v261
      %v263 = vrot.slane %v247, %v262
      %v265 = vunpack.c.l.s4 1966171168
      %v266 = vunpack.c.0.s8 %v265
      %v267 = vlaneseq
      %v268 = vshrl.u32 %v267, 7
      %v269 = vsub.s32 %v266, %v268
      %v270 = vrot.slane %v248, %v269
      %v272 = vunpack.c.l.s4 1966171168
      %v273 = vunpack.c.0.s8 %v272
      %v274 = vlaneseq
      %v275 = vshrl.u32 %v274, 7
      %v276 = vsub.s32 %v273, %v275
      %v277 = vrot.slane %v249, %v276
      %v278 = vcombine.low %v256, %v263
      %v279 = vcombine.low %v270, %v277
      %v281 = vunpack.c.l.s4 1966171168
      %v282 = vunpack.c.0.s8 %v281
      %v283 = vlaneseq
      %v284 = vshrl.u32 %v283, 7
      %v285 = vsub.s32 %v282, %v284
      %v286 = vrot.slane %v278, %v285
      %v288 = vunpack.c.l.s4 1966171168
      %v289 = vunpack.c.0.s8 %v288
      %v290 = vlaneseq
      %v291 = vshrl.u32 %v290, 7
      %v292 = vsub.s32 %v289, %v291
      %v293 = vrot.slane %v279, %v292
      %v294 = vcombine.low %v286, %v293
      %v296 = vunpack.c.l.s4 1966171168
      %v297 = vunpack.c.0.s8 %v296
      %v298 = vlaneseq
      %v299 = vshrl.u32 %v298, 7
      %v300 = vsub.s32 %v297, %v299
      %v301 = vrot.slane %v229, %v300
      %v303 = vunpack.c.l.s4 1966171168
      %v304 = vunpack.c.0.s8 %v303
      %v305 = vlaneseq
      %v306 = vshrl.u32 %v305, 7
      %v307 = vsub.s32 %v304, %v306
      %v308 = vrot.slane %v301, %v307
      %v309 = vcombine.low %v229, %v196
      %v310 = vcombine.low %v197, %v244
      %v312 = vunpack.c.l.s4 1966171168
      %v313 = vunpack.c.0.s8 %v312
      %v314 = vlaneseq
      %v315 = vshrl.u32 %v314, 7
      %v316 = vsub.s32 %v313, %v315
      %v317 = vrot.slane %v309, %v316
      %v319 = vunpack.c.l.s4 1966171168
      %v320 = vunpack.c.0.s8 %v319
      %v321 = vlaneseq
      %v322 = vshrl.u32 %v321, 7
      %v323 = vsub.s32 %v320, %v322
      %v324 = vrot.slane %v310, %v323
      %v325 = vcombine.low %v277, %v317
      %v326 = vcombine.low %v270, %v324
      %v328 = vunpack.c.l.s4 1966171168
      %v329 = vunpack.c.0.s8 %v328
      %v330 = vlaneseq
      %v331 = vshrl.u32 %v330, 7
      %v332 = vsub.s32 %v329, %v331
      %v333 = vrot.slane %v325, %v332
      %v335 = vunpack.c.l.s4 1966171168
      %v336 = vunpack.c.0.s8 %v335
      %v337 = vlaneseq
      %v338 = vshrl.u32 %v337, 7
      %v339 = vsub.s32 %v336, %v338
      %v340 = vrot.slane %v326, %v339
      %v341 = vcombine.low %v333, %v340
      %v343 = vunpack.c.l.s4 1966171168
      %v344 = vunpack.c.0.s8 %v343
      %v345 = vlaneseq
      %v346 = vshrl.u32 %v345, 7
      %v347 = vsub.s32 %v344, %v346
      %v348 = vrot.slane %v245, %v347
      %v350 = vunpack.c.l.s4 1966171168
      %v351 = vunpack.c.0.s8 %v350
      %v352 = vlaneseq
      %v353 = vshrl.u32 %v352, 7
      %v354 = vsub.s32 %v351, %v353
      %v355 = vrot.slane %v348, %v354
      %v356 = vld [vmem:[%s1] sm:$0xf]
      %v357 = vld [vmem:[%s1 + $0x4] sm:$0xf]
      %v358 = vld [vmem:[%s1 + $0x8] sm:$0xf]
      %v359 = vld [vmem:[%s1 + $0xc] sm:$0xf]
      %v360 = vld [vmem:[%s1 + $0x10] sm:$0xf]
      %v361 = vld [vmem:[%s1 + $0x14] sm:$0xf]
      %v362 = vld [vmem:[%s1 + $0x18] sm:$0xf]
      %v363 = vld [vmem:[%s1 + $0x1c] sm:$0xf]
      %v364 = vld [vmem:[%s1 + $0x20] sm:$0xf]
      %v365 = vld [vmem:[%s1 + $0x24] sm:$0xf]
      %v366 = vld [vmem:[%s1 + $0x28] sm:$0xf]
      %v367 = vld [vmem:[%s1 + $0x2c] sm:$0xf]
      %v368 = vld [vmem:[%s1 + $0x30] sm:$0xf]
      %v369 = vld [vmem:[%s1 + $0x34] sm:$0xf]
      %v370 = vld [vmem:[%s1 + $0x38] sm:$0xf]
      %v371 = vld [vmem:[%s1 + $0x3c] sm:$0xf]
      %v372 = vld [vmem:[%s1 + $0x40] sm:$0xf]
      %v373 = vld [vmem:[%s1 + $0x44] sm:$0xf]
      %v374 = vld [vmem:[%s1 + $0x48] sm:$0xf]
      %v375 = vld [vmem:[%s1 + $0x4c] sm:$0xf]
      %v376 = vld [vmem:[%s1 + $0x50] sm:$0xf]
      %v377 = vld [vmem:[%s1 + $0x54] sm:$0xf]
      %v378 = vld [vmem:[%s1 + $0x58] sm:$0xf]
      %v379 = vld [vmem:[%s1 + $0x5c] sm:$0xf]
      %v380 = vld [vmem:[%s1 + $0x60] sm:$0xf]
      %v381 = vld [vmem:[%s1 + $0x64] sm:$0xf]
      %v382 = vld [vmem:[%s1 + $0x68] sm:$0xf]
      %v383 = vld [vmem:[%s1 + $0x6c] sm:$0xf]
      %v384 = vld [vmem:[%s1 + $0x70] sm:$0xf]
      %v385 = vld [vmem:[%s1 + $0x74] sm:$0xf]
      %v386 = vld [vmem:[%s1 + $0x78] sm:$0xf]
      %v387 = vld [vmem:[%s1 + $0x7c] sm:$0xf]
      %v388 = vld [vmem:[%s1 + $0x80] sm:$0xf]
      %v389 = vld [vmem:[%s1 + $0x84] sm:$0xf]
      %v390 = vld [vmem:[%s1 + $0x88] sm:$0xf]
      %v391 = vld [vmem:[%s1 + $0x8c] sm:$0xf]
      %v392 = vld [vmem:[%s1 + $0x90] sm:$0xf]
      %v393 = vld [vmem:[%s1 + $0x94] sm:$0xf]
      %v394 = vld [vmem:[%s1 + $0x98] sm:$0xf]
      %v395 = vld [vmem:[%s1 + $0x9c] sm:$0xf]
      %v396 = vld [vmem:[%s1 + $0xa0] sm:$0xf]
      %v397 = vld [vmem:[%s1 + $0xa4] sm:$0xf]
      %v398 = vld [vmem:[%s1 + $0xa8] sm:$0xf]
      %v399 = vld [vmem:[%s1 + $0xac] sm:$0xf]
      %v400 = vld [vmem:[%s1 + $0xb0] sm:$0xf]
      %v401 = vld [vmem:[%s1 + $0xb4] sm:$0xf]
      %v402 = vld [vmem:[%s1 + $0xb8] sm:$0xf]
      %v403 = vld [vmem:[%s1 + $0xbc] sm:$0xf]
      %v404 = vld [vmem:[%s1 + $0xc0] sm:$0xf]
      %v405 = vld [vmem:[%s1 + $0xc4] sm:$0xf]
      %v406 = vld [vmem:[%s1 + $0xc8] sm:$0xf]
      %v407 = vld [vmem:[%s1 + $0xcc] sm:$0xf]
      %v408 = vld [vmem:[%s1 + $0xd0] sm:$0xf]
      %v409 = vld [vmem:[%s1 + $0xd4] sm:$0xf]
      %v410 = vld [vmem:[%s1 + $0xd8] sm:$0xf]
      %v411 = vld [vmem:[%s1 + $0xdc] sm:$0xf]
      %v412 = vld [vmem:[%s1 + $0xe0] sm:$0xf]
      %v413 = vld [vmem:[%s1 + $0xe4] sm:$0xf]
      %v414 = vld [vmem:[%s1 + $0xe8] sm:$0xf]
      %v415 = vld [vmem:[%s1 + $0xec] sm:$0xf]
      %v416 = vld [vmem:[%s1 + $0xf0] sm:$0xf]
      %v417 = vld [vmem:[%s1 + $0xf4] sm:$0xf]
      %v418 = vld [vmem:[%s1 + $0xf8] sm:$0xf]
      %v419 = vld [vmem:[%s1 + $0xfc] sm:$0xf]
      %v420 = vld [vmem:[%s1 + $0x100] sm:$0xf]
      %v421 = vld [vmem:[%s1 + $0x104] sm:$0xf]
      %v422 = vld [vmem:[%s1 + $0x108] sm:$0xf]
      %v423 = vld [vmem:[%s1 + $0x10c] sm:$0xf]
      %v424 = vld [vmem:[%s1 + $0x110] sm:$0xf]
      %v425 = vld [vmem:[%s1 + $0x114] sm:$0xf]
      %v426 = vld [vmem:[%s1 + $0x118] sm:$0xf]
      %v427 = vld [vmem:[%s1 + $0x11c] sm:$0xf]
      %v428 = vld [vmem:[%s1 + $0x120] sm:$0xf]
      %v429 = vld [vmem:[%s1 + $0x124] sm:$0xf]
      %v430 = vld [vmem:[%s1 + $0x128] sm:$0xf]
      %v431 = vld [vmem:[%s1 + $0x12c] sm:$0xf]
      %v432 = vld [vmem:[%s1 + $0x130] sm:$0xf]
      %v433 = vld [vmem:[%s1 + $0x134] sm:$0xf]
      %v434 = vld [vmem:[%s1 + $0x138] sm:$0xf]
      %v435 = vld [vmem:[%s1 + $0x13c] sm:$0xf]
      %v436 = vld [vmem:[%s1 + $0x140] sm:$0xf]
      %v437 = vld [vmem:[%s1 + $0x144] sm:$0xf]
      %v438 = vld [vmem:[%s1 + $0x148] sm:$0xf]
      %v439 = vld [vmem:[%s1 + $0x14c] sm:$0xf]
      %v440 = vld [vmem:[%s1 + $0x150] sm:$0xf]
      %v441 = vld [vmem:[%s1 + $0x154] sm:$0xf]
      %v442 = vld [vmem:[%s1 + $0x158] sm:$0xf]
      %v443 = vld [vmem:[%s1 + $0x15c] sm:$0xf]
      %v444 = vld [vmem:[%s1 + $0x160] sm:$0xf]
      %v445 = vld [vmem:[%s1 + $0x164] sm:$0xf]
      %v446 = vld [vmem:[%s1 + $0x168] sm:$0xf]
      %v447 = vld [vmem:[%s1 + $0x16c] sm:$0xf]
      %v448 = vld [vmem:[%s1 + $0x170] sm:$0xf]
      %v449 = vld [vmem:[%s1 + $0x174] sm:$0xf]
      %v450 = vld [vmem:[%s1 + $0x178] sm:$0xf]
      %v451 = vld [vmem:[%s1 + $0x17c] sm:$0xf]
      %v452 = vld [vmem:[%s1 + $0x180] sm:$0xf]
      %v453 = vld [vmem:[%s1 + $0x184] sm:$0xf]
      %v454 = vld [vmem:[%s1 + $0x188] sm:$0xf]
      %v455 = vld [vmem:[%s1 + $0x18c] sm:$0xf]
      %v456 = vld [vmem:[%s1 + $0x190] sm:$0xf]
      %v457 = vld [vmem:[%s1 + $0x194] sm:$0xf]
      %v458 = vld [vmem:[%s1 + $0x198] sm:$0xf]
      %v459 = vld [vmem:[%s1 + $0x19c] sm:$0xf]
      %v460 = vld [vmem:[%s1 + $0x1a0] sm:$0xf]
      %v461 = vld [vmem:[%s1 + $0x1a4] sm:$0xf]
      %v462 = vld [vmem:[%s1 + $0x1a8] sm:$0xf]
      %v463 = vld [vmem:[%s1 + $0x1ac] sm:$0xf]
      %v464 = vld [vmem:[%s1 + $0x1b0] sm:$0xf]
      %v465 = vld [vmem:[%s1 + $0x1b4] sm:$0xf]
      %v466 = vld [vmem:[%s1 + $0x1b8] sm:$0xf]
      %v467 = vld [vmem:[%s1 + $0x1bc] sm:$0xf]
      %v468 = vld [vmem:[%s1 + $0x1c0] sm:$0xf]
      %v469 = vld [vmem:[%s1 + $0x1c4] sm:$0xf]
      %v470 = vld [vmem:[%s1 + $0x1c8] sm:$0xf]
      %v471 = vld [vmem:[%s1 + $0x1cc] sm:$0xf]
      %v472 = vld [vmem:[%s1 + $0x1d0] sm:$0xf]
      %v473 = vld [vmem:[%s1 + $0x1d4] sm:$0xf]
      %v474 = vld [vmem:[%s1 + $0x1d8] sm:$0xf]
      %v475 = vld [vmem:[%s1 + $0x1dc] sm:$0xf]
      %v476 = vld [vmem:[%s1 + $0x1e0] sm:$0xf]
      %v477 = vld [vmem:[%s1 + $0x1e4] sm:$0xf]
      %v478 = vld [vmem:[%s1 + $0x1e8] sm:$0xf]
      %v479 = vld [vmem:[%s1 + $0x1ec] sm:$0xf]
      %v480 = vld [vmem:[%s1 + $0x1f0] sm:$0xf]
      %v481 = vld [vmem:[%s1 + $0x1f4] sm:$0xf]
      %v482 = vld [vmem:[%s1 + $0x1f8] sm:$0xf]
      %v483 = vld [vmem:[%s1 + $0x1fc] sm:$0xf]
      %v484 = vld [vmem:[%s1 + $0x200] sm:$0xf]
      %v485 = vld [vmem:[%s1 + $0x204] sm:$0xf]
      %v486 = vld [vmem:[%s1 + $0x208] sm:$0xf]
      %v487 = vld [vmem:[%s1 + $0x20c] sm:$0xf]
      %v488 = vld [vmem:[%s1 + $0x210] sm:$0xf]
      %v489 = vld [vmem:[%s1 + $0x214] sm:$0xf]
      %v490 = vld [vmem:[%s1 + $0x218] sm:$0xf]
      %v491 = vld [vmem:[%s1 + $0x21c] sm:$0xf]
      %v492 = vld [vmem:[%s1 + $0x220] sm:$0xf]
      %v493 = vld [vmem:[%s1 + $0x224] sm:$0xf]
      %v494 = vld [vmem:[%s1 + $0x228] sm:$0xf]
      %v495 = vld [vmem:[%s1 + $0x22c] sm:$0xf]
      %v496 = vld [vmem:[%s1 + $0x230] sm:$0xf]
      %v497 = vld [vmem:[%s1 + $0x234] sm:$0xf]
      %v498 = vld [vmem:[%s1 + $0x238] sm:$0xf]
      %v499 = vld [vmem:[%s1 + $0x23c] sm:$0xf]
      %v500 = vld [vmem:[%s2] sm:$0x1]
      %v502 = vlaneseq
      %v503 = vshrl.u32 %v502, 7
      %v504 = vsub.s32 0, %v503
      %v505 = vrot.slane %v500, %v504
      %v507 = vcombine.low %v294, %v341
      %v508 = vcombine.high %v294, %v341
      %v510 = vunpack.c.l.s4 1966171168
      %v511 = vunpack.c.0.s8 %v510
      %v512 = vlaneseq
      %v513 = vshrl.u32 %v512, 7
      %v514 = vsub.s32 %v511, %v513
      %v515 = vrot.slane %v507, %v514
      %v517 = vunpack.c.l.s4 1966171168
      %v518 = vunpack.c.0.s8 %v517
      %v519 = vlaneseq
      %v520 = vshrl.u32 %v519, 7
      %v521 = vsub.s32 %v518, %v520
      %v522 = vrot.slane %v508, %v521
      %v523 = vcombine.high %v515, %v515
      %v524 = vcombine.high %v522, %v522
      %v526 = vunpack.c.l.s4 1966171168
      %v527 = vunpack.c.0.s8 %v526
      %v528 = vlaneseq
      %v529 = vshrl.u32 %v528, 7
      %v530 = vsub.s32 %v527, %v529
      %v531 = vrot.slane %v515, %v530
      %v533 = vunpack.c.l.s4 1966171168
      %v534 = vunpack.c.0.s8 %v533
      %v535 = vlaneseq
      %v536 = vshrl.u32 %v535, 7
      %v537 = vsub.s32 %v534, %v536
      %v538 = vrot.slane %v522, %v537
      %v540 = vunpack.c.l.s4 1966171168
      %v541 = vunpack.c.0.s8 %v540
      %v542 = vlaneseq
      %v543 = vshrl.u32 %v542, 7
      %v544 = vsub.s32 %v541, %v543
      %v545 = vrot.slane %v523, %v544
      %v547 = vunpack.c.l.s4 1966171168
      %v548 = vunpack.c.0.s8 %v547
      %v549 = vlaneseq
      %v550 = vshrl.u32 %v549, 7
      %v551 = vsub.s32 %v548, %v550
      %v552 = vrot.slane %v524, %v551
      %v553 = vcombine.high %v531, %v531
      %v554 = vcombine.high %v538, %v538
      %v555 = vcombine.high %v545, %v545
      %v556 = vcombine.high %v552, %v552
      %v557 = vcombine.low %v308, %v355
      %v559 = vunpack.c.l.s4 1966171168
      %v560 = vunpack.c.0.s8 %v559
      %v561 = vlaneseq
      %v562 = vshrl.u32 %v561, 7
      %v563 = vsub.s32 %v560, %v562
      %v564 = vrot.slane %v557, %v563
      %v566 = vunpack.c.l.s4 1966171168
      %v567 = vunpack.c.0.s8 %v566
      %v568 = vlaneseq
      %v569 = vshrl.u32 %v568, 7
      %v570 = vsub.s32 %v567, %v569
      %v571 = vrot.slane %v564, %v570
      %v725 = vunpack.c.l.b16 %v356
      %v726 = vunpack.c.l.b16 %v357
      %v727 = vunpack.c.l.b16 %v358
      %v728 = vunpack.c.l.b16 %v359
      %v729 = vunpack.c.l.b16 %v360
      %v730 = vunpack.c.l.b16 %v361
      %v731 = vunpack.c.l.b16 %v362
      %v732 = vunpack.c.l.b16 %v363
      %v733 = vunpack.c.l.b16 %v364
      %v734 = vunpack.c.l.b16 %v365
      %v735 = vunpack.c.l.b16 %v366
      %v736 = vunpack.c.l.b16 %v367
      %v737 = vunpack.c.l.b16 %v368
      %v738 = vunpack.c.l.b16 %v369
      %v739 = vunpack.c.l.b16 %v370
      %v740 = vunpack.c.l.b16 %v371
      %v741 = vunpack.c.l.b16 %v372
      %v742 = vunpack.c.l.b16 %v373
      %v743 = vunpack.c.l.b16 %v374
      %v744 = vunpack.c.l.b16 %v375
      %v745 = vunpack.c.l.b16 %v376
      %v746 = vunpack.c.l.b16 %v377
      %v747 = vunpack.c.l.b16 %v378
      %v748 = vunpack.c.l.b16 %v379
      %v749 = vunpack.c.l.b16 %v380
      %v750 = vunpack.c.l.b16 %v381
      %v751 = vunpack.c.l.b16 %v382
      %v752 = vunpack.c.l.b16 %v383
      %v753 = vunpack.c.l.b16 %v384
      %v754 = vunpack.c.l.b16 %v385
      %v755 = vunpack.c.l.b16 %v386
      %v756 = vunpack.c.l.b16 %v387
      %v757 = vunpack.c.l.b16 %v388
      %v758 = vunpack.c.l.b16 %v389
      %v759 = vunpack.c.l.b16 %v390
      %v760 = vunpack.c.l.b16 %v391
      %v761 = vunpack.c.l.b16 %v392
      %v762 = vunpack.c.l.b16 %v393
      %v763 = vunpack.c.l.b16 %v394
      %v764 = vunpack.c.l.b16 %v395
      %v765 = vunpack.c.l.b16 %v396
      %v766 = vunpack.c.l.b16 %v397
      %v767 = vunpack.c.l.b16 %v398
      %v768 = vunpack.c.l.b16 %v399
      %v769 = vunpack.c.l.b16 %v400
      %v770 = vunpack.c.l.b16 %v401
      %v771 = vunpack.c.l.b16 %v402
      %v772 = vunpack.c.l.b16 %v403
      %v773 = vunpack.c.l.b16 %v404
      %v774 = vunpack.c.l.b16 %v405
      %v775 = vunpack.c.l.b16 %v406
      %v776 = vunpack.c.l.b16 %v407
      %v777 = vunpack.c.l.b16 %v408
      %v778 = vunpack.c.l.b16 %v409
      %v779 = vunpack.c.l.b16 %v410
      %v780 = vunpack.c.l.b16 %v411
      %v781 = vunpack.c.l.b16 %v412
      %v782 = vunpack.c.l.b16 %v413
      %v783 = vunpack.c.l.b16 %v414
      %v784 = vunpack.c.l.b16 %v415
      %v785 = vunpack.c.l.b16 %v416
      %v786 = vunpack.c.l.b16 %v417
      %v787 = vunpack.c.l.b16 %v418
      %v788 = vunpack.c.l.b16 %v419
      %v789 = vunpack.c.l.b16 %v420
      %v790 = vunpack.c.l.b16 %v421
      %v791 = vunpack.c.l.b16 %v422
      %v792 = vunpack.c.l.b16 %v423
      %v793 = vunpack.c.l.b16 %v424
      %v794 = vunpack.c.l.b16 %v425
      %v795 = vunpack.c.l.b16 %v426
      %v796 = vunpack.c.l.b16 %v427
      %v797 = vunpack.c.l.b16 %v428
      %v798 = vunpack.c.l.b16 %v429
      %v799 = vunpack.c.l.b16 %v430
      %v800 = vunpack.c.l.b16 %v431
      %v801 = vunpack.c.l.b16 %v432
      %v802 = vunpack.c.l.b16 %v433
      %v803 = vunpack.c.l.b16 %v434
      %v804 = vunpack.c.l.b16 %v435
      %v805 = vunpack.c.l.b16 %v436
      %v806 = vunpack.c.l.b16 %v437
      %v807 = vunpack.c.l.b16 %v438
      %v808 = vunpack.c.l.b16 %v439
      %v809 = vunpack.c.l.b16 %v440
      %v810 = vunpack.c.l.b16 %v441
      %v811 = vunpack.c.l.b16 %v442
      %v812 = vunpack.c.l.b16 %v443
      %v813 = vunpack.c.l.b16 %v444
      %v814 = vunpack.c.l.b16 %v445
      %v815 = vunpack.c.l.b16 %v446
      %v816 = vunpack.c.l.b16 %v447
      %v817 = vunpack.c.l.b16 %v448
      %v818 = vunpack.c.l.b16 %v449
      %v819 = vunpack.c.l.b16 %v450
      %v820 = vunpack.c.l.b16 %v451
      %v821 = vunpack.c.l.b16 %v452
      %v822 = vunpack.c.l.b16 %v453
      %v823 = vunpack.c.l.b16 %v454
      %v824 = vunpack.c.l.b16 %v455
      %v825 = vunpack.c.l.b16 %v456
      %v826 = vunpack.c.l.b16 %v457
      %v827 = vunpack.c.l.b16 %v458
      %v828 = vunpack.c.l.b16 %v459
      %v829 = vunpack.c.l.b16 %v460
      %v830 = vunpack.c.l.b16 %v461
      %v831 = vunpack.c.l.b16 %v462
      %v832 = vunpack.c.l.b16 %v463
      %v833 = vunpack.c.l.b16 %v464
      %v834 = vunpack.c.l.b16 %v465
      %v835 = vunpack.c.l.b16 %v466
      %v836 = vunpack.c.l.b16 %v467
      %v837 = vunpack.c.l.b16 %v468
      %v838 = vunpack.c.l.b16 %v469
      %v839 = vunpack.c.l.b16 %v470
      %v840 = vunpack.c.l.b16 %v471
      %v841 = vunpack.c.l.b16 %v472
      %v842 = vunpack.c.l.b16 %v473
      %v843 = vunpack.c.l.b16 %v474
      %v844 = vunpack.c.l.b16 %v475
      %v845 = vunpack.c.l.b16 %v476
      %v846 = vunpack.c.l.b16 %v477
      %v847 = vunpack.c.l.b16 %v478
      %v848 = vunpack.c.l.b16 %v479
      %v849 = vunpack.c.l.b16 %v480
      %v850 = vunpack.c.l.b16 %v481
      %v851 = vunpack.c.l.b16 %v482
      %v852 = vunpack.c.l.b16 %v483
      %v853 = vunpack.c.l.b16 %v484
      %v854 = vunpack.c.l.b16 %v485
      %v855 = vunpack.c.l.b16 %v486
      %v856 = vunpack.c.l.b16 %v487
      %v857 = vunpack.c.l.b16 %v488
      %v858 = vunpack.c.l.b16 %v489
      %v859 = vunpack.c.l.b16 %v490
      %v860 = vunpack.c.l.b16 %v491
      %v861 = vunpack.c.l.b16 %v492
      %v862 = vunpack.c.l.b16 %v493
      %v863 = vunpack.c.l.b16 %v494
      %v864 = vunpack.c.l.b16 %v495
      %v865 = vunpack.c.l.b16 %v496
      %v866 = vunpack.c.l.b16 %v497
      %v867 = vunpack.c.l.b16 %v498
      %v868 = vunpack.c.l.b16 %v499
      %v869 = vpack.c.b16 %v726, %v725
      %v870 = vpack.c.b16 %v728, %v727
      %v871 = vpack.c.b16 %v730, %v729
      %v872 = vpack.c.b16 %v732, %v731
      %v873 = vpack.c.b16 %v734, %v733
      %v874 = vpack.c.b16 %v736, %v735
      %v875 = vpack.c.b16 %v738, %v737
      %v876 = vpack.c.b16 %v740, %v739
      %v877 = vpack.c.b16 %v742, %v741
      %v878 = vpack.c.b16 %v744, %v743
      %v879 = vpack.c.b16 %v746, %v745
      %v880 = vpack.c.b16 %v748, %v747
      %v881 = vpack.c.b16 %v750, %v749
      %v882 = vpack.c.b16 %v752, %v751
      %v883 = vpack.c.b16 %v754, %v753
      %v884 = vpack.c.b16 %v756, %v755
      %v885 = vpack.c.b16 %v758, %v757
      %v886 = vpack.c.b16 %v760, %v759
      %v887 = vpack.c.b16 %v762, %v761
      %v888 = vpack.c.b16 %v764, %v763
      %v889 = vpack.c.b16 %v766, %v765
      %v890 = vpack.c.b16 %v768, %v767
      %v891 = vpack.c.b16 %v770, %v769
      %v892 = vpack.c.b16 %v772, %v771
      %v893 = vpack.c.b16 %v774, %v773
      %v894 = vpack.c.b16 %v776, %v775
      %v895 = vpack.c.b16 %v778, %v777
      %v896 = vpack.c.b16 %v780, %v779
      %v897 = vpack.c.b16 %v782, %v781
      %v898 = vpack.c.b16 %v784, %v783
      %v899 = vpack.c.b16 %v786, %v785
      %v900 = vpack.c.b16 %v788, %v787
      %v901 = vpack.c.b16 %v790, %v789
      %v902 = vpack.c.b16 %v792, %v791
      %v903 = vpack.c.b16 %v794, %v793
      %v904 = vpack.c.b16 %v796, %v795
      %v905 = vpack.c.b16 %v798, %v797
      %v906 = vpack.c.b16 %v800, %v799
      %v907 = vpack.c.b16 %v802, %v801
      %v908 = vpack.c.b16 %v804, %v803
      %v909 = vpack.c.b16 %v806, %v805
      %v910 = vpack.c.b16 %v808, %v807
      %v911 = vpack.c.b16 %v810, %v809
      %v912 = vpack.c.b16 %v812, %v811
      %v913 = vpack.c.b16 %v814, %v813
      %v914 = vpack.c.b16 %v816, %v815
      %v915 = vpack.c.b16 %v818, %v817
      %v916 = vpack.c.b16 %v820, %v819
      %v917 = vpack.c.b16 %v822, %v821
      %v918 = vpack.c.b16 %v824, %v823
      %v919 = vpack.c.b16 %v826, %v825
      %v920 = vpack.c.b16 %v828, %v827
      %v921 = vpack.c.b16 %v830, %v829
      %v922 = vpack.c.b16 %v832, %v831
      %v923 = vpack.c.b16 %v834, %v833
      %v924 = vpack.c.b16 %v836, %v835
      %v925 = vpack.c.b16 %v838, %v837
      %v926 = vpack.c.b16 %v840, %v839
      %v927 = vpack.c.b16 %v842, %v841
      %v928 = vpack.c.b16 %v844, %v843
      %v929 = vpack.c.b16 %v846, %v845
      %v930 = vpack.c.b16 %v848, %v847
      %v931 = vpack.c.b16 %v850, %v849
      %v932 = vpack.c.b16 %v852, %v851
      %v933 = vpack.c.b16 %v854, %v853
      %v934 = vpack.c.b16 %v856, %v855
      %v935 = vpack.c.b16 %v858, %v857
      %v936 = vpack.c.b16 %v860, %v859
      %v937 = vpack.c.b16 %v862, %v861
      %v938 = vpack.c.b16 %v864, %v863
      %v939 = vpack.c.b16 %v866, %v865
      %v940 = vpack.c.b16 %v868, %v867
      %1013 = vmatprep.subr.bf16.mxu0 0
      %1014 = vmatpush1.bf16.msra.mxu0 %v869
      %1015 = vmatprep.subr.bf16.mxu0 0
      %1016 = vmatpush1.bf16.msra.mxu0 %v870
      %1017 = vmatprep.subr.bf16.mxu0 0
      %1018 = vmatpush1.bf16.msra.mxu0 %v871
      %1019 = vmatprep.subr.bf16.mxu0 0
      %1020 = vmatpush1.bf16.msra.mxu0 %v872
      %1021 = vmatprep.subr.bf16.mxu0 0
      %1022 = vmatpush1.bf16.msra.mxu0 %v873
      %1023 = vmatprep.subr.bf16.mxu0 0
      %1024 = vmatpush1.bf16.msra.mxu0 %v874
      %1025 = vmatprep.subr.bf16.mxu0 0
      %1026 = vmatpush1.bf16.msra.mxu0 %v875
      %1027 = vmatprep.subr.bf16.mxu0 0
      %1028 = vmatpush1.bf16.msra.mxu0 %v876
      %1029 = vmatprep.subr.bf16.mxu0 0
      %1030 = vmatpush1.bf16.msra.mxu0 %v877
      %1031 = vmatprep.subr.bf16.mxu0 0
      %1032 = vmatpush1.bf16.msra.mxu0 %v878
      %1033 = vmatprep.subr.bf16.mxu0 0
      %1034 = vmatpush1.bf16.msra.mxu0 %v879
      %1035 = vmatprep.subr.bf16.mxu0 0
      %1036 = vmatpush1.bf16.msra.mxu0 %v880
      %1037 = vmatprep.subr.bf16.mxu0 0
      %1038 = vmatpush1.bf16.msra.mxu0 %v881
      %1039 = vmatprep.subr.bf16.mxu0 0
      %1040 = vmatpush1.bf16.msra.mxu0 %v882
      %1041 = vmatprep.subr.bf16.mxu0 0
      %1042 = vmatpush1.bf16.msra.mxu0 %v883
      %1043 = vmatprep.subr.bf16.mxu0 0
      %1044 = vmatpush1.bf16.msra.mxu0 %v884
      %1045 = vmatprep.mubr.bf16.mxu0 %v545
      %1046 = vmatmul.mubr.bf16.gmra.mrb[0].mxu0 %v531
      %v1047 = vpop.f32.mrb[0].mxu0
      %v1048 = vadd.f32 %v505, %v1047
      %v1049 = vpop.f32.mrb[0].mxu0
      %v1050 = vpop.f32.mrb[0].mxu0
      %v1051 = vpop.f32.mrb[0].mxu0
      %1052 = vdwg.mxu0
      %1053 = vmatprep.subr.bf16.mxu0 0
      %1054 = vmatpush1.bf16.msra.mxu0 %v885
      %1055 = vmatprep.subr.bf16.mxu0 0
      %1056 = vmatpush1.bf16.msra.mxu0 %v886
      %1057 = vmatprep.subr.bf16.mxu0 0
      %1058 = vmatpush1.bf16.msra.mxu0 %v887
      %1059 = vmatprep.subr.bf16.mxu0 0
      %1060 = vmatpush1.bf16.msra.mxu0 %v888
      %1061 = vmatprep.subr.bf16.mxu0 0
      %1062 = vmatpush1.bf16.msra.mxu0 %v889
      %1063 = vmatprep.subr.bf16.mxu0 0
      %1064 = vmatpush1.bf16.msra.mxu0 %v890
      %1065 = vmatprep.subr.bf16.mxu0 0
      %1066 = vmatpush1.bf16.msra.mxu0 %v891
      %1067 = vmatprep.subr.bf16.mxu0 0
      %1068 = vmatpush1.bf16.msra.mxu0 %v892
      %1069 = vmatprep.subr.bf16.mxu0 0
      %1070 = vmatpush1.bf16.msra.mxu0 %v893
      %1071 = vmatprep.subr.bf16.mxu0 0
      %1072 = vmatpush1.bf16.msra.mxu0 %v894
      %1073 = vmatprep.subr.bf16.mxu0 0
      %1074 = vmatpush1.bf16.msra.mxu0 %v895
      %1075 = vmatprep.subr.bf16.mxu0 0
      %1076 = vmatpush1.bf16.msra.mxu0 %v896
      %1077 = vmatprep.subr.bf16.mxu0 0
      %1078 = vmatpush1.bf16.msra.mxu0 %v897
      %1079 = vmatprep.subr.bf16.mxu0 0
      %1080 = vmatpush1.bf16.msra.mxu0 %v898
      %1081 = vmatprep.subr.bf16.mxu0 0
      %1082 = vmatpush1.bf16.msra.mxu0 %v899
      %1083 = vmatprep.subr.bf16.mxu0 0
      %1084 = vmatpush1.bf16.msra.mxu0 %v900
      %1085 = vmatprep.mubr.bf16.mxu0 %v555
      %1086 = vmatmul.mubr.bf16.gmra.mrb[0].mxu0 %v553
      %v1087 = vpop.f32.mrb[0].mxu0
      %v1088 = vadd.f32 %v1048, %v1087
      %v1089 = vpop.f32.mrb[0].mxu0
      %v1090 = vpop.f32.mrb[0].mxu0
      %v1091 = vpop.f32.mrb[0].mxu0
      %1092 = vdwg.mxu0
      %1093 = vmatprep.subr.bf16.mxu0 0
      %1094 = vmatpush1.bf16.msra.mxu0 %v901
      %1095 = vmatprep.subr.bf16.mxu0 0
      %1096 = vmatpush1.bf16.msra.mxu0 %v902
      %1097 = vmatprep.subr.bf16.mxu0 0
      %1098 = vmatpush1.bf16.msra.mxu0 %v903
      %1099 = vmatprep.subr.bf16.mxu0 0
      %1100 = vmatpush1.bf16.msra.mxu0 %v904
      %1101 = vmatprep.subr.bf16.mxu0 0
      %1102 = vmatpush1.bf16.msra.mxu0 %v905
      %1103 = vmatprep.subr.bf16.mxu0 0
      %1104 = vmatpush1.bf16.msra.mxu0 %v906
      %1105 = vmatprep.subr.bf16.mxu0 0
      %1106 = vmatpush1.bf16.msra.mxu0 %v907
      %1107 = vmatprep.subr.bf16.mxu0 0
      %1108 = vmatpush1.bf16.msra.mxu0 %v908
      %1109 = vmatprep.subr.bf16.mxu0 0
      %1110 = vmatpush1.bf16.msra.mxu0 %v909
      %1111 = vmatprep.subr.bf16.mxu0 0
      %1112 = vmatpush1.bf16.msra.mxu0 %v910
      %1113 = vmatprep.subr.bf16.mxu0 0
      %1114 = vmatpush1.bf16.msra.mxu0 %v911
      %1115 = vmatprep.subr.bf16.mxu0 0
      %1116 = vmatpush1.bf16.msra.mxu0 %v912
      %1117 = vmatprep.subr.bf16.mxu0 0
      %1118 = vmatpush1.bf16.msra.mxu0 %v913
      %1119 = vmatprep.subr.bf16.mxu0 0
      %1120 = vmatpush1.bf16.msra.mxu0 %v914
      %1121 = vmatprep.subr.bf16.mxu0 0
      %1122 = vmatpush1.bf16.msra.mxu0 %v915
      %1123 = vmatprep.subr.bf16.mxu0 0
      %1124 = vmatpush1.bf16.msra.mxu0 %v916
      %1125 = vmatprep.mubr.bf16.mxu0 %v552
      %1126 = vmatmul.mubr.bf16.gmra.mrb[0].mxu0 %v538
      %v1127 = vpop.f32.mrb[0].mxu0
      %v1128 = vadd.f32 %v1088, %v1127
      %v1129 = vpop.f32.mrb[0].mxu0
      %v1130 = vpop.f32.mrb[0].mxu0
      %v1131 = vpop.f32.mrb[0].mxu0
      %1132 = vdwg.mxu0
      %1133 = vmatprep.subr.bf16.mxu0 0
      %1134 = vmatpush1.bf16.msra.mxu0 %v917
      %1135 = vmatprep.subr.bf16.mxu0 0
      %1136 = vmatpush1.bf16.msra.mxu0 %v918
      %1137 = vmatprep.subr.bf16.mxu0 0
      %1138 = vmatpush1.bf16.msra.mxu0 %v919
      %1139 = vmatprep.subr.bf16.mxu0 0
      %1140 = vmatpush1.bf16.msra.mxu0 %v920
      %1141 = vmatprep.subr.bf16.mxu0 0
      %1142 = vmatpush1.bf16.msra.mxu0 %v921
      %1143 = vmatprep.subr.bf16.mxu0 0
      %1144 = vmatpush1.bf16.msra.mxu0 %v922
      %1145 = vmatprep.subr.bf16.mxu0 0
      %1146 = vmatpush1.bf16.msra.mxu0 %v923
      %1147 = vmatprep.subr.bf16.mxu0 0
      %1148 = vmatpush1.bf16.msra.mxu0 %v924
      %1149 = vmatprep.subr.bf16.mxu0 0
      %1150 = vmatpush1.bf16.msra.mxu0 %v925
      %1151 = vmatprep.subr.bf16.mxu0 0
      %1152 = vmatpush1.bf16.msra.mxu0 %v926
      %1153 = vmatprep.subr.bf16.mxu0 0
      %1154 = vmatpush1.bf16.msra.mxu0 %v927
      %1155 = vmatprep.subr.bf16.mxu0 0
      %1156 = vmatpush1.bf16.msra.mxu0 %v928
      %1157 = vmatprep.subr.bf16.mxu0 0
      %1158 = vmatpush1.bf16.msra.mxu0 %v929
      %1159 = vmatprep.subr.bf16.mxu0 0
      %1160 = vmatpush1.bf16.msra.mxu0 %v930
      %1161 = vmatprep.subr.bf16.mxu0 0
      %1162 = vmatpush1.bf16.msra.mxu0 %v931
      %1163 = vmatprep.subr.bf16.mxu0 0
      %1164 = vmatpush1.bf16.msra.mxu0 %v932
      %1165 = vmatprep.mubr.bf16.mxu0 %v556
      %1166 = vmatmul.mubr.bf16.gmra.mrb[0].mxu0 %v554
      %v1167 = vpop.f32.mrb[0].mxu0
      %v1168 = vadd.f32 %v1128, %v1167
      %v1169 = vpop.f32.mrb[0].mxu0
      %v1170 = vpop.f32.mrb[0].mxu0
      %v1171 = vpop.f32.mrb[0].mxu0
      %1172 = vdwg.mxu0
      %1173 = vmatprep.subr.bf16.mxu0 0
      %1174 = vmatpush1.bf16.msra.mxu0 %v933
      %1175 = vmatprep.subr.bf16.mxu0 0
      %1176 = vmatpush1.bf16.msra.mxu0 %v934
      %1177 = vmatprep.subr.bf16.mxu0 0
      %1178 = vmatpush1.bf16.msra.mxu0 %v935
      %1179 = vmatprep.subr.bf16.mxu0 0
      %1180 = vmatpush1.bf16.msra.mxu0 %v936
      %1181 = vmatprep.subr.bf16.mxu0 0
      %1182 = vmatpush1.bf16.msra.mxu0 %v937
      %1183 = vmatprep.subr.bf16.mxu0 0
      %1184 = vmatpush1.bf16.msra.mxu0 %v938
      %1185 = vmatprep.subr.bf16.mxu0 0
      %1186 = vmatpush1.bf16.msra.mxu0 %v939
      %1187 = vmatprep.subr.bf16.mxu0 0
      %1188 = vmatpush1.bf16.msra.mxu0 %v940
      %1189 = vmatprep.subr.bf16.mxu0 0
      %1190 = vmatpush1.bf16.msra.mxu0 0
      %1191 = vmatprep.subr.bf16.mxu0 0
      %1192 = vmatpush1.bf16.msra.mxu0 0
      %1193 = vmatprep.subr.bf16.mxu0 0
      %1194 = vmatpush1.bf16.msra.mxu0 0
      %1195 = vmatprep.subr.bf16.mxu0 0
      %1196 = vmatpush1.bf16.msra.mxu0 0
      %1197 = vmatprep.subr.bf16.mxu0 0
      %1198 = vmatpush1.bf16.msra.mxu0 0
      %1199 = vmatprep.subr.bf16.mxu0 0
      %1200 = vmatpush1.bf16.msra.mxu0 0
      %1201 = vmatprep.subr.bf16.mxu0 0
      %1202 = vmatpush1.bf16.msra.mxu0 0
      %1203 = vmatprep.subr.bf16.mxu0 0
      %1204 = vmatpush1.bf16.msra.mxu0 0
      %1205 = vmatprep.mubr.bf16.mxu0 0
      %1206 = vmatmul.mubr.bf16.gmra.mrb[0].mxu0 %v571
      %v1207 = vpop.f32.mrb[0].mxu0
      %v1208 = vadd.f32 %v1168, %v1207
      %v1209 = vpop.f32.mrb[0].mxu0
      %v1210 = vpop.f32.mrb[0].mxu0
      %v1211 = vpop.f32.mrb[0].mxu0
      %1212 = vdwg.mxu0
      %vm1213 = vcmp.gt.f32.partialorder %v1208, 0.0
      %v1214 = vmul.f32 %v1208, 0.2
      %v1215 = vsel %vm1213, %v1208, %v1214
      %v1218 = vunpack.c.l.s4 1983009808
      %v1219 = vunpack.c.0.s8 %v1218
      %v1220 = vlaneseq
      %v1221 = vshrl.u32 %v1220, 7
      %v1222 = vsub.s32 %v1219, %v1221
      %v1223 = vrot.slane %v1215, %v1222
      %v1224 = vcombine.high %v1223, %v1223
      %v1227 = vpack.c.bf16 %v1223, %v1223
      %v1228 = vpack.c.bf16 %v1224, %v1224
      %1229 = vst [vmem:[%s190] sm:$0x1] %v1227
      %1230 = vst [vmem:[%s190 + $0x1] sm:$0x1] %v1228
      %s1231 = smul.u32 2, %s19
      %p1232 = scmp.lt.s32.totalorder %s18, 1
      %s1233 = scalar_select %p1232, %s18, 1
      %p1234 = scmp.lt.s32.totalorder %s1231, 1
      %s1235 = scalar_select %p1234, %s1231, 1
      %s1236 = smul.addr %s1233, 2
      %s1237 = sadd.s32 %s1235, %s1236
      %s1238 = scalar_lea.vmem %s3, %s1237
      // Predicated region
      $region33: #{decoder_forward.6} parent=31 // pred_check
        %p1239 = pneg %p114
      $region34: #{decoder_forward.6} parent=31 // pred_check_branch
        %1241 = sbr.rel (%p1239) target = $region36
      $region35: #{decoder_forward.6} parent=31 // pred_region
        %s1242 = smul.u32 2, %s19
      $region36: #{decoder_forward.6} parent=31 // pred_fallthru
        _
    $region32: #{decoder_forward.6} parent=5 // pred_fallthru
      _
    %p1243 = scmp.le.s32.totalorder 2, %s9
    // Predicated region
    $region37: #{decoder_forward.6} parent=5 // pred_check
      %p1244 = pneg %p1243
    $region38: #{decoder_forward.6} parent=5 // pred_check_branch
      %1246 = sbr.rel (%p1244) target = $region40
    $region39: #{decoder_forward.6} parent=5 // pred_region
      %s1247 = ssub.s32 %s9, 2
      // Predicated region
      $region41: #{decoder_forward.6} parent=39 // pred_check
        %p1248 = pneg %p120
      $region42: #{decoder_forward.6} parent=39 // pred_check_branch
        %1250 = sbr.rel (%p1248) target = $region44
      $region43: #{decoder_forward.6} parent=39 // pred_region
        %s1251 = smul.u32 2, %s21
        %p1252 = scmp.lt.s32.totalorder %s20, 1
        %s1253 = scalar_select %p1252, %s20, 1
        %p1254 = scmp.lt.s32.totalorder %s1251, 1
        %s1255 = scalar_select %p1254, %s1251, 1
        %s1256 = smul.addr %s1253, 2
        %s1257 = sadd.s32 %s1255, %s1256
        %s1258 = scalar_lea.vmem %s3, %s1257
      $region44: #{decoder_forward.6} parent=39 // pred_fallthru
        _
    $region40: #{decoder_forward.6} parent=5 // pred_fallthru
      _
  $region6: #{decoder_forward.6} parent=0 // loop_footer
    %s13 = sadd.s32 1, %s9
  $region7: #{decoder_forward.6} parent=0 // loop_footer_branch
    %8 = sbr.rel target = $region3
  $region8: #{decoder_forward.6} parent=0 // loop_exit
    _

// kernel: decoder_forward.8
$region0: #{decoder_forward.8}
  #allocation0 [shape = 'u32[]', space=smem, size = 0x4, offset = 0x4, fixed_abs, tag = 'smem constant byte address 0x4 - core index']
  #allocation1 [shape = 'u32[144,128]{1,0:T(1,128)}', space=vmem, size = 0x12000, scoped, tag = 'internal scratch']
  %s0 = inlined_call_operand.vmem [shape: bf16[2,6,10,128], index: 0, kind: input, shape index: {}]
  %s1 = inlined_call_operand.vmem [shape: bf16[1152,128], index: 1, kind: input, shape index: {}]
  %s2 = inlined_call_operand.vmem [shape: f32[1,128], index: 2, kind: input, shape index: {}]
  %s3 = inlined_call_operand.vmem [shape: bf16[2,8,8,128], index: 3, kind: output, shape index: {}]
  %s4 = sld [smem:[#allocation0]]
  $region45: #{decoder_forward.8} parent=0
    _
  %s6 = ssub.s32 1, %s4
  %s7 = scalar_select 0, %s6, %s4
  loop: start=0, step=1, limit=4
  $region2: #{decoder_forward.8} parent=0 // loop_pre_header
    _
  $region3: #{decoder_forward.8} parent=0 // loop_header
    %s9 = sphi 0, %s13
    %p10 = scmp.ge.s32.totalorder %s9, 4
    %s16 = sphi 0, %s28
    %s17 = sphi 0, %s24
    %s18 = sphi 0, %s16
    %s19 = sphi 0, %s17
    %s20 = sphi 0, %s18
    %s21 = sphi 0, %s19
    %s31 = sphi 0, %s33
    %s34 = sphi 0, %s31
    %s35 = sphi 0, %s34
    %s51 = sphi 0, %s35
    %s55 = sphi 0, %s55
    %s57 = sphi 0, %s55
    %s58 = sphi 0, %s57
    %s72 = sphi 0, %s58
    %s76 = sphi 0, %s76
    %s78 = sphi 0, %s76
    %s79 = sphi 0, %s78
    %s93 = sphi 0, %s79
    %s101 = sphi 0, %s103
    %s104 = sphi 0, %s101
    %s105 = sphi 0, %s104
    %s121 = sphi 0, %s105
  $region4: #{decoder_forward.8} parent=0 // loop_header_branch
    %12 = sbr.rel (%p10) target = $region8
  $region5: #{decoder_forward.8} parent=0 // loop_body
    %s14 = ssub.s32 %s9, 1
    %s15 = ssub.s32 %s9, 2
    %s22 = sadd.s32 1, %s17
    %p23 = scmp.ge.s32.totalorder %s22, 1
    %s24 = scalar_select %p23, 0, %s22
    %s25 = sadd.s32 1, %s16
    %s26 = scalar_select %p23, %s25, %s16
    %p27 = scmp.ge.s32.totalorder %s26, 2
    %s28 = scalar_select %p27, 0, %s26
    %s29 = ssub.s32 %s16, %s28
    %p30 = scmp.eq.s32.totalorder %s29, 0
    %s32 = sadd.s32 %s31, 1
    %s33 = scalar_select %p30, %s31, %s32
    %p36 = pneg %p30
    %p37 = scmp.eq.s32.totalorder %s9, 1
    %p38 = por %p36, %p37
    %p39 = scmp.ne.s32.totalorder %s31, %s34
    %p40 = scmp.eq.s32.totalorder %s9, 0
    %p41 = por %p39, %p40
    %p42 = scmp.ne.s32.totalorder %s31, %s34
    %p43 = scmp.eq.s32.totalorder %s14, 1
    %p44 = por %p42, %p43
    %p45 = scmp.ne.s32.totalorder %s34, %s35
    %p46 = scmp.eq.s32.totalorder %s14, 0
    %p47 = por %p45, %p46
    %p48 = scmp.ne.s32.totalorder %s34, %s35
    %p49 = scmp.eq.s32.totalorder %s15, 1
    %p50 = por %p48, %p49
    %p52 = scmp.ne.s32.totalorder %s35, %s51
    %p53 = scmp.eq.s32.totalorder %s15, 0
    %p54 = por %p52, %p53
    %s56 = sadd.s32 %s55, 1
    %p59 = scmp.eq.s32.totalorder %s9, 1
    %p60 = scmp.ne.s32.totalorder %s55, %s57
    %p61 = scmp.eq.s32.totalorder %s9, 0
    %p62 = por %p60, %p61
    %p63 = scmp.ne.s32.totalorder %s55, %s57
    %p64 = scmp.eq.s32.totalorder %s14, 1
    %p65 = por %p63, %p64
    %p66 = scmp.ne.s32.totalorder %s57, %s58
    %p67 = scmp.eq.s32.totalorder %s14, 0
    %p68 = por %p66, %p67
    %p69 = scmp.ne.s32.totalorder %s57, %s58
    %p70 = scmp.eq.s32.totalorder %s15, 1
    %p71 = por %p69, %p70
    %p73 = scmp.ne.s32.totalorder %s58, %s72
    %p74 = scmp.eq.s32.totalorder %s15, 0
    %p75 = por %p73, %p74
    %s77 = sadd.s32 %s76, 1
    %p80 = scmp.eq.s32.totalorder %s9, 1
    %p81 = scmp.ne.s32.totalorder %s76, %s78
    %p82 = scmp.eq.s32.totalorder %s9, 0
    %p83 = por %p81, %p82
    %p84 = scmp.ne.s32.totalorder %s76, %s78
    %p85 = scmp.eq.s32.totalorder %s14, 1
    %p86 = por %p84, %p85
    %p87 = scmp.ne.s32.totalorder %s78, %s79
    %p88 = scmp.eq.s32.totalorder %s14, 0
    %p89 = por %p87, %p88
    %p90 = scmp.ne.s32.totalorder %s78, %s79
    %p91 = scmp.eq.s32.totalorder %s15, 1
    %p92 = por %p90, %p91
    %p94 = scmp.ne.s32.totalorder %s79, %s93
    %p95 = scmp.eq.s32.totalorder %s15, 0
    %p96 = por %p94, %p95
    %s97 = ssub.s32 %s16, %s28
    %s98 = ssub.s32 %s17, %s24
    %s99 = sor.u32 %s97, %s98
    %p100 = scmp.eq.s32.totalorder %s99, 0
    %s102 = sadd.s32 %s101, 1
    %s103 = scalar_select %p100, %s101, %s102
    %p106 = pneg %p100
    %p107 = scmp.eq.s32.totalorder %s9, 1
    %p108 = por %p106, %p107
    %p109 = scmp.ne.s32.totalorder %s101, %s104
    %p110 = scmp.eq.s32.totalorder %s9, 0
    %p111 = por %p109, %p110
    %p112 = scmp.ne.s32.totalorder %s101, %s104
    %p113 = scmp.eq.s32.totalorder %s14, 1
    %p114 = por %p112, %p113
    %p115 = scmp.ne.s32.totalorder %s104, %s105
    %p116 = scmp.eq.s32.totalorder %s14, 0
    %p117 = por %p115, %p116
    %p118 = scmp.ne.s32.totalorder %s104, %s105
    %p119 = scmp.eq.s32.totalorder %s15, 1
    %p120 = por %p118, %p119
    %p122 = scmp.ne.s32.totalorder %s105, %s121
    %p123 = scmp.eq.s32.totalorder %s15, 0
    %p124 = por %p122, %p123
    %p125 = scmp.le.s32.totalorder 1, %s9
    %p126 = scmp.lt.s32.totalorder %s9, 3
    %p127 = pnand %p125, %p126
    %p128 = pneg %p127
    // Predicated region
    $region9: #{decoder_forward.8} parent=5 // pred_check
      _
    $region10: #{decoder_forward.8} parent=5 // pred_check_branch
      %130 = sbr.rel (%p127) target = $region12
    $region11: #{decoder_forward.8} parent=5 // pred_region
      %s131 = ssub.s32 %s9, 1
      // Predicated region
      $region13: #{decoder_forward.8} parent=11 // pred_check
        %p132 = pneg %p68
      $region14: #{decoder_forward.8} parent=11 // pred_check_branch
        %134 = sbr.rel (%p132) target = $region16
      $region15: #{decoder_forward.8} parent=11 // pred_region
        _
      $region16: #{decoder_forward.8} parent=11 // pred_fallthru
        _
      // Predicated region
      $region17: #{decoder_forward.8} parent=11 // pred_check
        %p135 = pneg %p89
      $region18: #{decoder_forward.8} parent=11 // pred_check_branch
        %137 = sbr.rel (%p135) target = $region20
      $region19: #{decoder_forward.8} parent=11 // pred_region
        _
      $region20: #{decoder_forward.8} parent=11 // pred_fallthru
        _
    $region12: #{decoder_forward.8} parent=5 // pred_fallthru
      _
    %p138 = scmp.lt.s32.totalorder %s9, 2
    // Predicated region
    $region21: #{decoder_forward.8} parent=5 // pred_check
      %p139 = pneg %p138
    $region22: #{decoder_forward.8} parent=5 // pred_check_branch
      %141 = sbr.rel (%p139) target = $region24
    $region23: #{decoder_forward.8} parent=5 // pred_region
      // Predicated region
      $region25: #{decoder_forward.8} parent=23 // pred_check
        %p142 = pneg %p41
      $region26: #{decoder_forward.8} parent=23 // pred_check_branch
        %144 = sbr.rel (%p142) target = $region28
      $region27: #{decoder_forward.8} parent=23 // pred_region
        %p145 = scmp.lt.s32.totalorder %s16, 1
        %s146 = scalar_select %p145, %s16, 1
        %s147 = smul.addr %s146, 12
        %s148 = smul.addr %s147, 4
        %s149 = scalar_lea.vmem %s0, %s148
      $region28: #{decoder_forward.8} parent=23 // pred_fallthru
        _
    $region24: #{decoder_forward.8} parent=5 // pred_fallthru
      _
    %p150 = scmp.le.s32.totalorder 1, %s9
    %p151 = scmp.lt.s32.totalorder %s9, 3
    %p152 = pnand %p150, %p151
    %p153 = pneg %p152
    // Predicated region
    $region29: #{decoder_forward.8} parent=5 // pred_check
      _
    $region30: #{decoder_forward.8} parent=5 // pred_check_branch
      %155 = sbr.rel (%p152) target = $region32
    $region31: #{decoder_forward.8} parent=5 // pred_region
      %s156 = ssub.s32 %s9, 1
      %p157 = scmp.lt.s32.totalorder %s18, 1
      %s158 = scalar_select %p157, %s18, 1
      %s159 = smul.addr %s158, 12
      %s160 = smul.addr %s159, 4
      %s161 = scalar_lea.vmem %s0, %s160
      %p162 = pneg %p47
      %p163 = pneg %p44
      %p164 = pneg %p68
      %p165 = pneg %p65
      %p166 = pneg %p89
      %p167 = pneg %p86
      %p168 = pneg %p117
      %p169 = pneg %p114
      %s170 = smul.u32 8, %s19
      %p171 = scmp.lt.s32.totalorder %s18, 1
      %s172 = scalar_select %p171, %s18, 1
      %p173 = scmp.lt.s32.totalorder %s170, 7
      %s174 = scalar_select %p173, %s170, 7
      %s175 = smul.addr %s172, 8
      %s176 = sadd.s32 %s174, %s175
      %s177 = smul.addr %s176, 4
      %s178 = scalar_lea.vmem %s3, %s177
      %p179 = scmp.lt.s32.totalorder %s18, 1
      %s180 = scalar_select %p179, %s18, 1
      %s181 = smul.addr %s180, 12
      %s182 = smul.addr %s181, 4
      %s183 = scalar_lea.vmem %s0, %s182
      %s184 = smul.u32 8, %s19
      %p185 = scmp.lt.s32.totalorder %s18, 1
      %s186 = scalar_select %p185, %s18, 1
      %p187 = scmp.lt.s32.totalorder %s184, 7
      %s188 = scalar_select %p187, %s184, 7
      %s189 = smul.addr %s186, 8
      %s190 = sadd.s32 %s188, %s189
      %s191 = smul.addr %s190, 4
      %s192 = scalar_lea.vmem %s3, %s191
      %s193 = smul.u32 8, %s19
      %s195 = smul.u32 %s19, 4
      %s196 = smul.u32 %s195, 2
      %s197 = smul.addr %s196, 4
      %s198 = scalar_lea.vmem %s183, %s197
      %v199 = vld [vmem:[%s198] sm:$0xf]
      %v200 = vld [vmem:[%s198 + $0x4] sm:$0x1]
      %v201 = vld [vmem:[%s198 + $0x8] sm:$0xf]
      %v202 = vld [vmem:[%s198 + $0xc] sm:$0x1]
      %v203 = vld [vmem:[%s198 + $0x10] sm:$0xf]
      %v204 = vld [vmem:[%s198 + $0x14] sm:$0x1]
      %v205 = vld [vmem:[%s198 + $0x18] sm:$0xf]
      %v206 = vld [vmem:[%s198 + $0x1c] sm:$0x1]
      %v207 = vld [vmem:[%s198 + $0x20] sm:$0xf]
      %v208 = vld [vmem:[%s198 + $0x24] sm:$0x1]
      %v209 = vld [vmem:[%s198 + $0x28] sm:$0xf]
      %v210 = vld [vmem:[%s198 + $0x2c] sm:$0x1]
      %v221 = vunpack.c.l.b16 %v199
      %v222 = vunpack.c.l.b16 %v200
      %v223 = vunpack.c.l.b16 %v201
      %v224 = vunpack.c.l.b16 %v202
      %v225 = vunpack.c.l.b16 %v203
      %v226 = vunpack.c.l.b16 %v204
      %v227 = vunpack.c.l.b16 %v205
      %v228 = vunpack.c.l.b16 %v206
      %v229 = vunpack.c.l.b16 %v207
      %v230 = vunpack.c.l.b16 %v208
      %v231 = vpack.c.b16 %v222, %v221
      %v232 = vpack.c.b16 %v224, %v223
      %v233 = vpack.c.b16 %v226, %v225
      %v234 = vpack.c.b16 %v228, %v227
      %v235 = vpack.c.b16 %v230, %v229
      %v237 = vshrl.u32 %v231, 16
      %v239 = vshll.u32 %v231, 16
      %v241 = vrot.slane %v239, 1
      %v242 = vor.u32 %v237, %v241
      %v244 = vshrl.u32 %v232, 16
      %v246 = vshll.u32 %v232, 16
      %v248 = vrot.slane %v246, 1
      %v249 = vor.u32 %v244, %v248
      %v251 = vshrl.u32 %v233, 16
      %v253 = vshll.u32 %v233, 16
      %v255 = vrot.slane %v253, 1
      %v256 = vor.u32 %v251, %v255
      %v258 = vshrl.u32 %v234, 16
      %v260 = vshll.u32 %v234, 16
      %v262 = vrot.slane %v260, 1
      %v263 = vor.u32 %v258, %v262
      %v265 = vshrl.u32 %v235, 16
      %v267 = vshll.u32 %v235, 16
      %v269 = vrot.slane %v267, 1
      %v270 = vor.u32 %v265, %v269
      %v271 = vrot.slane %v231, 1
      %v272 = vrot.slane %v232, 1
      %v273 = vrot.slane %v233, 1
      %v274 = vrot.slane %v234, 1
      %v275 = vrot.slane %v235, 1
      %v278 = vunpack.c.l.b16 %v209
      %v279 = vunpack.c.l.b16 %v210
      %v280 = vpack.c.b16 %v279, %v278
      %v282 = vshrl.u32 %v280, 16
      %v284 = vshll.u32 %v280, 16
      %v286 = vrot.slane %v284, 1
      %v287 = vor.u32 %v282, %v286
      %v288 = vrot.slane %v280, 1
      %v289 = vunpack.c.l.b16 %v242
      %v290 = vunpack.c.l.b16 %v271
      %v291 = vunpack.c.l.b16 %v249
      %v292 = vunpack.c.l.b16 %v272
      %v293 = vunpack.c.l.b16 %v256
      %v294 = vunpack.c.l.b16 %v273
      %v295 = vunpack.c.l.b16 %v263
      %v296 = vunpack.c.l.b16 %v274
      %v297 = vunpack.c.l.b16 %v270
      %v298 = vunpack.c.l.b16 %v275
      %v299 = vunpack.c.l.b16 %v287
      %v300 = vunpack.c.l.b16 %v288
      %v301 = vld [vmem:[%s1] sm:$0xf]
      %v302 = vld [vmem:[%s1 + $0x4] sm:$0xf]
      %v303 = vld [vmem:[%s1 + $0x8] sm:$0xf]
      %v304 = vld [vmem:[%s1 + $0xc] sm:$0xf]
      %v305 = vld [vmem:[%s1 + $0x10] sm:$0xf]
      %v306 = vld [vmem:[%s1 + $0x14] sm:$0xf]
      %v307 = vld [vmem:[%s1 + $0x18] sm:$0xf]
      %v308 = vld [vmem:[%s1 + $0x1c] sm:$0xf]
      %v309 = vld [vmem:[%s1 + $0x20] sm:$0xf]
      %v310 = vld [vmem:[%s1 + $0x24] sm:$0xf]
      %v311 = vld [vmem:[%s1 + $0x28] sm:$0xf]
      %v312 = vld [vmem:[%s1 + $0x2c] sm:$0xf]
      %v313 = vld [vmem:[%s1 + $0x30] sm:$0xf]
      %v314 = vld [vmem:[%s1 + $0x34] sm:$0xf]
      %v315 = vld [vmem:[%s1 + $0x38] sm:$0xf]
      %v316 = vld [vmem:[%s1 + $0x3c] sm:$0xf]
      %v317 = vld [vmem:[%s1 + $0x40] sm:$0xf]
      %v318 = vld [vmem:[%s1 + $0x44] sm:$0xf]
      %v319 = vld [vmem:[%s1 + $0x48] sm:$0xf]
      %v320 = vld [vmem:[%s1 + $0x4c] sm:$0xf]
      %v321 = vld [vmem:[%s1 + $0x50] sm:$0xf]
      %v322 = vld [vmem:[%s1 + $0x54] sm:$0xf]
      %v323 = vld [vmem:[%s1 + $0x58] sm:$0xf]
      %v324 = vld [vmem:[%s1 + $0x5c] sm:$0xf]
      %v325 = vld [vmem:[%s1 + $0x60] sm:$0xf]
      %v326 = vld [vmem:[%s1 + $0x64] sm:$0xf]
      %v327 = vld [vmem:[%s1 + $0x68] sm:$0xf]
      %v328 = vld [vmem:[%s1 + $0x6c] sm:$0xf]
      %v329 = vld [vmem:[%s1 + $0x70] sm:$0xf]
      %v330 = vld [vmem:[%s1 + $0x74] sm:$0xf]
      %v331 = vld [vmem:[%s1 + $0x78] sm:$0xf]
      %v332 = vld [vmem:[%s1 + $0x7c] sm:$0xf]
      %v333 = vld [vmem:[%s1 + $0x80] sm:$0xf]
      %v334 = vld [vmem:[%s1 + $0x84] sm:$0xf]
      %v335 = vld [vmem:[%s1 + $0x88] sm:$0xf]
      %v336 = vld [vmem:[%s1 + $0x8c] sm:$0xf]
      %v337 = vld [vmem:[%s1 + $0x90] sm:$0xf]
      %v338 = vld [vmem:[%s1 + $0x94] sm:$0xf]
      %v339 = vld [vmem:[%s1 + $0x98] sm:$0xf]
      %v340 = vld [vmem:[%s1 + $0x9c] sm:$0xf]
      %v341 = vld [vmem:[%s1 + $0xa0] sm:$0xf]
      %v342 = vld [vmem:[%s1 + $0xa4] sm:$0xf]
      %v343 = vld [vmem:[%s1 + $0xa8] sm:$0xf]
      %v344 = vld [vmem:[%s1 + $0xac] sm:$0xf]
      %v345 = vld [vmem:[%s1 + $0xb0] sm:$0xf]
      %v346 = vld [vmem:[%s1 + $0xb4] sm:$0xf]
      %v347 = vld [vmem:[%s1 + $0xb8] sm:$0xf]
      %v348 = vld [vmem:[%s1 + $0xbc] sm:$0xf]
      %v349 = vld [vmem:[%s1 + $0xc0] sm:$0xf]
      %v350 = vld [vmem:[%s1 + $0xc4] sm:$0xf]
      %v351 = vld [vmem:[%s1 + $0xc8] sm:$0xf]
      %v352 = vld [vmem:[%s1 + $0xcc] sm:$0xf]
      %v353 = vld [vmem:[%s1 + $0xd0] sm:$0xf]
      %v354 = vld [vmem:[%s1 + $0xd4] sm:$0xf]
      %v355 = vld [vmem:[%s1 + $0xd8] sm:$0xf]
      %v356 = vld [vmem:[%s1 + $0xdc] sm:$0xf]
      %v357 = vld [vmem:[%s1 + $0xe0] sm:$0xf]
      %v358 = vld [vmem:[%s1 + $0xe4] sm:$0xf]
      %v359 = vld [vmem:[%s1 + $0xe8] sm:$0xf]
      %v360 = vld [vmem:[%s1 + $0xec] sm:$0xf]
      %v361 = vld [vmem:[%s1 + $0xf0] sm:$0xf]
      %v362 = vld [vmem:[%s1 + $0xf4] sm:$0xf]
      %v363 = vld [vmem:[%s1 + $0xf8] sm:$0xf]
      %v364 = vld [vmem:[%s1 + $0xfc] sm:$0xf]
      %v365 = vld [vmem:[%s1 + $0x100] sm:$0xf]
      %v366 = vld [vmem:[%s1 + $0x104] sm:$0xf]
      %v367 = vld [vmem:[%s1 + $0x108] sm:$0xf]
      %v368 = vld [vmem:[%s1 + $0x10c] sm:$0xf]
      %v369 = vld [vmem:[%s1 + $0x110] sm:$0xf]
      %v370 = vld [vmem:[%s1 + $0x114] sm:$0xf]
      %v371 = vld [vmem:[%s1 + $0x118] sm:$0xf]
      %v372 = vld [vmem:[%s1 + $0x11c] sm:$0xf]
      %v373 = vld [vmem:[%s1 + $0x120] sm:$0xf]
      %v374 = vld [vmem:[%s1 + $0x124] sm:$0xf]
      %v375 = vld [vmem:[%s1 + $0x128] sm:$0xf]
      %v376 = vld [vmem:[%s1 + $0x12c] sm:$0xf]
      %v377 = vld [vmem:[%s1 + $0x130] sm:$0xf]
      %v378 = vld [vmem:[%s1 + $0x134] sm:$0xf]
      %v379 = vld [vmem:[%s1 + $0x138] sm:$0xf]
      %v380 = vld [vmem:[%s1 + $0x13c] sm:$0xf]
      %v381 = vld [vmem:[%s1 + $0x140] sm:$0xf]
      %v382 = vld [vmem:[%s1 + $0x144] sm:$0xf]
      %v383 = vld [vmem:[%s1 + $0x148] sm:$0xf]
      %v384 = vld [vmem:[%s1 + $0x14c] sm:$0xf]
      %v385 = vld [vmem:[%s1 + $0x150] sm:$0xf]
      %v386 = vld [vmem:[%s1 + $0x154] sm:$0xf]
      %v387 = vld [vmem:[%s1 + $0x158] sm:$0xf]
      %v388 = vld [vmem:[%s1 + $0x15c] sm:$0xf]
      %v389 = vld [vmem:[%s1 + $0x160] sm:$0xf]
      %v390 = vld [vmem:[%s1 + $0x164] sm:$0xf]
      %v391 = vld [vmem:[%s1 + $0x168] sm:$0xf]
      %v392 = vld [vmem:[%s1 + $0x16c] sm:$0xf]
      %v393 = vld [vmem:[%s1 + $0x170] sm:$0xf]
      %v394 = vld [vmem:[%s1 + $0x174] sm:$0xf]
      %v395 = vld [vmem:[%s1 + $0x178] sm:$0xf]
      %v396 = vld [vmem:[%s1 + $0x17c] sm:$0xf]
      %v397 = vld [vmem:[%s1 + $0x180] sm:$0xf]
      %v398 = vld [vmem:[%s1 + $0x184] sm:$0xf]
      %v399 = vld [vmem:[%s1 + $0x188] sm:$0xf]
      %v400 = vld [vmem:[%s1 + $0x18c] sm:$0xf]
      %v401 = vld [vmem:[%s1 + $0x190] sm:$0xf]
      %v402 = vld [vmem:[%s1 + $0x194] sm:$0xf]
      %v403 = vld [vmem:[%s1 + $0x198] sm:$0xf]
      %v404 = vld [vmem:[%s1 + $0x19c] sm:$0xf]
      %v405 = vld [vmem:[%s1 + $0x1a0] sm:$0xf]
      %v406 = vld [vmem:[%s1 + $0x1a4] sm:$0xf]
      %v407 = vld [vmem:[%s1 + $0x1a8] sm:$0xf]
      %v408 = vld [vmem:[%s1 + $0x1ac] sm:$0xf]
      %v409 = vld [vmem:[%s1 + $0x1b0] sm:$0xf]
      %v410 = vld [vmem:[%s1 + $0x1b4] sm:$0xf]
      %v411 = vld [vmem:[%s1 + $0x1b8] sm:$0xf]
      %v412 = vld [vmem:[%s1 + $0x1bc] sm:$0xf]
      %v413 = vld [vmem:[%s1 + $0x1c0] sm:$0xf]
      %v414 = vld [vmem:[%s1 + $0x1c4] sm:$0xf]
      %v415 = vld [vmem:[%s1 + $0x1c8] sm:$0xf]
      %v416 = vld [vmem:[%s1 + $0x1cc] sm:$0xf]
      %v417 = vld [vmem:[%s1 + $0x1d0] sm:$0xf]
      %v418 = vld [vmem:[%s1 + $0x1d4] sm:$0xf]
      %v419 = vld [vmem:[%s1 + $0x1d8] sm:$0xf]
      %v420 = vld [vmem:[%s1 + $0x1dc] sm:$0xf]
      %v421 = vld [vmem:[%s1 + $0x1e0] sm:$0xf]
      %v422 = vld [vmem:[%s1 + $0x1e4] sm:$0xf]
      %v423 = vld [vmem:[%s1 + $0x1e8] sm:$0xf]
      %v424 = vld [vmem:[%s1 + $0x1ec] sm:$0xf]
      %v425 = vld [vmem:[%s1 + $0x1f0] sm:$0xf]
      %v426 = vld [vmem:[%s1 + $0x1f4] sm:$0xf]
      %v427 = vld [vmem:[%s1 + $0x1f8] sm:$0xf]
      %v428 = vld [vmem:[%s1 + $0x1fc] sm:$0xf]
      %v429 = vld [vmem:[%s1 + $0x200] sm:$0xf]
      %v430 = vld [vmem:[%s1 + $0x204] sm:$0xf]
      %v431 = vld [vmem:[%s1 + $0x208] sm:$0xf]
      %v432 = vld [vmem:[%s1 + $0x20c] sm:$0xf]
      %v433 = vld [vmem:[%s1 + $0x210] sm:$0xf]
      %v434 = vld [vmem:[%s1 + $0x214] sm:$0xf]
      %v435 = vld [vmem:[%s1 + $0x218] sm:$0xf]
      %v436 = vld [vmem:[%s1 + $0x21c] sm:$0xf]
      %v437 = vld [vmem:[%s1 + $0x220] sm:$0xf]
      %v438 = vld [vmem:[%s1 + $0x224] sm:$0xf]
      %v439 = vld [vmem:[%s1 + $0x228] sm:$0xf]
      %v440 = vld [vmem:[%s1 + $0x22c] sm:$0xf]
      %v441 = vld [vmem:[%s1 + $0x230] sm:$0xf]
      %v442 = vld [vmem:[%s1 + $0x234] sm:$0xf]
      %v443 = vld [vmem:[%s1 + $0x238] sm:$0xf]
      %v444 = vld [vmem:[%s1 + $0x23c] sm:$0xf]
      %v445 = vld [vmem:[%s2] sm:$0x1]
      %v447 = vlaneseq
      %v448 = vshrl.u32 %v447, 7
      %v449 = vsub.s32 0, %v448
      %v450 = vrot.slane %v445, %v449
      %v452 = vpack.c.b16 %v223, %v221
      %v453 = vpack.c.b16 %v291, %v289
      %v454 = vpack.c.b16 %v292, %v290
      %v455 = vpack.c.b16 %v223, %v223
      %v456 = vpack.c.b16 %v291, %v291
      %v457 = vpack.c.b16 %v292, %v292
      %v458 = vpack.c.b16 %v225, %v223
      %v459 = vpack.c.b16 %v293, %v291
      %v460 = vpack.c.b16 %v294, %v292
      %v461 = vpack.c.b16 %v225, %v225
      %v462 = vpack.c.b16 %v293, %v293
      %v463 = vpack.c.b16 %v294, %v294
      %v464 = vpack.c.b16 %v227, %v225
      %v465 = vpack.c.b16 %v295, %v293
      %v466 = vpack.c.b16 %v296, %v294
      %v467 = vpack.c.b16 %v227, %v227
      %v468 = vpack.c.b16 %v295, %v295
      %v469 = vpack.c.b16 %v296, %v296
      %v470 = vpack.c.b16 %v229, %v227
      %v471 = vpack.c.b16 %v297, %v295
      %v472 = vpack.c.b16 %v298, %v296
      %v473 = vpack.c.b16 %v229, %v229
      %v474 = vpack.c.b16 %v297, %v297
      %v475 = vpack.c.b16 %v298, %v298
      %v476 = vpack.c.b16 %v278, %v229
      %v477 = vpack.c.b16 %v299, %v297
      %v478 = vpack.c.b16 %v300, %v298
      %v650 = vunpack.c.l.b16 %v301
      %v651 = vunpack.c.l.b16 %v302
      %v652 = vunpack.c.l.b16 %v303
      %v653 = vunpack.c.l.b16 %v304
      %v654 = vunpack.c.l.b16 %v305
      %v655 = vunpack.c.l.b16 %v306
      %v656 = vunpack.c.l.b16 %v307
      %v657 = vunpack.c.l.b16 %v308
      %v658 = vunpack.c.l.b16 %v309
      %v659 = vunpack.c.l.b16 %v310
      %v660 = vunpack.c.l.b16 %v311
      %v661 = vunpack.c.l.b16 %v312
      %v662 = vunpack.c.l.b16 %v313
      %v663 = vunpack.c.l.b16 %v314
      %v664 = vunpack.c.l.b16 %v315
      %v665 = vunpack.c.l.b16 %v316
      %v666 = vunpack.c.l.b16 %v317
      %v667 = vunpack.c.l.b16 %v318
      %v668 = vunpack.c.l.b16 %v319
      %v669 = vunpack.c.l.b16 %v320
      %v670 = vunpack.c.l.b16 %v321
      %v671 = vunpack.c.l.b16 %v322
      %v672 = vunpack.c.l.b16 %v323
      %v673 = vunpack.c.l.b16 %v324
      %v674 = vunpack.c.l.b16 %v325
      %v675 = vunpack.c.l.b16 %v326
      %v676 = vunpack.c.l.b16 %v327
      %v677 = vunpack.c.l.b16 %v328
      %v678 = vunpack.c.l.b16 %v329
      %v679 = vunpack.c.l.b16 %v330
      %v680 = vunpack.c.l.b16 %v331
      %v681 = vunpack.c.l.b16 %v332
      %v682 = vunpack.c.l.b16 %v333
      %v683 = vunpack.c.l.b16 %v334
      %v684 = vunpack.c.l.b16 %v335
      %v685 = vunpack.c.l.b16 %v336
      %v686 = vunpack.c.l.b16 %v337
      %v687 = vunpack.c.l.b16 %v338
      %v688 = vunpack.c.l.b16 %v339
      %v689 = vunpack.c.l.b16 %v340
      %v690 = vunpack.c.l.b16 %v341
      %v691 = vunpack.c.l.b16 %v342
      %v692 = vunpack.c.l.b16 %v343
      %v693 = vunpack.c.l.b16 %v344
      %v694 = vunpack.c.l.b16 %v345
      %v695 = vunpack.c.l.b16 %v346
      %v696 = vunpack.c.l.b16 %v347
      %v697 = vunpack.c.l.b16 %v348
      %v698 = vunpack.c.l.b16 %v349
      %v699 = vunpack.c.l.b16 %v350
      %v700 = vunpack.c.l.b16 %v351
      %v701 = vunpack.c.l.b16 %v352
      %v702 = vunpack.c.l.b16 %v353
      %v703 = vunpack.c.l.b16 %v354
      %v704 = vunpack.c.l.b16 %v355
      %v705 = vunpack.c.l.b16 %v356
      %v706 = vunpack.c.l.b16 %v357
      %v707 = vunpack.c.l.b16 %v358
      %v708 = vunpack.c.l.b16 %v359
      %v709 = vunpack.c.l.b16 %v360
      %v710 = vunpack.c.l.b16 %v361
      %v711 = vunpack.c.l.b16 %v362
      %v712 = vunpack.c.l.b16 %v363
      %v713 = vunpack.c.l.b16 %v364
      %v714 = vunpack.c.l.b16 %v365
      %v715 = vunpack.c.l.b16 %v366
      %v716 = vunpack.c.l.b16 %v367
      %v717 = vunpack.c.l.b16 %v368
      %v718 = vunpack.c.l.b16 %v369
      %v719 = vunpack.c.l.b16 %v370
      %v720 = vunpack.c.l.b16 %v371
      %v721 = vunpack.c.l.b16 %v372
      %v722 = vunpack.c.l.b16 %v373
      %v723 = vunpack.c.l.b16 %v374
      %v724 = vunpack.c.l.b16 %v375
      %v725 = vunpack.c.l.b16 %v376
      %v726 = vunpack.c.l.b16 %v377
      %v727 = vunpack.c.l.b16 %v378
      %v728 = vunpack.c.l.b16 %v379
      %v729 = vunpack.c.l.b16 %v380
      %v730 = vunpack.c.l.b16 %v381
      %v731 = vunpack.c.l.b16 %v382
      %v732 = vunpack.c.l.b16 %v383
      %v733 = vunpack.c.l.b16 %v384
      %v734 = vunpack.c.l.b16 %v385
      %v735 = vunpack.c.l.b16 %v386
      %v736 = vunpack.c.l.b16 %v387
      %v737 = vunpack.c.l.b16 %v388
      %v738 = vunpack.c.l.b16 %v389
      %v739 = vunpack.c.l.b16 %v390
      %v740 = vunpack.c.l.b16 %v391
      %v741 = vunpack.c.l.b16 %v392
      %v742 = vunpack.c.l.b16 %v393
      %v743 = vunpack.c.l.b16 %v394
      %v744 = vunpack.c.l.b16 %v395
      %v745 = vunpack.c.l.b16 %v396
      %v746 = vunpack.c.l.b16 %v397
      %v747 = vunpack.c.l.b16 %v398
      %v748 = vunpack.c.l.b16 %v399
      %v749 = vunpack.c.l.b16 %v400
      %v750 = vunpack.c.l.b16 %v401
      %v751 = vunpack.c.l.b16 %v402
      %v752 = vunpack.c.l.b16 %v403
      %v753 = vunpack.c.l.b16 %v404
      %v754 = vunpack.c.l.b16 %v405
      %v755 = vunpack.c.l.b16 %v406
      %v756 = vunpack.c.l.b16 %v407
      %v757 = vunpack.c.l.b16 %v408
      %v758 = vunpack.c.l.b16 %v409
      %v759 = vunpack.c.l.b16 %v410
      %v760 = vunpack.c.l.b16 %v411
      %v761 = vunpack.c.l.b16 %v412
      %v762 = vunpack.c.l.b16 %v413
      %v763 = vunpack.c.l.b16 %v414
      %v764 = vunpack.c.l.b16 %v415
      %v765 = vunpack.c.l.b16 %v416
      %v766 = vunpack.c.l.b16 %v417
      %v767 = vunpack.c.l.b16 %v418
      %v768 = vunpack.c.l.b16 %v419
      %v769 = vunpack.c.l.b16 %v420
      %v770 = vunpack.c.l.b16 %v421
      %v771 = vunpack.c.l.b16 %v422
      %v772 = vunpack.c.l.b16 %v423
      %v773 = vunpack.c.l.b16 %v424
      %v774 = vunpack.c.l.b16 %v425
      %v775 = vunpack.c.l.b16 %v426
      %v776 = vunpack.c.l.b16 %v427
      %v777 = vunpack.c.l.b16 %v428
      %v778 = vunpack.c.l.b16 %v429
      %v779 = vunpack.c.l.b16 %v430
      %v780 = vunpack.c.l.b16 %v431
      %v781 = vunpack.c.l.b16 %v432
      %v782 = vunpack.c.l.b16 %v433
      %v783 = vunpack.c.l.b16 %v434
      %v784 = vunpack.c.l.b16 %v435
      %v785 = vunpack.c.l.b16 %v436
      %v786 = vunpack.c.l.b16 %v437
      %v787 = vunpack.c.l.b16 %v438
      %v788 = vunpack.c.l.b16 %v439
      %v789 = vunpack.c.l.b16 %v440
      %v790 = vunpack.c.l.b16 %v441
      %v791 = vunpack.c.l.b16 %v442
      %v792 = vunpack.c.l.b16 %v443
      %v793 = vunpack.c.l.b16 %v444
      %v794 = vpack.c.b16 %v651, %v650
      %v795 = vpack.c.b16 %v653, %v652
      %v796 = vpack.c.b16 %v655, %v654
      %v797 = vpack.c.b16 %v657, %v656
      %v798 = vpack.c.b16 %v659, %v658
      %v799 = vpack.c.b16 %v661, %v660
      %v800 = vpack.c.b16 %v663, %v662
      %v801 = vpack.c.b16 %v665, %v664
      %v802 = vpack.c.b16 %v667, %v666
      %v803 = vpack.c.b16 %v669, %v668
      %v804 = vpack.c.b16 %v671, %v670
      %v805 = vpack.c.b16 %v673, %v672
      %v806 = vpack.c.b16 %v675, %v674
      %v807 = vpack.c.b16 %v677, %v676
      %v808 = vpack.c.b16 %v679, %v678
      %v809 = vpack.c.b16 %v681, %v680
      %v810 = vpack.c.b16 %v683, %v682
      %v811 = vpack.c.b16 %v685, %v684
      %v812 = vpack.c.b16 %v687, %v686
      %v813 = vpack.c.b16 %v689, %v688
      %v814 = vpack.c.b16 %v691, %v690
      %v815 = vpack.c.b16 %v693, %v692
      %v816 = vpack.c.b16 %v695, %v694
      %v817 = vpack.c.b16 %v697, %v696
      %v818 = vpack.c.b16 %v699, %v698
      %v819 = vpack.c.b16 %v701, %v700
      %v820 = vpack.c.b16 %v703, %v702
      %v821 = vpack.c.b16 %v705, %v704
      %v822 = vpack.c.b16 %v707, %v706
      %v823 = vpack.c.b16 %v709, %v708
      %v824 = vpack.c.b16 %v711, %v710
      %v825 = vpack.c.b16 %v713, %v712
      %v826 = vpack.c.b16 %v715, %v714
      %v827 = vpack.c.b16 %v717, %v716
      %v828 = vpack.c.b16 %v719, %v718
      %v829 = vpack.c.b16 %v721, %v720
      %v830 = vpack.c.b16 %v723, %v722
      %v831 = vpack.c.b16 %v725, %v724
      %v832 = vpack.c.b16 %v727, %v726
      %v833 = vpack.c.b16 %v729, %v728
      %v834 = vpack.c.b16 %v731, %v730
      %v835 = vpack.c.b16 %v733, %v732
      %v836 = vpack.c.b16 %v735, %v734
      %v837 = vpack.c.b16 %v737, %v736
      %v838 = vpack.c.b16 %v739, %v738
      %v839 = vpack.c.b16 %v741, %v740
      %v840 = vpack.c.b16 %v743, %v742
      %v841 = vpack.c.b16 %v745, %v744
      %v842 = vpack.c.b16 %v747, %v746
      %v843 = vpack.c.b16 %v749, %v748
      %v844 = vpack.c.b16 %v751, %v750
      %v845 = vpack.c.b16 %v753, %v752
      %v846 = vpack.c.b16 %v755, %v754
      %v847 = vpack.c.b16 %v757, %v756
      %v848 = vpack.c.b16 %v759, %v758
      %v849 = vpack.c.b16 %v761, %v760
      %v850 = vpack.c.b16 %v763, %v762
      %v851 = vpack.c.b16 %v765, %v764
      %v852 = vpack.c.b16 %v767, %v766
      %v853 = vpack.c.b16 %v769, %v768
      %v854 = vpack.c.b16 %v771, %v770
      %v855 = vpack.c.b16 %v773, %v772
      %v856 = vpack.c.b16 %v775, %v774
      %v857 = vpack.c.b16 %v777, %v776
      %v858 = vpack.c.b16 %v779, %v778
      %v859 = vpack.c.b16 %v781, %v780
      %v860 = vpack.c.b16 %v783, %v782
      %v861 = vpack.c.b16 %v785, %v784
      %v862 = vpack.c.b16 %v787, %v786
      %v863 = vpack.c.b16 %v789, %v788
      %v864 = vpack.c.b16 %v791, %v790
      %v865 = vpack.c.b16 %v793, %v792
      %938 = vmatprep.subr.bf16.mxu0 0
      %939 = vmatpush1.bf16.msra.mxu0 %v794
      %940 = vmatprep.subr.bf16.mxu0 0
      %941 = vmatpush1.bf16.msra.mxu0 %v795
      %942 = vmatprep.subr.bf16.mxu0 0
      %943 = vmatpush1.bf16.msra.mxu0 %v796
      %944 = vmatprep.subr.bf16.mxu0 0
      %945 = vmatpush1.bf16.msra.mxu0 %v797
      %946 = vmatprep.subr.bf16.mxu0 0
      %947 = vmatpush1.bf16.msra.mxu0 %v798
      %948 = vmatprep.subr.bf16.mxu0 0
      %949 = vmatpush1.bf16.msra.mxu0 %v799
      %950 = vmatprep.subr.bf16.mxu0 0
      %951 = vmatpush1.bf16.msra.mxu0 %v800
      %952 = vmatprep.subr.bf16.mxu0 0
      %953 = vmatpush1.bf16.msra.mxu0 %v801
      %954 = vmatprep.subr.bf16.mxu0 0
      %955 = vmatpush1.bf16.msra.mxu0 %v802
      %956 = vmatprep.subr.bf16.mxu0 0
      %957 = vmatpush1.bf16.msra.mxu0 %v803
      %958 = vmatprep.subr.bf16.mxu0 0
      %959 = vmatpush1.bf16.msra.mxu0 %v804
      %960 = vmatprep.subr.bf16.mxu0 0
      %961 = vmatpush1.bf16.msra.mxu0 %v805
      %962 = vmatprep.subr.bf16.mxu0 0
      %963 = vmatpush1.bf16.msra.mxu0 %v806
      %964 = vmatprep.subr.bf16.mxu0 0
      %965 = vmatpush1.bf16.msra.mxu0 %v807
      %966 = vmatprep.subr.bf16.mxu0 0
      %967 = vmatpush1.bf16.msra.mxu0 %v808
      %968 = vmatprep.subr.bf16.mxu0 0
      %969 = vmatpush1.bf16.msra.mxu0 %v809
      %970 = vmatprep.mubr.bf16.mxu0 %v453
      %971 = vmatmul.mubr.bf16.gmra.mrb[0].mxu0 %v452
      %v972 = vpop.f32.mrb[0].mxu0
      %v973 = vadd.f32 %v450, %v972
      %v974 = vpop.f32.mrb[0].mxu0
      %v975 = vpop.f32.mrb[0].mxu0
      %v976 = vadd.f32 %v450, %v975
      %v977 = vpop.f32.mrb[0].mxu0
      %978 = vmatprep.mubr.bf16.mxu0 %v459
      %979 = vmatmul.mubr.bf16.gmra.mrb[0].mxu0 %v458
      %v980 = vpop.f32.mrb[0].mxu0
      %v981 = vadd.f32 %v450, %v980
      %v982 = vpop.f32.mrb[0].mxu0
      %v983 = vpop.f32.mrb[0].mxu0
      %v984 = vadd.f32 %v450, %v983
      %v985 = vpop.f32.mrb[0].mxu0
      %986 = vmatprep.mubr.bf16.mxu0 %v465
      %987 = vmatmul.mubr.bf16.gmra.mrb[0].mxu0 %v464
      %v988 = vpop.f32.mrb[0].mxu0
      %v989 = vadd.f32 %v450, %v988
      %v990 = vpop.f32.mrb[0].mxu0
      %v991 = vpop.f32.mrb[0].mxu0
      %v992 = vadd.f32 %v450, %v991
      %v993 = vpop.f32.mrb[0].mxu0
      %994 = vmatprep.mubr.bf16.mxu0 %v471
      %995 = vmatmul.mubr.bf16.gmra.mrb[0].mxu0 %v470
      %v996 = vpop.f32.mrb[0].mxu0
      %v997 = vadd.f32 %v450, %v996
      %v998 = vpop.f32.mrb[0].mxu0
      %v999 = vpop.f32.mrb[0].mxu0
      %v1000 = vadd.f32 %v450, %v999
      %v1001 = vpop.f32.mrb[0].mxu0
      %1002 = vdwg.mxu0
      %1003 = vmatprep.subr.bf16.mxu0 0
      %1004 = vmatpush1.bf16.msra.mxu0 %v810
      %1005 = vmatprep.subr.bf16.mxu0 0
      %1006 = vmatpush1.bf16.msra.mxu0 %v811
      %1007 = vmatprep.subr.bf16.mxu0 0
      %1008 = vmatpush1.bf16.msra.mxu0 %v812
      %1009 = vmatprep.subr.bf16.mxu0 0
      %1010 = vmatpush1.bf16.msra.mxu0 %v813
      %1011 = vmatprep.subr.bf16.mxu0 0
      %1012 = vmatpush1.bf16.msra.mxu0 %v814
      %1013 = vmatprep.subr.bf16.mxu0 0
      %1014 = vmatpush1.bf16.msra.mxu0 %v815
      %1015 = vmatprep.subr.bf16.mxu0 0
      %1016 = vmatpush1.bf16.msra.mxu0 %v816
      %1017 = vmatprep.subr.bf16.mxu0 0
      %1018 = vmatpush1.bf16.msra.mxu0 %v817
      %1019 = vmatprep.subr.bf16.mxu0 0
      %1020 = vmatpush1.bf16.msra.mxu0 %v818
      %1021 = vmatprep.subr.bf16.mxu0 0
      %1022 = vmatpush1.bf16.msra.mxu0 %v819
      %1023 = vmatprep.subr.bf16.mxu0 0
      %1024 = vmatpush1.bf16.msra.mxu0 %v820
      %1025 = vmatprep.subr.bf16.mxu0 0
      %1026 = vmatpush1.bf16.msra.mxu0 %v821
      %1027 = vmatprep.subr.bf16.mxu0 0
      %1028 = vmatpush1.bf16.msra.mxu0 %v822
      %1029 = vmatprep.subr.bf16.mxu0 0
      %1030 = vmatpush1.bf16.msra.mxu0 %v823
      %1031 = vmatprep.subr.bf16.mxu0 0
      %1032 = vmatpush1.bf16.msra.mxu0 %v824
      %1033 = vmatprep.subr.bf16.mxu0 0
      %1034 = vmatpush1.bf16.msra.mxu0 %v825
      %1035 = vmatprep.mubr.bf16.mxu0 %v455
      %1036 = vmatmul.mubr.bf16.gmra.mrb[0].mxu0 %v454
      %v1037 = vpop.f32.mrb[0].mxu0
      %v1038 = vadd.f32 %v973, %v1037
      %v1039 = vpop.f32.mrb[0].mxu0
      %v1040 = vpop.f32.mrb[0].mxu0
      %v1041 = vadd.f32 %v976, %v1040
      %v1042 = vpop.f32.mrb[0].mxu0
      %1043 = vmatprep.mubr.bf16.mxu0 %v461
      %1044 = vmatmul.mubr.bf16.gmra.mrb[0].mxu0 %v460
      %v1045 = vpop.f32.mrb[0].mxu0
      %v1046 = vadd.f32 %v981, %v1045
      %v1047 = vpop.f32.mrb[0].mxu0
      %v1048 = vpop.f32.mrb[0].mxu0
      %v1049 = vadd.f32 %v984, %v1048
      %v1050 = vpop.f32.mrb[0].mxu0
      %1051 = vmatprep.mubr.bf16.mxu0 %v467
      %1052 = vmatmul.mubr.bf16.gmra.mrb[0].mxu0 %v466
      %v1053 = vpop.f32.mrb[0].mxu0
      %v1054 = vadd.f32 %v989, %v1053
      %v1055 = vpop.f32.mrb[0].mxu0
      %v1056 = vpop.f32.mrb[0].mxu0
      %v1057 = vadd.f32 %v992, %v1056
      %v1058 = vpop.f32.mrb[0].mxu0
      %1059 = vmatprep.mubr.bf16.mxu0 %v473
      %1060 = vmatmul.mubr.bf16.gmra.mrb[0].mxu0 %v472
      %v1061 = vpop.f32.mrb[0].mxu0
      %v1062 = vadd.f32 %v997, %v1061
      %v1063 = vpop.f32.mrb[0].mxu0
      %v1064 = vpop.f32.mrb[0].mxu0
      %v1065 = vadd.f32 %v1000, %v1064
      %v1066 = vpop.f32.mrb[0].mxu0
      %1067 = vdwg.mxu0
      %1068 = vmatprep.subr.bf16.mxu0 0
      %1069 = vmatpush1.bf16.msra.mxu0 %v826
      %1070 = vmatprep.subr.bf16.mxu0 0
      %1071 = vmatpush1.bf16.msra.mxu0 %v827
      %1072 = vmatprep.subr.bf16.mxu0 0
      %1073 = vmatpush1.bf16.msra.mxu0 %v828
      %1074 = vmatprep.subr.bf16.mxu0 0
      %1075 = vmatpush1.bf16.msra.mxu0 %v829
      %1076 = vmatprep.subr.bf16.mxu0 0
      %1077 = vmatpush1.bf16.msra.mxu0 %v830
      %1078 = vmatprep.subr.bf16.mxu0 0
      %1079 = vmatpush1.bf16.msra.mxu0 %v831
      %1080 = vmatprep.subr.bf16.mxu0 0
      %1081 = vmatpush1.bf16.msra.mxu0 %v832
      %1082 = vmatprep.subr.bf16.mxu0 0
      %1083 = vmatpush1.bf16.msra.mxu0 %v833
      %1084 = vmatprep.subr.bf16.mxu0 0
      %1085 = vmatpush1.bf16.msra.mxu0 %v834
      %1086 = vmatprep.subr.bf16.mxu0 0
      %1087 = vmatpush1.bf16.msra.mxu0 %v835
      %1088 = vmatprep.subr.bf16.mxu0 0
      %1089 = vmatpush1.bf16.msra.mxu0 %v836
      %1090 = vmatprep.subr.bf16.mxu0 0
      %1091 = vmatpush1.bf16.msra.mxu0 %v837
      %1092 = vmatprep.subr.bf16.mxu0 0
      %1093 = vmatpush1.bf16.msra.mxu0 %v838
      %1094 = vmatprep.subr.bf16.mxu0 0
      %1095 = vmatpush1.bf16.msra.mxu0 %v839
      %1096 = vmatprep.subr.bf16.mxu0 0
      %1097 = vmatpush1.bf16.msra.mxu0 %v840
      %1098 = vmatprep.subr.bf16.mxu0 0
      %1099 = vmatpush1.bf16.msra.mxu0 %v841
      %1100 = vmatprep.mubr.bf16.mxu0 %v457
      %1101 = vmatmul.mubr.bf16.gmra.mrb[0].mxu0 %v456
      %v1102 = vpop.f32.mrb[0].mxu0
      %v1103 = vadd.f32 %v1038, %v1102
      %v1104 = vpop.f32.mrb[0].mxu0
      %v1105 = vpop.f32.mrb[0].mxu0
      %v1106 = vadd.f32 %v1041, %v1105
      %v1107 = vpop.f32.mrb[0].mxu0
      %1108 = vmatprep.mubr.bf16.mxu0 %v463
      %1109 = vmatmul.mubr.bf16.gmra.mrb[0].mxu0 %v462
      %v1110 = vpop.f32.mrb[0].mxu0
      %v1111 = vadd.f32 %v1046, %v1110
      %v1112 = vpop.f32.mrb[0].mxu0
      %v1113 = vpop.f32.mrb[0].mxu0
      %v1114 = vadd.f32 %v1049, %v1113
      %v1115 = vpop.f32.mrb[0].mxu0
      %1116 = vmatprep.mubr.bf16.mxu0 %v469
      %1117 = vmatmul.mubr.bf16.gmra.mrb[0].mxu0 %v468
      %v1118 = vpop.f32.mrb[0].mxu0
      %v1119 = vadd.f32 %v1054, %v1118
      %v1120 = vpop.f32.mrb[0].mxu0
      %v1121 = vpop.f32.mrb[0].mxu0
      %v1122 = vadd.f32 %v1057, %v1121
      %v1123 = vpop.f32.mrb[0].mxu0
      %1124 = vmatprep.mubr.bf16.mxu0 %v475
      %1125 = vmatmul.mubr.bf16.gmra.mrb[0].mxu0 %v474
      %v1126 = vpop.f32.mrb[0].mxu0
      %v1127 = vadd.f32 %v1062, %v1126
      %v1128 = vpop.f32.mrb[0].mxu0
      %v1129 = vpop.f32.mrb[0].mxu0
      %v1130 = vadd.f32 %v1065, %v1129
      %v1131 = vpop.f32.mrb[0].mxu0
      %1132 = vdwg.mxu0
      %1133 = vmatprep.subr.bf16.mxu0 0
      %1134 = vmatpush1.bf16.msra.mxu0 %v842
      %1135 = vmatprep.subr.bf16.mxu0 0
      %1136 = vmatpush1.bf16.msra.mxu0 %v843
      %1137 = vmatprep.subr.bf16.mxu0 0
      %1138 = vmatpush1.bf16.msra.mxu0 %v844
      %1139 = vmatprep.subr.bf16.mxu0 0
      %1140 = vmatpush1.bf16.msra.mxu0 %v845
      %1141 = vmatprep.subr.bf16.mxu0 0
      %1142 = vmatpush1.bf16.msra.mxu0 %v846
      %1143 = vmatprep.subr.bf16.mxu0 0
      %1144 = vmatpush1.bf16.msra.mxu0 %v847
      %1145 = vmatprep.subr.bf16.mxu0 0
      %1146 = vmatpush1.bf16.msra.mxu0 %v848
      %1147 = vmatprep.subr.bf16.mxu0 0
      %1148 = vmatpush1.bf16.msra.mxu0 %v849
      %1149 = vmatprep.subr.bf16.mxu0 0
      %1150 = vmatpush1.bf16.msra.mxu0 %v850
      %1151 = vmatprep.subr.bf16.mxu0 0
      %1152 = vmatpush1.bf16.msra.mxu0 %v851
      %1153 = vmatprep.subr.bf16.mxu0 0
      %1154 = vmatpush1.bf16.msra.mxu0 %v852
      %1155 = vmatprep.subr.bf16.mxu0 0
      %1156 = vmatpush1.bf16.msra.mxu0 %v853
      %1157 = vmatprep.subr.bf16.mxu0 0
      %1158 = vmatpush1.bf16.msra.mxu0 %v854
      %1159 = vmatprep.subr.bf16.mxu0 0
      %1160 = vmatpush1.bf16.msra.mxu0 %v855
      %1161 = vmatprep.subr.bf16.mxu0 0
      %1162 = vmatpush1.bf16.msra.mxu0 %v856
      %1163 = vmatprep.subr.bf16.mxu0 0
      %1164 = vmatpush1.bf16.msra.mxu0 %v857
      %1165 = vmatprep.mubr.bf16.mxu0 %v459
      %1166 = vmatmul.mubr.bf16.gmra.mrb[0].mxu0 %v458
      %v1167 = vpop.f32.mrb[0].mxu0
      %v1168 = vadd.f32 %v1103, %v1167
      %v1169 = vpop.f32.mrb[0].mxu0
      %v1170 = vpop.f32.mrb[0].mxu0
      %v1171 = vadd.f32 %v1106, %v1170
      %v1172 = vpop.f32.mrb[0].mxu0
      %1173 = vmatprep.mubr.bf16.mxu0 %v465
      %1174 = vmatmul.mubr.bf16.gmra.mrb[0].mxu0 %v464
      %v1175 = vpop.f32.mrb[0].mxu0
      %v1176 = vadd.f32 %v1111, %v1175
      %v1177 = vpop.f32.mrb[0].mxu0
      %v1178 = vpop.f32.mrb[0].mxu0
      %v1179 = vadd.f32 %v1114, %v1178
      %v1180 = vpop.f32.mrb[0].mxu0
      %1181 = vmatprep.mubr.bf16.mxu0 %v471
      %1182 = vmatmul.mubr.bf16.gmra.mrb[0].mxu0 %v470
      %v1183 = vpop.f32.mrb[0].mxu0
      %v1184 = vadd.f32 %v1119, %v1183
      %v1185 = vpop.f32.mrb[0].mxu0
      %v1186 = vpop.f32.mrb[0].mxu0
      %v1187 = vadd.f32 %v1122, %v1186
      %v1188 = vpop.f32.mrb[0].mxu0
      %1189 = vmatprep.mubr.bf16.mxu0 %v477
      %1190 = vmatmul.mubr.bf16.gmra.mrb[0].mxu0 %v476
      %v1191 = vpop.f32.mrb[0].mxu0
      %v1192 = vadd.f32 %v1127, %v1191
      %v1193 = vpop.f32.mrb[0].mxu0
      %v1194 = vpop.f32.mrb[0].mxu0
      %v1195 = vadd.f32 %v1130, %v1194
      %v1196 = vpop.f32.mrb[0].mxu0
      %1197 = vdwg.mxu0
      %1198 = vmatprep.subr.bf16.mxu0 0
      %1199 = vmatpush1.bf16.msra.mxu0 %v858
      %1200 = vmatprep.subr.bf16.mxu0 0
      %1201 = vmatpush1.bf16.msra.mxu0 %v859
      %1202 = vmatprep.subr.bf16.mxu0 0
      %1203 = vmatpush1.bf16.msra.mxu0 %v860
      %1204 = vmatprep.subr.bf16.mxu0 0
      %1205 = vmatpush1.bf16.msra.mxu0 %v861
      %1206 = vmatprep.subr.bf16.mxu0 0
      %1207 = vmatpush1.bf16.msra.mxu0 %v862
      %1208 = vmatprep.subr.bf16.mxu0 0
      %1209 = vmatpush1.bf16.msra.mxu0 %v863
      %1210 = vmatprep.subr.bf16.mxu0 0
      %1211 = vmatpush1.bf16.msra.mxu0 %v864
      %1212 = vmatprep.subr.bf16.mxu0 0
      %1213 = vmatpush1.bf16.msra.mxu0 %v865
      %1214 = vmatprep.subr.bf16.mxu0 0
      %1215 = vmatpush1.bf16.msra.mxu0 0
      %1216 = vmatprep.subr.bf16.mxu0 0
      %1217 = vmatpush1.bf16.msra.mxu0 0
      %1218 = vmatprep.subr.bf16.mxu0 0
      %1219 = vmatpush1.bf16.msra.mxu0 0
      %1220 = vmatprep.subr.bf16.mxu0 0
      %1221 = vmatpush1.bf16.msra.mxu0 0
      %1222 = vmatprep.subr.bf16.mxu0 0
      %1223 = vmatpush1.bf16.msra.mxu0 0
      %1224 = vmatprep.subr.bf16.mxu0 0
      %1225 = vmatpush1.bf16.msra.mxu0 0
      %1226 = vmatprep.subr.bf16.mxu0 0
      %1227 = vmatpush1.bf16.msra.mxu0 0
      %1228 = vmatprep.subr.bf16.mxu0 0
      %1229 = vmatpush1.bf16.msra.mxu0 0
      %1230 = vmatprep.mubr.bf16.mxu0 0
      %1231 = vmatmul.mubr.bf16.gmra.mrb[0].mxu0 %v460
      %v1232 = vpop.f32.mrb[0].mxu0
      %v1233 = vadd.f32 %v1168, %v1232
      %v1234 = vpop.f32.mrb[0].mxu0
      %v1235 = vpop.f32.mrb[0].mxu0
      %v1236 = vadd.f32 %v1171, %v1235
      %v1237 = vpop.f32.mrb[0].mxu0
      %1238 = vmatprep.mubr.bf16.mxu0 0
      %1239 = vmatmul.mubr.bf16.gmra.mrb[0].mxu0 %v466
      %v1240 = vpop.f32.mrb[0].mxu0
      %v1241 = vadd.f32 %v1176, %v1240
      %v1242 = vpop.f32.mrb[0].mxu0
      %v1243 = vpop.f32.mrb[0].mxu0
      %v1244 = vadd.f32 %v1179, %v1243
      %v1245 = vpop.f32.mrb[0].mxu0
      %1246 = vmatprep.mubr.bf16.mxu0 0
      %1247 = vmatmul.mubr.bf16.gmra.mrb[0].mxu0 %v472
      %v1248 = vpop.f32.mrb[0].mxu0
      %v1249 = vadd.f32 %v1184, %v1248
      %v1250 = vpop.f32.mrb[0].mxu0
      %v1251 = vpop.f32.mrb[0].mxu0
      %v1252 = vadd.f32 %v1187, %v1251
      %v1253 = vpop.f32.mrb[0].mxu0
      %1254 = vmatprep.mubr.bf16.mxu0 0
      %1255 = vmatmul.mubr.bf16.gmra.mrb[0].mxu0 %v478
      %v1256 = vpop.f32.mrb[0].mxu0
      %v1257 = vadd.f32 %v1192, %v1256
      %v1258 = vpop.f32.mrb[0].mxu0
      %v1259 = vpop.f32.mrb[0].mxu0
      %v1260 = vadd.f32 %v1195, %v1259
      %v1261 = vpop.f32.mrb[0].mxu0
      %1262 = vdwg.mxu0
      %vm1263 = vcmp.gt.f32.partialorder %v1233, 0.0
      %vm1264 = vcmp.gt.f32.partialorder %v1236, 0.0
      %vm1265 = vcmp.gt.f32.partialorder %v1241, 0.0
      %vm1266 = vcmp.gt.f32.partialorder %v1244, 0.0
      %vm1267 = vcmp.gt.f32.partialorder %v1249, 0.0
      %vm1268 = vcmp.gt.f32.partialorder %v1252, 0.0
      %vm1269 = vcmp.gt.f32.partialorder %v1257, 0.0
      %vm1270 = vcmp.gt.f32.partialorder %v1260, 0.0
      %v1271 = vmul.f32 %v1233, 0.2
      %v1272 = vmul.f32 %v1236, 0.2
      %v1273 = vmul.f32 %v1241, 0.2
      %v1274 = vmul.f32 %v1244, 0.2
      %v1275 = vmul.f32 %v1249, 0.2
      %v1276 = vmul.f32 %v1252, 0.2
      %v1277 = vmul.f32 %v1257, 0.2
      %v1278 = vmul.f32 %v1260, 0.2
      %v1279 = vsel %vm1263, %v1233, %v1271
      %v1280 = vsel %vm1264, %v1236, %v1272
      %v1281 = vsel %vm1265, %v1241, %v1273
      %v1282 = vsel %vm1266, %v1244, %v1274
      %v1283 = vsel %vm1267, %v1249, %v1275
      %v1284 = vsel %vm1268, %v1252, %v1276
      %v1285 = vsel %vm1269, %v1257, %v1277
      %v1286 = vsel %vm1270, %v1260, %v1278
      %v1287 = vpack.c.bf16 %v1279, %v1279
      %v1288 = vpack.c.bf16 %v1280, %v1280
      %v1289 = vpack.c.bf16 %v1281, %v1281
      %v1290 = vpack.c.bf16 %v1282, %v1282
      %v1291 = vpack.c.bf16 %v1283, %v1283
      %v1292 = vpack.c.bf16 %v1284, %v1284
      %v1293 = vpack.c.bf16 %v1285, %v1285
      %v1294 = vpack.c.bf16 %v1286, %v1286
      %1295 = vst [vmem:[%s192] sm:$0xf] %v1287
      %1296 = vst [vmem:[%s192 + $0x4] sm:$0xf] %v1288
      %1297 = vst [vmem:[%s192 + $0x8] sm:$0xf] %v1289
      %1298 = vst [vmem:[%s192 + $0xc] sm:$0xf] %v1290
      %1299 = vst [vmem:[%s192 + $0x10] sm:$0xf] %v1291
      %1300 = vst [vmem:[%s192 + $0x14] sm:$0xf] %v1292
      %1301 = vst [vmem:[%s192 + $0x18] sm:$0xf] %v1293
      %1302 = vst [vmem:[%s192 + $0x1c] sm:$0xf] %v1294
      %s1303 = smul.u32 8, %s19
      %p1304 = scmp.lt.s32.totalorder %s18, 1
      %s1305 = scalar_select %p1304, %s18, 1
      %p1306 = scmp.lt.s32.totalorder %s1303, 7
      %s1307 = scalar_select %p1306, %s1303, 7
      %s1308 = smul.addr %s1305, 8
      %s1309 = sadd.s32 %s1307, %s1308
      %s1310 = smul.addr %s1309, 4
      %s1311 = scalar_lea.vmem %s3, %s1310
      // Predicated region
      $region33: #{decoder_forward.8} parent=31 // pred_check
        %p1312 = pneg %p114
      $region34: #{decoder_forward.8} parent=31 // pred_check_branch
        %1314 = sbr.rel (%p1312) target = $region36
      $region35: #{decoder_forward.8} parent=31 // pred_region
        %s1315 = smul.u32 8, %s19
      $region36: #{decoder_forward.8} parent=31 // pred_fallthru
        _
    $region32: #{decoder_forward.8} parent=5 // pred_fallthru
      _
    %p1316 = scmp.le.s32.totalorder 2, %s9
    // Predicated region
    $region37: #{decoder_forward.8} parent=5 // pred_check
      %p1317 = pneg %p1316
    $region38: #{decoder_forward.8} parent=5 // pred_check_branch
      %1319 = sbr.rel (%p1317) target = $region40
    $region39: #{decoder_forward.8} parent=5 // pred_region
      %s1320 = ssub.s32 %s9, 2
      // Predicated region
      $region41: #{decoder_forward.8} parent=39 // pred_check
        %p1321 = pneg %p120
      $region42: #{decoder_forward.8} parent=39 // pred_check_branch
        %1323 = sbr.rel (%p1321) target = $region44
      $region43: #{decoder_forward.8} parent=39 // pred_region
        %s1324 = smul.u32 8, %s21
        %p1325 = scmp.lt.s32.totalorder %s20, 1
        %s1326 = scalar_select %p1325, %s20, 1
        %p1327 = scmp.lt.s32.totalorder %s1324, 7
        %s1328 = scalar_select %p1327, %s1324, 7
        %s1329 = smul.addr %s1326, 8
        %s1330 = sadd.s32 %s1328, %s1329
        %s1331 = smul.addr %s1330, 4
        %s1332 = scalar_lea.vmem %s3, %s1331
      $region44: #{decoder_forward.8} parent=39 // pred_fallthru
        _
    $region40: #{decoder_forward.8} parent=5 // pred_fallthru
      _
  $region6: #{decoder_forward.8} parent=0 // loop_footer
    %s13 = sadd.s32 1, %s9
  $region7: #{decoder_forward.8} parent=0 // loop_footer_branch
    %8 = sbr.rel target = $region3
  $region8: #{decoder_forward.8} parent=0 // loop_exit
    _

// kernel: decoder_forward.9
$region0: #{decoder_forward.9}
  #allocation0 [shape = 'u32[]', space=smem, size = 0x4, offset = 0x4, fixed_abs, tag = 'smem constant byte address 0x4 - core index']
  #allocation1 [shape = 'u32[144,128]{1,0:T(1,128)}', space=vmem, size = 0x12000, scoped, tag = 'internal scratch']
  %s0 = inlined_call_operand.vmem [shape: bf16[2,10,18,128], index: 0, kind: input, shape index: {}]
  %s1 = inlined_call_operand.vmem [shape: bf16[1152,128], index: 1, kind: input, shape index: {}]
  %s2 = inlined_call_operand.vmem [shape: f32[1,128], index: 2, kind: input, shape index: {}]
  %s3 = inlined_call_operand.vmem [shape: f32[2,16,16,128], index: 3, kind: output, shape index: {}]
  %s4 = sld [smem:[#allocation0]]
  $region45: #{decoder_forward.9} parent=0
    _
  %s6 = ssub.s32 1, %s4
  %s7 = scalar_select 0, %s6, %s4
  loop: start=0, step=1, limit=6
  $region2: #{decoder_forward.9} parent=0 // loop_pre_header
    _
  $region3: #{decoder_forward.9} parent=0 // loop_header
    %s9 = sphi 0, %s13
    %p10 = scmp.ge.s32.totalorder %s9, 6
    %s16 = sphi 0, %s28
    %s17 = sphi 0, %s24
    %s18 = sphi 0, %s16
    %s19 = sphi 0, %s17
    %s20 = sphi 0, %s18
    %s21 = sphi 0, %s19
    %s31 = sphi 0, %s33
    %s34 = sphi 0, %s31
    %s35 = sphi 0, %s34
    %s51 = sphi 0, %s35
    %s55 = sphi 0, %s55
    %s57 = sphi 0, %s55
    %s58 = sphi 0, %s57
    %s72 = sphi 0, %s58
    %s76 = sphi 0, %s76
    %s78 = sphi 0, %s76
    %s79 = sphi 0, %s78
    %s93 = sphi 0, %s79
    %s101 = sphi 0, %s103
    %s104 = sphi 0, %s101
    %s105 = sphi 0, %s104
    %s121 = sphi 0, %s105
  $region4: #{decoder_forward.9} parent=0 // loop_header_branch
    %12 = sbr.rel (%p10) target = $region8
  $region5: #{decoder_forward.9} parent=0 // loop_body
    %s14 = ssub.s32 %s9, 1
    %s15 = ssub.s32 %s9, 2
    %s22 = sadd.s32 1, %s17
    %p23 = scmp.ge.s32.totalorder %s22, 2
    %s24 = scalar_select %p23, 0, %s22
    %s25 = sadd.s32 1, %s16
    %s26 = scalar_select %p23, %s25, %s16
    %p27 = scmp.ge.s32.totalorder %s26, 2
    %s28 = scalar_select %p27, 0, %s26
    %s29 = ssub.s32 %s16, %s28
    %p30 = scmp.eq.s32.totalorder %s29, 0
    %s32 = sadd.s32 %s31, 1
    %s33 = scalar_select %p30, %s31, %s32
    %p36 = pneg %p30
    %p37 = scmp.eq.s32.totalorder %s9, 3
    %p38 = por %p36, %p37
    %p39 = scmp.ne.s32.totalorder %s31, %s34
    %p40 = scmp.eq.s32.totalorder %s9, 0
    %p41 = por %p39, %p40
    %p42 = scmp.ne.s32.totalorder %s31, %s34
    %p43 = scmp.eq.s32.totalorder %s14, 3
    %p44 = por %p42, %p43
    %p45 = scmp.ne.s32.totalorder %s34, %s35
    %p46 = scmp.eq.s32.totalorder %s14, 0
    %p47 = por %p45, %p46
    %p48 = scmp.ne.s32.totalorder %s34, %s35
    %p49 = scmp.eq.s32.totalorder %s15, 3
    %p50 = por %p48, %p49
    %p52 = scmp.ne.s32.totalorder %s35, %s51
    %p53 = scmp.eq.s32.totalorder %s15, 0
    %p54 = por %p52, %p53
    %s56 = sadd.s32 %s55, 1
    %p59 = scmp.eq.s32.totalorder %s9, 3
    %p60 = scmp.ne.s32.totalorder %s55, %s57
    %p61 = scmp.eq.s32.totalorder %s9, 0
    %p62 = por %p60, %p61
    %p63 = scmp.ne.s32.totalorder %s55, %s57
    %p64 = scmp.eq.s32.totalorder %s14, 3
    %p65 = por %p63, %p64
    %p66 = scmp.ne.s32.totalorder %s57, %s58
    %p67 = scmp.eq.s32.totalorder %s14, 0
    %p68 = por %p66, %p67
    %p69 = scmp.ne.s32.totalorder %s57, %s58
    %p70 = scmp.eq.s32.totalorder %s15, 3
    %p71 = por %p69, %p70
    %p73 = scmp.ne.s32.totalorder %s58, %s72
    %p74 = scmp.eq.s32.totalorder %s15, 0
    %p75 = por %p73, %p74
    %s77 = sadd.s32 %s76, 1
    %p80 = scmp.eq.s32.totalorder %s9, 3
    %p81 = scmp.ne.s32.totalorder %s76, %s78
    %p82 = scmp.eq.s32.totalorder %s9, 0
    %p83 = por %p81, %p82
    %p84 = scmp.ne.s32.totalorder %s76, %s78
    %p85 = scmp.eq.s32.totalorder %s14, 3
    %p86 = por %p84, %p85
    %p87 = scmp.ne.s32.totalorder %s78, %s79
    %p88 = scmp.eq.s32.totalorder %s14, 0
    %p89 = por %p87, %p88
    %p90 = scmp.ne.s32.totalorder %s78, %s79
    %p91 = scmp.eq.s32.totalorder %s15, 3
    %p92 = por %p90, %p91
    %p94 = scmp.ne.s32.totalorder %s79, %s93
    %p95 = scmp.eq.s32.totalorder %s15, 0
    %p96 = por %p94, %p95
    %s97 = ssub.s32 %s16, %s28
    %s98 = ssub.s32 %s17, %s24
    %s99 = sor.u32 %s97, %s98
    %p100 = scmp.eq.s32.totalorder %s99, 0
    %s102 = sadd.s32 %s101, 1
    %s103 = scalar_select %p100, %s101, %s102
    %p106 = pneg %p100
    %p107 = scmp.eq.s32.totalorder %s9, 3
    %p108 = por %p106, %p107
    %p109 = scmp.ne.s32.totalorder %s101, %s104
    %p110 = scmp.eq.s32.totalorder %s9, 0
    %p111 = por %p109, %p110
    %p112 = scmp.ne.s32.totalorder %s101, %s104
    %p113 = scmp.eq.s32.totalorder %s14, 3
    %p114 = por %p112, %p113
    %p115 = scmp.ne.s32.totalorder %s104, %s105
    %p116 = scmp.eq.s32.totalorder %s14, 0
    %p117 = por %p115, %p116
    %p118 = scmp.ne.s32.totalorder %s104, %s105
    %p119 = scmp.eq.s32.totalorder %s15, 3
    %p120 = por %p118, %p119
    %p122 = scmp.ne.s32.totalorder %s105, %s121
    %p123 = scmp.eq.s32.totalorder %s15, 0
    %p124 = por %p122, %p123
    %p125 = scmp.le.s32.totalorder 1, %s9
    %p126 = scmp.lt.s32.totalorder %s9, 5
    %p127 = pnand %p125, %p126
    %p128 = pneg %p127
    // Predicated region
    $region9: #{decoder_forward.9} parent=5 // pred_check
      _
    $region10: #{decoder_forward.9} parent=5 // pred_check_branch
      %130 = sbr.rel (%p127) target = $region12
    $region11: #{decoder_forward.9} parent=5 // pred_region
      %s131 = ssub.s32 %s9, 1
      // Predicated region
      $region13: #{decoder_forward.9} parent=11 // pred_check
        %p132 = pneg %p68
      $region14: #{decoder_forward.9} parent=11 // pred_check_branch
        %134 = sbr.rel (%p132) target = $region16
      $region15: #{decoder_forward.9} parent=11 // pred_region
        _
      $region16: #{decoder_forward.9} parent=11 // pred_fallthru
        _
      // Predicated region
      $region17: #{decoder_forward.9} parent=11 // pred_check
        %p135 = pneg %p89
      $region18: #{decoder_forward.9} parent=11 // pred_check_branch
        %137 = sbr.rel (%p135) target = $region20
      $region19: #{decoder_forward.9} parent=11 // pred_region
        _
      $region20: #{decoder_forward.9} parent=11 // pred_fallthru
        _
    $region12: #{decoder_forward.9} parent=5 // pred_fallthru
      _
    %p138 = scmp.lt.s32.totalorder %s9, 4
    // Predicated region
    $region21: #{decoder_forward.9} parent=5 // pred_check
      %p139 = pneg %p138
    $region22: #{decoder_forward.9} parent=5 // pred_check_branch
      %141 = sbr.rel (%p139) target = $region24
    $region23: #{decoder_forward.9} parent=5 // pred_region
      // Predicated region
      $region25: #{decoder_forward.9} parent=23 // pred_check
        %p142 = pneg %p41
      $region26: #{decoder_forward.9} parent=23 // pred_check_branch
        %144 = sbr.rel (%p142) target = $region28
      $region27: #{decoder_forward.9} parent=23 // pred_region
        %p145 = scmp.lt.s32.totalorder %s16, 1
        %s146 = scalar_select %p145, %s16, 1
        %s147 = smul.addr %s146, 30
        %s148 = smul.addr %s147, 4
        %s149 = scalar_lea.vmem %s0, %s148
      $region28: #{decoder_forward.9} parent=23 // pred_fallthru
        _
    $region24: #{decoder_forward.9} parent=5 // pred_fallthru
      _
    %p150 = scmp.le.s32.totalorder 1, %s9
    %p151 = scmp.lt.s32.totalorder %s9, 5
    %p152 = pnand %p150, %p151
    %p153 = pneg %p152
    // Predicated region
    $region29: #{decoder_forward.9} parent=5 // pred_check
      _
    $region30: #{decoder_forward.9} parent=5 // pred_check_branch
      %155 = sbr.rel (%p152) target = $region32
    $region31: #{decoder_forward.9} parent=5 // pred_region
      %s156 = ssub.s32 %s9, 1
      %p157 = scmp.lt.s32.totalorder %s18, 1
      %s158 = scalar_select %p157, %s18, 1
      %s159 = smul.addr %s158, 30
      %s160 = smul.addr %s159, 4
      %s161 = scalar_lea.vmem %s0, %s160
      %p162 = pneg %p47
      %p163 = pneg %p44
      %p164 = pneg %p68
      %p165 = pneg %p65
      %p166 = pneg %p89
      %p167 = pneg %p86
      %p168 = pneg %p117
      %p169 = pneg %p114
      %s170 = smul.u32 8, %s19
      %p171 = scmp.lt.s32.totalorder %s18, 1
      %s172 = scalar_select %p171, %s18, 1
      %p173 = scmp.lt.s32.totalorder %s170, 15
      %s174 = scalar_select %p173, %s170, 15
      %s175 = smul.addr %s174, 2
      %s176 = smul.addr %s172, 32
      %s177 = sadd.s32 %s175, %s176
      %s178 = smul.addr %s177, 8
      %s179 = scalar_lea.vmem %s3, %s178
      %p180 = scmp.lt.s32.totalorder %s18, 1
      %s181 = scalar_select %p180, %s18, 1
      %s182 = smul.addr %s181, 30
      %s183 = smul.addr %s182, 4
      %s184 = scalar_lea.vmem %s0, %s183
      %s185 = smul.u32 8, %s19
      %p186 = scmp.lt.s32.totalorder %s18, 1
      %s187 = scalar_select %p186, %s18, 1
      %p188 = scmp.lt.s32.totalorder %s185, 15
      %s189 = scalar_select %p188, %s185, 15
      %s190 = smul.addr %s189, 2
      %s191 = smul.addr %s187, 32
      %s192 = sadd.s32 %s190, %s191
      %s193 = smul.addr %s192, 8
      %s194 = scalar_lea.vmem %s3, %s193
      %s195 = smul.u32 8, %s19
      %s197 = smul.u32 %s19, 4
      %s198 = smul.u32 %s197, 3
      %s199 = smul.addr %s198, 4
      %s200 = scalar_lea.vmem %s184, %s199
      %v201 = vld [vmem:[%s200] sm:$0xf]
      %v202 = vld [vmem:[%s200 + $0x4] sm:$0xf]
      %v203 = vld [vmem:[%s200 + $0x8] sm:$0x1]
      %v204 = vld [vmem:[%s200 + $0xc] sm:$0xf]
      %v205 = vld [vmem:[%s200 + $0x10] sm:$0xf]
      %v206 = vld [vmem:[%s200 + $0x14] sm:$0x1]
      %v207 = vld [vmem:[%s200 + $0x18] sm:$0xf]
      %v208 = vld [vmem:[%s200 + $0x1c] sm:$0xf]
      %v209 = vld [vmem:[%s200 + $0x20] sm:$0x1]
      %v210 = vld [vmem:[%s200 + $0x24] sm:$0xf]
      %v211 = vld [vmem:[%s200 + $0x28] sm:$0xf]
      %v212 = vld [vmem:[%s200 + $0x2c] sm:$0x1]
      %v213 = vld [vmem:[%s200 + $0x30] sm:$0xf]
      %v214 = vld [vmem:[%s200 + $0x34] sm:$0xf]
      %v215 = vld [vmem:[%s200 + $0x38] sm:$0x1]
      %v216 = vld [vmem:[%s200 + $0x3c] sm:$0xf]
      %v217 = vld [vmem:[%s200 + $0x40] sm:$0xf]
      %v218 = vld [vmem:[%s200 + $0x44] sm:$0x1]
      %v229 = vunpack.c.l.b16 %v201
      %v230 = vunpack.c.l.b16 %v202
      %v231 = vunpack.c.l.b16 %v204
      %v232 = vunpack.c.l.b16 %v205
      %v233 = vunpack.c.l.b16 %v207
      %v234 = vunpack.c.l.b16 %v208
      %v235 = vunpack.c.l.b16 %v210
      %v236 = vunpack.c.l.b16 %v211
      %v237 = vunpack.c.l.b16 %v213
      %v238 = vunpack.c.l.b16 %v214
      %v239 = vpack.c.b16 %v230, %v229
      %v240 = vpack.c.b16 %v232, %v231
      %v241 = vpack.c.b16 %v234, %v233
      %v242 = vpack.c.b16 %v236, %v235
      %v243 = vpack.c.b16 %v238, %v237
      %v254 = vunpack.c.l.b16 %v203
      %v255 = vunpack.c.l.b16 %v206
      %v256 = vunpack.c.l.b16 %v209
      %v257 = vunpack.c.l.b16 %v212
      %v258 = vunpack.c.l.b16 %v215
      %v259 = vpack.c.b16 %v254, %v254
      %v260 = vpack.c.b16 %v255, %v255
      %v261 = vpack.c.b16 %v256, %v256
      %v262 = vpack.c.b16 %v257, %v257
      %v263 = vpack.c.b16 %v258, %v258
      %vm264 = vsmask.f32 7424
      %v266 = vshrl.u32 %v239, 16
      %v268 = vshll.u32 %v239, 16
      %v270 = vrot.slane %v268, 1
      %v271 = vor.u32 %v266, %v270
      %v273 = vshll.u32 %v259, 16
      %v275 = vrot.slane %v273, 1
      %v276 = vsel %vm264, %v271, %v275
      %v278 = vshrl.u32 %v240, 16
      %v280 = vshll.u32 %v240, 16
      %v282 = vrot.slane %v280, 1
      %v283 = vor.u32 %v278, %v282
      %v285 = vshll.u32 %v260, 16
      %v287 = vrot.slane %v285, 1
      %v288 = vsel %vm264, %v283, %v287
      %v290 = vshrl.u32 %v241, 16
      %v292 = vshll.u32 %v241, 16
      %v294 = vrot.slane %v292, 1
      %v295 = vor.u32 %v290, %v294
      %v297 = vshll.u32 %v261, 16
      %v299 = vrot.slane %v297, 1
      %v300 = vsel %vm264, %v295, %v299
      %v302 = vshrl.u32 %v242, 16
      %v304 = vshll.u32 %v242, 16
      %v306 = vrot.slane %v304, 1
      %v307 = vor.u32 %v302, %v306
      %v309 = vshll.u32 %v262, 16
      %v311 = vrot.slane %v309, 1
      %v312 = vsel %vm264, %v307, %v311
      %v314 = vshrl.u32 %v243, 16
      %v316 = vshll.u32 %v243, 16
      %v318 = vrot.slane %v316, 1
      %v319 = vor.u32 %v314, %v318
      %v321 = vshll.u32 %v263, 16
      %v323 = vrot.slane %v321, 1
      %v324 = vsel %vm264, %v319, %v323
      %vm330 = vcmask 1046528
      %v331 = vrot.slane %v239, 1
      %v332 = vrot.slane %v259, 1
      %v333 = vsel %vm330, %v331, %v332
      %v334 = vrot.slane %v240, 1
      %v335 = vrot.slane %v260, 1
      %v336 = vsel %vm330, %v334, %v335
      %v337 = vrot.slane %v241, 1
      %v338 = vrot.slane %v261, 1
      %v339 = vsel %vm330, %v337, %v338
      %v340 = vrot.slane %v242, 1
      %v341 = vrot.slane %v262, 1
      %v342 = vsel %vm330, %v340, %v341
      %v343 = vrot.slane %v243, 1
      %v344 = vrot.slane %v263, 1
      %v345 = vsel %vm330, %v343, %v344
      %v353 = vunpack.c.l.b16 %v216
      %v354 = vunpack.c.l.b16 %v217
      %v355 = vpack.c.b16 %v354, %v353
      %v358 = vunpack.c.l.b16 %v218
      %v359 = vpack.c.b16 %v358, %v358
      %v361 = vshrl.u32 %v355, 16
      %v363 = vshll.u32 %v355, 16
      %v365 = vrot.slane %v363, 1
      %v366 = vor.u32 %v361, %v365
      %v368 = vshll.u32 %v359, 16
      %v370 = vrot.slane %v368, 1
      %v371 = vsel %vm264, %v366, %v370
      %v373 = vrot.slane %v355, 1
      %v374 = vrot.slane %v359, 1
      %v375 = vsel %vm330, %v373, %v374
      %v377 = vld [vmem:[%s1] sm:$0xf]
      %v378 = vld [vmem:[%s1 + $0x4] sm:$0xf]
      %v379 = vld [vmem:[%s1 + $0x8] sm:$0xf]
      %v380 = vld [vmem:[%s1 + $0xc] sm:$0xf]
      %v381 = vld [vmem:[%s1 + $0x10] sm:$0xf]
      %v382 = vld [vmem:[%s1 + $0x14] sm:$0xf]
      %v383 = vld [vmem:[%s1 + $0x18] sm:$0xf]
      %v384 = vld [vmem:[%s1 + $0x1c] sm:$0xf]
      %v385 = vld [vmem:[%s1 + $0x20] sm:$0xf]
      %v386 = vld [vmem:[%s1 + $0x24] sm:$0xf]
      %v387 = vld [vmem:[%s1 + $0x28] sm:$0xf]
      %v388 = vld [vmem:[%s1 + $0x2c] sm:$0xf]
      %v389 = vld [vmem:[%s1 + $0x30] sm:$0xf]
      %v390 = vld [vmem:[%s1 + $0x34] sm:$0xf]
      %v391 = vld [vmem:[%s1 + $0x38] sm:$0xf]
      %v392 = vld [vmem:[%s1 + $0x3c] sm:$0xf]
      %v393 = vld [vmem:[%s1 + $0x40] sm:$0xf]
      %v394 = vld [vmem:[%s1 + $0x44] sm:$0xf]
      %v395 = vld [vmem:[%s1 + $0x48] sm:$0xf]
      %v396 = vld [vmem:[%s1 + $0x4c] sm:$0xf]
      %v397 = vld [vmem:[%s1 + $0x50] sm:$0xf]
      %v398 = vld [vmem:[%s1 + $0x54] sm:$0xf]
      %v399 = vld [vmem:[%s1 + $0x58] sm:$0xf]
      %v400 = vld [vmem:[%s1 + $0x5c] sm:$0xf]
      %v401 = vld [vmem:[%s1 + $0x60] sm:$0xf]
      %v402 = vld [vmem:[%s1 + $0x64] sm:$0xf]
      %v403 = vld [vmem:[%s1 + $0x68] sm:$0xf]
      %v404 = vld [vmem:[%s1 + $0x6c] sm:$0xf]
      %v405 = vld [vmem:[%s1 + $0x70] sm:$0xf]
      %v406 = vld [vmem:[%s1 + $0x74] sm:$0xf]
      %v407 = vld [vmem:[%s1 + $0x78] sm:$0xf]
      %v408 = vld [vmem:[%s1 + $0x7c] sm:$0xf]
      %v409 = vld [vmem:[%s1 + $0x80] sm:$0xf]
      %v410 = vld [vmem:[%s1 + $0x84] sm:$0xf]
      %v411 = vld [vmem:[%s1 + $0x88] sm:$0xf]
      %v412 = vld [vmem:[%s1 + $0x8c] sm:$0xf]
      %v413 = vld [vmem:[%s1 + $0x90] sm:$0xf]
      %v414 = vld [vmem:[%s1 + $0x94] sm:$0xf]
      %v415 = vld [vmem:[%s1 + $0x98] sm:$0xf]
      %v416 = vld [vmem:[%s1 + $0x9c] sm:$0xf]
      %v417 = vld [vmem:[%s1 + $0xa0] sm:$0xf]
      %v418 = vld [vmem:[%s1 + $0xa4] sm:$0xf]
      %v419 = vld [vmem:[%s1 + $0xa8] sm:$0xf]
      %v420 = vld [vmem:[%s1 + $0xac] sm:$0xf]
      %v421 = vld [vmem:[%s1 + $0xb0] sm:$0xf]
      %v422 = vld [vmem:[%s1 + $0xb4] sm:$0xf]
      %v423 = vld [vmem:[%s1 + $0xb8] sm:$0xf]
      %v424 = vld [vmem:[%s1 + $0xbc] sm:$0xf]
      %v425 = vld [vmem:[%s1 + $0xc0] sm:$0xf]
      %v426 = vld [vmem:[%s1 + $0xc4] sm:$0xf]
      %v427 = vld [vmem:[%s1 + $0xc8] sm:$0xf]
      %v428 = vld [vmem:[%s1 + $0xcc] sm:$0xf]
      %v429 = vld [vmem:[%s1 + $0xd0] sm:$0xf]
      %v430 = vld [vmem:[%s1 + $0xd4] sm:$0xf]
      %v431 = vld [vmem:[%s1 + $0xd8] sm:$0xf]
      %v432 = vld [vmem:[%s1 + $0xdc] sm:$0xf]
      %v433 = vld [vmem:[%s1 + $0xe0] sm:$0xf]
      %v434 = vld [vmem:[%s1 + $0xe4] sm:$0xf]
      %v435 = vld [vmem:[%s1 + $0xe8] sm:$0xf]
      %v436 = vld [vmem:[%s1 + $0xec] sm:$0xf]
      %v437 = vld [vmem:[%s1 + $0xf0] sm:$0xf]
      %v438 = vld [vmem:[%s1 + $0xf4] sm:$0xf]
      %v439 = vld [vmem:[%s1 + $0xf8] sm:$0xf]
      %v440 = vld [vmem:[%s1 + $0xfc] sm:$0xf]
      %v441 = vld [vmem:[%s1 + $0x100] sm:$0xf]
      %v442 = vld [vmem:[%s1 + $0x104] sm:$0xf]
      %v443 = vld [vmem:[%s1 + $0x108] sm:$0xf]
      %v444 = vld [vmem:[%s1 + $0x10c] sm:$0xf]
      %v445 = vld [vmem:[%s1 + $0x110] sm:$0xf]
      %v446 = vld [vmem:[%s1 + $0x114] sm:$0xf]
      %v447 = vld [vmem:[%s1 + $0x118] sm:$0xf]
      %v448 = vld [vmem:[%s1 + $0x11c] sm:$0xf]
      %v449 = vld [vmem:[%s1 + $0x120] sm:$0xf]
      %v450 = vld [vmem:[%s1 + $0x124] sm:$0xf]
      %v451 = vld [vmem:[%s1 + $0x128] sm:$0xf]
      %v452 = vld [vmem:[%s1 + $0x12c] sm:$0xf]
      %v453 = vld [vmem:[%s1 + $0x130] sm:$0xf]
      %v454 = vld [vmem:[%s1 + $0x134] sm:$0xf]
      %v455 = vld [vmem:[%s1 + $0x138] sm:$0xf]
      %v456 = vld [vmem:[%s1 + $0x13c] sm:$0xf]
      %v457 = vld [vmem:[%s1 + $0x140] sm:$0xf]
      %v458 = vld [vmem:[%s1 + $0x144] sm:$0xf]
      %v459 = vld [vmem:[%s1 + $0x148] sm:$0xf]
      %v460 = vld [vmem:[%s1 + $0x14c] sm:$0xf]
      %v461 = vld [vmem:[%s1 + $0x150] sm:$0xf]
      %v462 = vld [vmem:[%s1 + $0x154] sm:$0xf]
      %v463 = vld [vmem:[%s1 + $0x158] sm:$0xf]
      %v464 = vld [vmem:[%s1 + $0x15c] sm:$0xf]
      %v465 = vld [vmem:[%s1 + $0x160] sm:$0xf]
      %v466 = vld [vmem:[%s1 + $0x164] sm:$0xf]
      %v467 = vld [vmem:[%s1 + $0x168] sm:$0xf]
      %v468 = vld [vmem:[%s1 + $0x16c] sm:$0xf]
      %v469 = vld [vmem:[%s1 + $0x170] sm:$0xf]
      %v470 = vld [vmem:[%s1 + $0x174] sm:$0xf]
      %v471 = vld [vmem:[%s1 + $0x178] sm:$0xf]
      %v472 = vld [vmem:[%s1 + $0x17c] sm:$0xf]
      %v473 = vld [vmem:[%s1 + $0x180] sm:$0xf]
      %v474 = vld [vmem:[%s1 + $0x184] sm:$0xf]
      %v475 = vld [vmem:[%s1 + $0x188] sm:$0xf]
      %v476 = vld [vmem:[%s1 + $0x18c] sm:$0xf]
      %v477 = vld [vmem:[%s1 + $0x190] sm:$0xf]
      %v478 = vld [vmem:[%s1 + $0x194] sm:$0xf]
      %v479 = vld [vmem:[%s1 + $0x198] sm:$0xf]
      %v480 = vld [vmem:[%s1 + $0x19c] sm:$0xf]
      %v481 = vld [vmem:[%s1 + $0x1a0] sm:$0xf]
      %v482 = vld [vmem:[%s1 + $0x1a4] sm:$0xf]
      %v483 = vld [vmem:[%s1 + $0x1a8] sm:$0xf]
      %v484 = vld [vmem:[%s1 + $0x1ac] sm:$0xf]
      %v485 = vld [vmem:[%s1 + $0x1b0] sm:$0xf]
      %v486 = vld [vmem:[%s1 + $0x1b4] sm:$0xf]
      %v487 = vld [vmem:[%s1 + $0x1b8] sm:$0xf]
      %v488 = vld [vmem:[%s1 + $0x1bc] sm:$0xf]
      %v489 = vld [vmem:[%s1 + $0x1c0] sm:$0xf]
      %v490 = vld [vmem:[%s1 + $0x1c4] sm:$0xf]
      %v491 = vld [vmem:[%s1 + $0x1c8] sm:$0xf]
      %v492 = vld [vmem:[%s1 + $0x1cc] sm:$0xf]
      %v493 = vld [vmem:[%s1 + $0x1d0] sm:$0xf]
      %v494 = vld [vmem:[%s1 + $0x1d4] sm:$0xf]
      %v495 = vld [vmem:[%s1 + $0x1d8] sm:$0xf]
      %v496 = vld [vmem:[%s1 + $0x1dc] sm:$0xf]
      %v497 = vld [vmem:[%s1 + $0x1e0] sm:$0xf]
      %v498 = vld [vmem:[%s1 + $0x1e4] sm:$0xf]
      %v499 = vld [vmem:[%s1 + $0x1e8] sm:$0xf]
      %v500 = vld [vmem:[%s1 + $0x1ec] sm:$0xf]
      %v501 = vld [vmem:[%s1 + $0x1f0] sm:$0xf]
      %v502 = vld [vmem:[%s1 + $0x1f4] sm:$0xf]
      %v503 = vld [vmem:[%s1 + $0x1f8] sm:$0xf]
      %v504 = vld [vmem:[%s1 + $0x1fc] sm:$0xf]
      %v505 = vld [vmem:[%s1 + $0x200] sm:$0xf]
      %v506 = vld [vmem:[%s1 + $0x204] sm:$0xf]
      %v507 = vld [vmem:[%s1 + $0x208] sm:$0xf]
      %v508 = vld [vmem:[%s1 + $0x20c] sm:$0xf]
      %v509 = vld [vmem:[%s1 + $0x210] sm:$0xf]
      %v510 = vld [vmem:[%s1 + $0x214] sm:$0xf]
      %v511 = vld [vmem:[%s1 + $0x218] sm:$0xf]
      %v512 = vld [vmem:[%s1 + $0x21c] sm:$0xf]
      %v513 = vld [vmem:[%s1 + $0x220] sm:$0xf]
      %v514 = vld [vmem:[%s1 + $0x224] sm:$0xf]
      %v515 = vld [vmem:[%s1 + $0x228] sm:$0xf]
      %v516 = vld [vmem:[%s1 + $0x22c] sm:$0xf]
      %v517 = vld [vmem:[%s1 + $0x230] sm:$0xf]
      %v518 = vld [vmem:[%s1 + $0x234] sm:$0xf]
      %v519 = vld [vmem:[%s1 + $0x238] sm:$0xf]
      %v520 = vld [vmem:[%s1 + $0x23c] sm:$0xf]
      %v521 = vld [vmem:[%s2] sm:$0x1]
      %v523 = vlaneseq
      %v524 = vshrl.u32 %v523, 7
      %v525 = vsub.s32 0, %v524
      %v526 = vrot.slane %v521, %v525
      %v672 = vunpack.c.l.b16 %v377
      %v673 = vunpack.c.l.b16 %v378
      %v674 = vunpack.c.l.b16 %v379
      %v675 = vunpack.c.l.b16 %v380
      %v676 = vunpack.c.l.b16 %v381
      %v677 = vunpack.c.l.b16 %v382
      %v678 = vunpack.c.l.b16 %v383
      %v679 = vunpack.c.l.b16 %v384
      %v680 = vunpack.c.l.b16 %v385
      %v681 = vunpack.c.l.b16 %v386
      %v682 = vunpack.c.l.b16 %v387
      %v683 = vunpack.c.l.b16 %v388
      %v684 = vunpack.c.l.b16 %v389
      %v685 = vunpack.c.l.b16 %v390
      %v686 = vunpack.c.l.b16 %v391
      %v687 = vunpack.c.l.b16 %v392
      %v688 = vunpack.c.l.b16 %v393
      %v689 = vunpack.c.l.b16 %v394
      %v690 = vunpack.c.l.b16 %v395
      %v691 = vunpack.c.l.b16 %v396
      %v692 = vunpack.c.l.b16 %v397
      %v693 = vunpack.c.l.b16 %v398
      %v694 = vunpack.c.l.b16 %v399
      %v695 = vunpack.c.l.b16 %v400
      %v696 = vunpack.c.l.b16 %v401
      %v697 = vunpack.c.l.b16 %v402
      %v698 = vunpack.c.l.b16 %v403
      %v699 = vunpack.c.l.b16 %v404
      %v700 = vunpack.c.l.b16 %v405
      %v701 = vunpack.c.l.b16 %v406
      %v702 = vunpack.c.l.b16 %v407
      %v703 = vunpack.c.l.b16 %v408
      %v704 = vunpack.c.l.b16 %v409
      %v705 = vunpack.c.l.b16 %v410
      %v706 = vunpack.c.l.b16 %v411
      %v707 = vunpack.c.l.b16 %v412
      %v708 = vunpack.c.l.b16 %v413
      %v709 = vunpack.c.l.b16 %v414
      %v710 = vunpack.c.l.b16 %v415
      %v711 = vunpack.c.l.b16 %v416
      %v712 = vunpack.c.l.b16 %v417
      %v713 = vunpack.c.l.b16 %v418
      %v714 = vunpack.c.l.b16 %v419
      %v715 = vunpack.c.l.b16 %v420
      %v716 = vunpack.c.l.b16 %v421
      %v717 = vunpack.c.l.b16 %v422
      %v718 = vunpack.c.l.b16 %v423
      %v719 = vunpack.c.l.b16 %v424
      %v720 = vunpack.c.l.b16 %v425
      %v721 = vunpack.c.l.b16 %v426
      %v722 = vunpack.c.l.b16 %v427
      %v723 = vunpack.c.l.b16 %v428
      %v724 = vunpack.c.l.b16 %v429
      %v725 = vunpack.c.l.b16 %v430
      %v726 = vunpack.c.l.b16 %v431
      %v727 = vunpack.c.l.b16 %v432
      %v728 = vunpack.c.l.b16 %v433
      %v729 = vunpack.c.l.b16 %v434
      %v730 = vunpack.c.l.b16 %v435
      %v731 = vunpack.c.l.b16 %v436
      %v732 = vunpack.c.l.b16 %v437
      %v733 = vunpack.c.l.b16 %v438
      %v734 = vunpack.c.l.b16 %v439
      %v735 = vunpack.c.l.b16 %v440
      %v736 = vunpack.c.l.b16 %v441
      %v737 = vunpack.c.l.b16 %v442
      %v738 = vunpack.c.l.b16 %v443
      %v739 = vunpack.c.l.b16 %v444
      %v740 = vunpack.c.l.b16 %v445
      %v741 = vunpack.c.l.b16 %v446
      %v742 = vunpack.c.l.b16 %v447
      %v743 = vunpack.c.l.b16 %v448
      %v744 = vunpack.c.l.b16 %v449
      %v745 = vunpack.c.l.b16 %v450
      %v746 = vunpack.c.l.b16 %v451
      %v747 = vunpack.c.l.b16 %v452
      %v748 = vunpack.c.l.b16 %v453
      %v749 = vunpack.c.l.b16 %v454
      %v750 = vunpack.c.l.b16 %v455
      %v751 = vunpack.c.l.b16 %v456
      %v752 = vunpack.c.l.b16 %v457
      %v753 = vunpack.c.l.b16 %v458
      %v754 = vunpack.c.l.b16 %v459
      %v755 = vunpack.c.l.b16 %v460
      %v756 = vunpack.c.l.b16 %v461
      %v757 = vunpack.c.l.b16 %v462
      %v758 = vunpack.c.l.b16 %v463
      %v759 = vunpack.c.l.b16 %v464
      %v760 = vunpack.c.l.b16 %v465
      %v761 = vunpack.c.l.b16 %v466
      %v762 = vunpack.c.l.b16 %v467
      %v763 = vunpack.c.l.b16 %v468
      %v764 = vunpack.c.l.b16 %v469
      %v765 = vunpack.c.l.b16 %v470
      %v766 = vunpack.c.l.b16 %v471
      %v767 = vunpack.c.l.b16 %v472
      %v768 = vunpack.c.l.b16 %v473
      %v769 = vunpack.c.l.b16 %v474
      %v770 = vunpack.c.l.b16 %v475
      %v771 = vunpack.c.l.b16 %v476
      %v772 = vunpack.c.l.b16 %v477
      %v773 = vunpack.c.l.b16 %v478
      %v774 = vunpack.c.l.b16 %v479
      %v775 = vunpack.c.l.b16 %v480
      %v776 = vunpack.c.l.b16 %v481
      %v777 = vunpack.c.l.b16 %v482
      %v778 = vunpack.c.l.b16 %v483
      %v779 = vunpack.c.l.b16 %v484
      %v780 = vunpack.c.l.b16 %v485
      %v781 = vunpack.c.l.b16 %v486
      %v782 = vunpack.c.l.b16 %v487
      %v783 = vunpack.c.l.b16 %v488
      %v784 = vunpack.c.l.b16 %v489
      %v785 = vunpack.c.l.b16 %v490
      %v786 = vunpack.c.l.b16 %v491
      %v787 = vunpack.c.l.b16 %v492
      %v788 = vunpack.c.l.b16 %v493
      %v789 = vunpack.c.l.b16 %v494
      %v790 = vunpack.c.l.b16 %v495
      %v791 = vunpack.c.l.b16 %v496
      %v792 = vunpack.c.l.b16 %v497
      %v793 = vunpack.c.l.b16 %v498
      %v794 = vunpack.c.l.b16 %v499
      %v795 = vunpack.c.l.b16 %v500
      %v796 = vunpack.c.l.b16 %v501
      %v797 = vunpack.c.l.b16 %v502
      %v798 = vunpack.c.l.b16 %v503
      %v799 = vunpack.c.l.b16 %v504
      %v800 = vunpack.c.l.b16 %v505
      %v801 = vunpack.c.l.b16 %v506
      %v802 = vunpack.c.l.b16 %v507
      %v803 = vunpack.c.l.b16 %v508
      %v804 = vunpack.c.l.b16 %v509
      %v805 = vunpack.c.l.b16 %v510
      %v806 = vunpack.c.l.b16 %v511
      %v807 = vunpack.c.l.b16 %v512
      %v808 = vunpack.c.l.b16 %v513
      %v809 = vunpack.c.l.b16 %v514
      %v810 = vunpack.c.l.b16 %v515
      %v811 = vunpack.c.l.b16 %v516
      %v812 = vunpack.c.l.b16 %v517
      %v813 = vunpack.c.l.b16 %v518
      %v814 = vunpack.c.l.b16 %v519
      %v815 = vunpack.c.l.b16 %v520
      %v816 = vpack.c.b16 %v673, %v672
      %v817 = vpack.c.b16 %v675, %v674
      %v818 = vpack.c.b16 %v677, %v676
      %v819 = vpack.c.b16 %v679, %v678
      %v820 = vpack.c.b16 %v681, %v680
      %v821 = vpack.c.b16 %v683, %v682
      %v822 = vpack.c.b16 %v685, %v684
      %v823 = vpack.c.b16 %v687, %v686
      %v824 = vpack.c.b16 %v689, %v688
      %v825 = vpack.c.b16 %v691, %v690
      %v826 = vpack.c.b16 %v693, %v692
      %v827 = vpack.c.b16 %v695, %v694
      %v828 = vpack.c.b16 %v697, %v696
      %v829 = vpack.c.b16 %v699, %v698
      %v830 = vpack.c.b16 %v701, %v700
      %v831 = vpack.c.b16 %v703, %v702
      %v832 = vpack.c.b16 %v705, %v704
      %v833 = vpack.c.b16 %v707, %v706
      %v834 = vpack.c.b16 %v709, %v708
      %v835 = vpack.c.b16 %v711, %v710
      %v836 = vpack.c.b16 %v713, %v712
      %v837 = vpack.c.b16 %v715, %v714
      %v838 = vpack.c.b16 %v717, %v716
      %v839 = vpack.c.b16 %v719, %v718
      %v840 = vpack.c.b16 %v721, %v720
      %v841 = vpack.c.b16 %v723, %v722
      %v842 = vpack.c.b16 %v725, %v724
      %v843 = vpack.c.b16 %v727, %v726
      %v844 = vpack.c.b16 %v729, %v728
      %v845 = vpack.c.b16 %v731, %v730
      %v846 = vpack.c.b16 %v733, %v732
      %v847 = vpack.c.b16 %v735, %v734
      %v848 = vpack.c.b16 %v737, %v736
      %v849 = vpack.c.b16 %v739, %v738
      %v850 = vpack.c.b16 %v741, %v740
      %v851 = vpack.c.b16 %v743, %v742
      %v852 = vpack.c.b16 %v745, %v744
      %v853 = vpack.c.b16 %v747, %v746
      %v854 = vpack.c.b16 %v749, %v748
      %v855 = vpack.c.b16 %v751, %v750
      %v856 = vpack.c.b16 %v753, %v752
      %v857 = vpack.c.b16 %v755, %v754
      %v858 = vpack.c.b16 %v757, %v756
      %v859 = vpack.c.b16 %v759, %v758
      %v860 = vpack.c.b16 %v761, %v760
      %v861 = vpack.c.b16 %v763, %v762
      %v862 = vpack.c.b16 %v765, %v764
      %v863 = vpack.c.b16 %v767, %v766
      %v864 = vpack.c.b16 %v769, %v768
      %v865 = vpack.c.b16 %v771, %v770
      %v866 = vpack.c.b16 %v773, %v772
      %v867 = vpack.c.b16 %v775, %v774
      %v868 = vpack.c.b16 %v777, %v776
      %v869 = vpack.c.b16 %v779, %v778
      %v870 = vpack.c.b16 %v781, %v780
      %v871 = vpack.c.b16 %v783, %v782
      %v872 = vpack.c.b16 %v785, %v784
      %v873 = vpack.c.b16 %v787, %v786
      %v874 = vpack.c.b16 %v789, %v788
      %v875 = vpack.c.b16 %v791, %v790
      %v876 = vpack.c.b16 %v793, %v792
      %v877 = vpack.c.b16 %v795, %v794
      %v878 = vpack.c.b16 %v797, %v796
      %v879 = vpack.c.b16 %v799, %v798
      %v880 = vpack.c.b16 %v801, %v800
      %v881 = vpack.c.b16 %v803, %v802
      %v882 = vpack.c.b16 %v805, %v804
      %v883 = vpack.c.b16 %v807, %v806
      %v884 = vpack.c.b16 %v809, %v808
      %v885 = vpack.c.b16 %v811, %v810
      %v886 = vpack.c.b16 %v813, %v812
      %v887 = vpack.c.b16 %v815, %v814
      %960 = vmatprep.subr.bf16.mxu0 0
      %961 = vmatpush1.bf16.msra.mxu0 %v816
      %962 = vmatprep.subr.bf16.mxu0 0
      %963 = vmatpush1.bf16.msra.mxu0 %v817
      %964 = vmatprep.subr.bf16.mxu0 0
      %965 = vmatpush1.bf16.msra.mxu0 %v818
      %966 = vmatprep.subr.bf16.mxu0 0
      %967 = vmatpush1.bf16.msra.mxu0 %v819
      %968 = vmatprep.subr.bf16.mxu0 0
      %969 = vmatpush1.bf16.msra.mxu0 %v820
      %970 = vmatprep.subr.bf16.mxu0 0
      %971 = vmatpush1.bf16.msra.mxu0 %v821
      %972 = vmatprep.subr.bf16.mxu0 0
      %973 = vmatpush1.bf16.msra.mxu0 %v822
      %974 = vmatprep.subr.bf16.mxu0 0
      %975 = vmatpush1.bf16.msra.mxu0 %v823
      %976 = vmatprep.subr.bf16.mxu0 0
      %977 = vmatpush1.bf16.msra.mxu0 %v824
      %978 = vmatprep.subr.bf16.mxu0 0
      %979 = vmatpush1.bf16.msra.mxu0 %v825
      %980 = vmatprep.subr.bf16.mxu0 0
      %981 = vmatpush1.bf16.msra.mxu0 %v826
      %982 = vmatprep.subr.bf16.mxu0 0
      %983 = vmatpush1.bf16.msra.mxu0 %v827
      %984 = vmatprep.subr.bf16.mxu0 0
      %985 = vmatpush1.bf16.msra.mxu0 %v828
      %986 = vmatprep.subr.bf16.mxu0 0
      %987 = vmatpush1.bf16.msra.mxu0 %v829
      %988 = vmatprep.subr.bf16.mxu0 0
      %989 = vmatpush1.bf16.msra.mxu0 %v830
      %990 = vmatprep.subr.bf16.mxu0 0
      %991 = vmatpush1.bf16.msra.mxu0 %v831
      %992 = vmatprep.mubr.bf16.mxu0 %v276
      %993 = vmatmul.mubr.bf16.gmra.mrb[0].mxu0 %v239
      %v994 = vpop.f32.mrb[0].mxu0
      %v995 = vadd.f32 %v526, %v994
      %v996 = vpop.f32.mrb[0].mxu0
      %v997 = vpop.f32.mrb[0].mxu0
      %v998 = vadd.f32 %v526, %v997
      %v999 = vpop.f32.mrb[0].mxu0
      %1000 = vmatprep.mubr.bf16.mxu0 %v288
      %1001 = vmatmul.mubr.bf16.gmra.mrb[0].mxu0 %v240
      %v1002 = vpop.f32.mrb[0].mxu0
      %v1003 = vadd.f32 %v526, %v1002
      %v1004 = vpop.f32.mrb[0].mxu0
      %v1005 = vpop.f32.mrb[0].mxu0
      %v1006 = vadd.f32 %v526, %v1005
      %v1007 = vpop.f32.mrb[0].mxu0
      %1008 = vmatprep.mubr.bf16.mxu0 %v288
      %1009 = vmatmul.mubr.bf16.gmra.mrb[0].mxu0 %v240
      %v1010 = vpop.f32.mrb[0].mxu0
      %v1011 = vadd.f32 %v526, %v1010
      %v1012 = vpop.f32.mrb[0].mxu0
      %v1013 = vpop.f32.mrb[0].mxu0
      %v1014 = vadd.f32 %v526, %v1013
      %v1015 = vpop.f32.mrb[0].mxu0
      %1016 = vmatprep.mubr.bf16.mxu0 %v300
      %1017 = vmatmul.mubr.bf16.gmra.mrb[0].mxu0 %v241
      %v1018 = vpop.f32.mrb[0].mxu0
      %v1019 = vadd.f32 %v526, %v1018
      %v1020 = vpop.f32.mrb[0].mxu0
      %v1021 = vpop.f32.mrb[0].mxu0
      %v1022 = vadd.f32 %v526, %v1021
      %v1023 = vpop.f32.mrb[0].mxu0
      %1024 = vmatprep.mubr.bf16.mxu0 %v300
      %1025 = vmatmul.mubr.bf16.gmra.mrb[0].mxu0 %v241
      %v1026 = vpop.f32.mrb[0].mxu0
      %v1027 = vadd.f32 %v526, %v1026
      %v1028 = vpop.f32.mrb[0].mxu0
      %v1029 = vpop.f32.mrb[0].mxu0
      %v1030 = vadd.f32 %v526, %v1029
      %v1031 = vpop.f32.mrb[0].mxu0
      %1032 = vmatprep.mubr.bf16.mxu0 %v312
      %1033 = vmatmul.mubr.bf16.gmra.mrb[0].mxu0 %v242
      %v1034 = vpop.f32.mrb[0].mxu0
      %v1035 = vadd.f32 %v526, %v1034
      %v1036 = vpop.f32.mrb[0].mxu0
      %v1037 = vpop.f32.mrb[0].mxu0
      %v1038 = vadd.f32 %v526, %v1037
      %v1039 = vpop.f32.mrb[0].mxu0
      %1040 = vmatprep.mubr.bf16.mxu0 %v312
      %1041 = vmatmul.mubr.bf16.gmra.mrb[0].mxu0 %v242
      %v1042 = vpop.f32.mrb[0].mxu0
      %v1043 = vadd.f32 %v526, %v1042
      %v1044 = vpop.f32.mrb[0].mxu0
      %v1045 = vpop.f32.mrb[0].mxu0
      %v1046 = vadd.f32 %v526, %v1045
      %v1047 = vpop.f32.mrb[0].mxu0
      %1048 = vmatprep.mubr.bf16.mxu0 %v324
      %1049 = vmatmul.mubr.bf16.gmra.mrb[0].mxu0 %v243
      %v1050 = vpop.f32.mrb[0].mxu0
      %v1051 = vadd.f32 %v526, %v1050
      %v1052 = vpop.f32.mrb[0].mxu0
      %v1053 = vpop.f32.mrb[0].mxu0
      %v1054 = vadd.f32 %v526, %v1053
      %v1055 = vpop.f32.mrb[0].mxu0
      %1056 = vdwg.mxu0
      %1057 = vmatprep.subr.bf16.mxu0 0
      %1058 = vmatpush1.bf16.msra.mxu0 %v832
      %1059 = vmatprep.subr.bf16.mxu0 0
      %1060 = vmatpush1.bf16.msra.mxu0 %v833
      %1061 = vmatprep.subr.bf16.mxu0 0
      %1062 = vmatpush1.bf16.msra.mxu0 %v834
      %1063 = vmatprep.subr.bf16.mxu0 0
      %1064 = vmatpush1.bf16.msra.mxu0 %v835
      %1065 = vmatprep.subr.bf16.mxu0 0
      %1066 = vmatpush1.bf16.msra.mxu0 %v836
      %1067 = vmatprep.subr.bf16.mxu0 0
      %1068 = vmatpush1.bf16.msra.mxu0 %v837
      %1069 = vmatprep.subr.bf16.mxu0 0
      %1070 = vmatpush1.bf16.msra.mxu0 %v838
      %1071 = vmatprep.subr.bf16.mxu0 0
      %1072 = vmatpush1.bf16.msra.mxu0 %v839
      %1073 = vmatprep.subr.bf16.mxu0 0
      %1074 = vmatpush1.bf16.msra.mxu0 %v840
      %1075 = vmatprep.subr.bf16.mxu0 0
      %1076 = vmatpush1.bf16.msra.mxu0 %v841
      %1077 = vmatprep.subr.bf16.mxu0 0
      %1078 = vmatpush1.bf16.msra.mxu0 %v842
      %1079 = vmatprep.subr.bf16.mxu0 0
      %1080 = vmatpush1.bf16.msra.mxu0 %v843
      %1081 = vmatprep.subr.bf16.mxu0 0
      %1082 = vmatpush1.bf16.msra.mxu0 %v844
      %1083 = vmatprep.subr.bf16.mxu0 0
      %1084 = vmatpush1.bf16.msra.mxu0 %v845
      %1085 = vmatprep.subr.bf16.mxu0 0
      %1086 = vmatpush1.bf16.msra.mxu0 %v846
      %1087 = vmatprep.subr.bf16.mxu0 0
      %1088 = vmatpush1.bf16.msra.mxu0 %v847
      %1089 = vmatprep.mubr.bf16.mxu0 %v240
      %1090 = vmatmul.mubr.bf16.gmra.mrb[0].mxu0 %v333
      %v1091 = vpop.f32.mrb[0].mxu0
      %v1092 = vadd.f32 %v995, %v1091
      %v1093 = vpop.f32.mrb[0].mxu0
      %v1094 = vpop.f32.mrb[0].mxu0
      %v1095 = vadd.f32 %v998, %v1094
      %v1096 = vpop.f32.mrb[0].mxu0
      %1097 = vmatprep.mubr.bf16.mxu0 %v240
      %1098 = vmatmul.mubr.bf16.gmra.mrb[0].mxu0 %v336
      %v1099 = vpop.f32.mrb[0].mxu0
      %v1100 = vadd.f32 %v1003, %v1099
      %v1101 = vpop.f32.mrb[0].mxu0
      %v1102 = vpop.f32.mrb[0].mxu0
      %v1103 = vadd.f32 %v1006, %v1102
      %v1104 = vpop.f32.mrb[0].mxu0
      %1105 = vmatprep.mubr.bf16.mxu0 %v241
      %1106 = vmatmul.mubr.bf16.gmra.mrb[0].mxu0 %v336
      %v1107 = vpop.f32.mrb[0].mxu0
      %v1108 = vadd.f32 %v1011, %v1107
      %v1109 = vpop.f32.mrb[0].mxu0
      %v1110 = vpop.f32.mrb[0].mxu0
      %v1111 = vadd.f32 %v1014, %v1110
      %v1112 = vpop.f32.mrb[0].mxu0
      %1113 = vmatprep.mubr.bf16.mxu0 %v241
      %1114 = vmatmul.mubr.bf16.gmra.mrb[0].mxu0 %v339
      %v1115 = vpop.f32.mrb[0].mxu0
      %v1116 = vadd.f32 %v1019, %v1115
      %v1117 = vpop.f32.mrb[0].mxu0
      %v1118 = vpop.f32.mrb[0].mxu0
      %v1119 = vadd.f32 %v1022, %v1118
      %v1120 = vpop.f32.mrb[0].mxu0
      %1121 = vmatprep.mubr.bf16.mxu0 %v242
      %1122 = vmatmul.mubr.bf16.gmra.mrb[0].mxu0 %v339
      %v1123 = vpop.f32.mrb[0].mxu0
      %v1124 = vadd.f32 %v1027, %v1123
      %v1125 = vpop.f32.mrb[0].mxu0
      %v1126 = vpop.f32.mrb[0].mxu0
      %v1127 = vadd.f32 %v1030, %v1126
      %v1128 = vpop.f32.mrb[0].mxu0
      %1129 = vmatprep.mubr.bf16.mxu0 %v242
      %1130 = vmatmul.mubr.bf16.gmra.mrb[0].mxu0 %v342
      %v1131 = vpop.f32.mrb[0].mxu0
      %v1132 = vadd.f32 %v1035, %v1131
      %v1133 = vpop.f32.mrb[0].mxu0
      %v1134 = vpop.f32.mrb[0].mxu0
      %v1135 = vadd.f32 %v1038, %v1134
      %v1136 = vpop.f32.mrb[0].mxu0
      %1137 = vmatprep.mubr.bf16.mxu0 %v243
      %1138 = vmatmul.mubr.bf16.gmra.mrb[0].mxu0 %v342
      %v1139 = vpop.f32.mrb[0].mxu0
      %v1140 = vadd.f32 %v1043, %v1139
      %v1141 = vpop.f32.mrb[0].mxu0
      %v1142 = vpop.f32.mrb[0].mxu0
      %v1143 = vadd.f32 %v1046, %v1142
      %v1144 = vpop.f32.mrb[0].mxu0
      %1145 = vmatprep.mubr.bf16.mxu0 %v243
      %1146 = vmatmul.mubr.bf16.gmra.mrb[0].mxu0 %v345
      %v1147 = vpop.f32.mrb[0].mxu0
      %v1148 = vadd.f32 %v1051, %v1147
      %v1149 = vpop.f32.mrb[0].mxu0
      %v1150 = vpop.f32.mrb[0].mxu0
      %v1151 = vadd.f32 %v1054, %v1150
      %v1152 = vpop.f32.mrb[0].mxu0
      %1153 = vdwg.mxu0
      %1154 = vmatprep.subr.bf16.mxu0 0
      %1155 = vmatpush1.bf16.msra.mxu0 %v848
      %1156 = vmatprep.subr.bf16.mxu0 0
      %1157 = vmatpush1.bf16.msra.mxu0 %v849
      %1158 = vmatprep.subr.bf16.mxu0 0
      %1159 = vmatpush1.bf16.msra.mxu0 %v850
      %1160 = vmatprep.subr.bf16.mxu0 0
      %1161 = vmatpush1.bf16.msra.mxu0 %v851
      %1162 = vmatprep.subr.bf16.mxu0 0
      %1163 = vmatpush1.bf16.msra.mxu0 %v852
      %1164 = vmatprep.subr.bf16.mxu0 0
      %1165 = vmatpush1.bf16.msra.mxu0 %v853
      %1166 = vmatprep.subr.bf16.mxu0 0
      %1167 = vmatpush1.bf16.msra.mxu0 %v854
      %1168 = vmatprep.subr.bf16.mxu0 0
      %1169 = vmatpush1.bf16.msra.mxu0 %v855
      %1170 = vmatprep.subr.bf16.mxu0 0
      %1171 = vmatpush1.bf16.msra.mxu0 %v856
      %1172 = vmatprep.subr.bf16.mxu0 0
      %1173 = vmatpush1.bf16.msra.mxu0 %v857
      %1174 = vmatprep.subr.bf16.mxu0 0
      %1175 = vmatpush1.bf16.msra.mxu0 %v858
      %1176 = vmatprep.subr.bf16.mxu0 0
      %1177 = vmatpush1.bf16.msra.mxu0 %v859
      %1178 = vmatprep.subr.bf16.mxu0 0
      %1179 = vmatpush1.bf16.msra.mxu0 %v860
      %1180 = vmatprep.subr.bf16.mxu0 0
      %1181 = vmatpush1.bf16.msra.mxu0 %v861
      %1182 = vmatprep.subr.bf16.mxu0 0
      %1183 = vmatpush1.bf16.msra.mxu0 %v862
      %1184 = vmatprep.subr.bf16.mxu0 0
      %1185 = vmatpush1.bf16.msra.mxu0 %v863
      %1186 = vmatprep.mubr.bf16.mxu0 %v336
      %1187 = vmatmul.mubr.bf16.gmra.mrb[0].mxu0 %v288
      %v1188 = vpop.f32.mrb[0].mxu0
      %v1189 = vadd.f32 %v1092, %v1188
      %v1190 = vpop.f32.mrb[0].mxu0
      %v1191 = vpop.f32.mrb[0].mxu0
      %v1192 = vadd.f32 %v1095, %v1191
      %v1193 = vpop.f32.mrb[0].mxu0
      %1194 = vmatprep.mubr.bf16.mxu0 %v336
      %1195 = vmatmul.mubr.bf16.gmra.mrb[0].mxu0 %v288
      %v1196 = vpop.f32.mrb[0].mxu0
      %v1197 = vadd.f32 %v1100, %v1196
      %v1198 = vpop.f32.mrb[0].mxu0
      %v1199 = vpop.f32.mrb[0].mxu0
      %v1200 = vadd.f32 %v1103, %v1199
      %v1201 = vpop.f32.mrb[0].mxu0
      %1202 = vmatprep.mubr.bf16.mxu0 %v339
      %1203 = vmatmul.mubr.bf16.gmra.mrb[0].mxu0 %v300
      %v1204 = vpop.f32.mrb[0].mxu0
      %v1205 = vadd.f32 %v1108, %v1204
      %v1206 = vpop.f32.mrb[0].mxu0
      %v1207 = vpop.f32.mrb[0].mxu0
      %v1208 = vadd.f32 %v1111, %v1207
      %v1209 = vpop.f32.mrb[0].mxu0
      %1210 = vmatprep.mubr.bf16.mxu0 %v339
      %1211 = vmatmul.mubr.bf16.gmra.mrb[0].mxu0 %v300
      %v1212 = vpop.f32.mrb[0].mxu0
      %v1213 = vadd.f32 %v1116, %v1212
      %v1214 = vpop.f32.mrb[0].mxu0
      %v1215 = vpop.f32.mrb[0].mxu0
      %v1216 = vadd.f32 %v1119, %v1215
      %v1217 = vpop.f32.mrb[0].mxu0
      %1218 = vmatprep.mubr.bf16.mxu0 %v342
      %1219 = vmatmul.mubr.bf16.gmra.mrb[0].mxu0 %v312
      %v1220 = vpop.f32.mrb[0].mxu0
      %v1221 = vadd.f32 %v1124, %v1220
      %v1222 = vpop.f32.mrb[0].mxu0
      %v1223 = vpop.f32.mrb[0].mxu0
      %v1224 = vadd.f32 %v1127, %v1223
      %v1225 = vpop.f32.mrb[0].mxu0
      %1226 = vmatprep.mubr.bf16.mxu0 %v342
      %1227 = vmatmul.mubr.bf16.gmra.mrb[0].mxu0 %v312
      %v1228 = vpop.f32.mrb[0].mxu0
      %v1229 = vadd.f32 %v1132, %v1228
      %v1230 = vpop.f32.mrb[0].mxu0
      %v1231 = vpop.f32.mrb[0].mxu0
      %v1232 = vadd.f32 %v1135, %v1231
      %v1233 = vpop.f32.mrb[0].mxu0
      %1234 = vmatprep.mubr.bf16.mxu0 %v345
      %1235 = vmatmul.mubr.bf16.gmra.mrb[0].mxu0 %v324
      %v1236 = vpop.f32.mrb[0].mxu0
      %v1237 = vadd.f32 %v1140, %v1236
      %v1238 = vpop.f32.mrb[0].mxu0
      %v1239 = vpop.f32.mrb[0].mxu0
      %v1240 = vadd.f32 %v1143, %v1239
      %v1241 = vpop.f32.mrb[0].mxu0
      %1242 = vmatprep.mubr.bf16.mxu0 %v345
      %1243 = vmatmul.mubr.bf16.gmra.mrb[0].mxu0 %v324
      %v1244 = vpop.f32.mrb[0].mxu0
      %v1245 = vadd.f32 %v1148, %v1244
      %v1246 = vpop.f32.mrb[0].mxu0
      %v1247 = vpop.f32.mrb[0].mxu0
      %v1248 = vadd.f32 %v1151, %v1247
      %v1249 = vpop.f32.mrb[0].mxu0
      %1250 = vdwg.mxu0
      %1251 = vmatprep.subr.bf16.mxu0 0
      %1252 = vmatpush1.bf16.msra.mxu0 %v864
      %1253 = vmatprep.subr.bf16.mxu0 0
      %1254 = vmatpush1.bf16.msra.mxu0 %v865
      %1255 = vmatprep.subr.bf16.mxu0 0
      %1256 = vmatpush1.bf16.msra.mxu0 %v866
      %1257 = vmatprep.subr.bf16.mxu0 0
      %1258 = vmatpush1.bf16.msra.mxu0 %v867
      %1259 = vmatprep.subr.bf16.mxu0 0
      %1260 = vmatpush1.bf16.msra.mxu0 %v868
      %1261 = vmatprep.subr.bf16.mxu0 0
      %1262 = vmatpush1.bf16.msra.mxu0 %v869
      %1263 = vmatprep.subr.bf16.mxu0 0
      %1264 = vmatpush1.bf16.msra.mxu0 %v870
      %1265 = vmatprep.subr.bf16.mxu0 0
      %1266 = vmatpush1.bf16.msra.mxu0 %v871
      %1267 = vmatprep.subr.bf16.mxu0 0
      %1268 = vmatpush1.bf16.msra.mxu0 %v872
      %1269 = vmatprep.subr.bf16.mxu0 0
      %1270 = vmatpush1.bf16.msra.mxu0 %v873
      %1271 = vmatprep.subr.bf16.mxu0 0
      %1272 = vmatpush1.bf16.msra.mxu0 %v874
      %1273 = vmatprep.subr.bf16.mxu0 0
      %1274 = vmatpush1.bf16.msra.mxu0 %v875
      %1275 = vmatprep.subr.bf16.mxu0 0
      %1276 = vmatpush1.bf16.msra.mxu0 %v876
      %1277 = vmatprep.subr.bf16.mxu0 0
      %1278 = vmatpush1.bf16.msra.mxu0 %v877
      %1279 = vmatprep.subr.bf16.mxu0 0
      %1280 = vmatpush1.bf16.msra.mxu0 %v878
      %1281 = vmatprep.subr.bf16.mxu0 0
      %1282 = vmatpush1.bf16.msra.mxu0 %v879
      %1283 = vmatprep.mubr.bf16.mxu0 %v288
      %1284 = vmatmul.mubr.bf16.gmra.mrb[0].mxu0 %v240
      %v1285 = vpop.f32.mrb[0].mxu0
      %v1286 = vadd.f32 %v1189, %v1285
      %v1287 = vpop.f32.mrb[0].mxu0
      %v1288 = vpop.f32.mrb[0].mxu0
      %v1289 = vadd.f32 %v1192, %v1288
      %v1290 = vpop.f32.mrb[0].mxu0
      %1291 = vmatprep.mubr.bf16.mxu0 %v300
      %1292 = vmatmul.mubr.bf16.gmra.mrb[0].mxu0 %v241
      %v1293 = vpop.f32.mrb[0].mxu0
      %v1294 = vadd.f32 %v1197, %v1293
      %v1295 = vpop.f32.mrb[0].mxu0
      %v1296 = vpop.f32.mrb[0].mxu0
      %v1297 = vadd.f32 %v1200, %v1296
      %v1298 = vpop.f32.mrb[0].mxu0
      %1299 = vmatprep.mubr.bf16.mxu0 %v300
      %1300 = vmatmul.mubr.bf16.gmra.mrb[0].mxu0 %v241
      %v1301 = vpop.f32.mrb[0].mxu0
      %v1302 = vadd.f32 %v1205, %v1301
      %v1303 = vpop.f32.mrb[0].mxu0
      %v1304 = vpop.f32.mrb[0].mxu0
      %v1305 = vadd.f32 %v1208, %v1304
      %v1306 = vpop.f32.mrb[0].mxu0
      %1307 = vmatprep.mubr.bf16.mxu0 %v312
      %1308 = vmatmul.mubr.bf16.gmra.mrb[0].mxu0 %v242
      %v1309 = vpop.f32.mrb[0].mxu0
      %v1310 = vadd.f32 %v1213, %v1309
      %v1311 = vpop.f32.mrb[0].mxu0
      %v1312 = vpop.f32.mrb[0].mxu0
      %v1313 = vadd.f32 %v1216, %v1312
      %v1314 = vpop.f32.mrb[0].mxu0
      %1315 = vmatprep.mubr.bf16.mxu0 %v312
      %1316 = vmatmul.mubr.bf16.gmra.mrb[0].mxu0 %v242
      %v1317 = vpop.f32.mrb[0].mxu0
      %v1318 = vadd.f32 %v1221, %v1317
      %v1319 = vpop.f32.mrb[0].mxu0
      %v1320 = vpop.f32.mrb[0].mxu0
      %v1321 = vadd.f32 %v1224, %v1320
      %v1322 = vpop.f32.mrb[0].mxu0
      %1323 = vmatprep.mubr.bf16.mxu0 %v324
      %1324 = vmatmul.mubr.bf16.gmra.mrb[0].mxu0 %v243
      %v1325 = vpop.f32.mrb[0].mxu0
      %v1326 = vadd.f32 %v1229, %v1325
      %v1327 = vpop.f32.mrb[0].mxu0
      %v1328 = vpop.f32.mrb[0].mxu0
      %v1329 = vadd.f32 %v1232, %v1328
      %v1330 = vpop.f32.mrb[0].mxu0
      %1331 = vmatprep.mubr.bf16.mxu0 %v324
      %1332 = vmatmul.mubr.bf16.gmra.mrb[0].mxu0 %v243
      %v1333 = vpop.f32.mrb[0].mxu0
      %v1334 = vadd.f32 %v1237, %v1333
      %v1335 = vpop.f32.mrb[0].mxu0
      %v1336 = vpop.f32.mrb[0].mxu0
      %v1337 = vadd.f32 %v1240, %v1336
      %v1338 = vpop.f32.mrb[0].mxu0
      %1339 = vmatprep.mubr.bf16.mxu0 %v371
      %1340 = vmatmul.mubr.bf16.gmra.mrb[0].mxu0 %v355
      %v1341 = vpop.f32.mrb[0].mxu0
      %v1342 = vadd.f32 %v1245, %v1341
      %v1343 = vpop.f32.mrb[0].mxu0
      %v1344 = vpop.f32.mrb[0].mxu0
      %v1345 = vadd.f32 %v1248, %v1344
      %v1346 = vpop.f32.mrb[0].mxu0
      %1347 = vdwg.mxu0
      %1348 = vmatprep.subr.bf16.mxu0 0
      %1349 = vmatpush1.bf16.msra.mxu0 %v880
      %1350 = vmatprep.subr.bf16.mxu0 0
      %1351 = vmatpush1.bf16.msra.mxu0 %v881
      %1352 = vmatprep.subr.bf16.mxu0 0
      %1353 = vmatpush1.bf16.msra.mxu0 %v882
      %1354 = vmatprep.subr.bf16.mxu0 0
      %1355 = vmatpush1.bf16.msra.mxu0 %v883
      %1356 = vmatprep.subr.bf16.mxu0 0
      %1357 = vmatpush1.bf16.msra.mxu0 %v884
      %1358 = vmatprep.subr.bf16.mxu0 0
      %1359 = vmatpush1.bf16.msra.mxu0 %v885
      %1360 = vmatprep.subr.bf16.mxu0 0
      %1361 = vmatpush1.bf16.msra.mxu0 %v886
      %1362 = vmatprep.subr.bf16.mxu0 0
      %1363 = vmatpush1.bf16.msra.mxu0 %v887
      %1364 = vmatprep.subr.bf16.mxu0 0
      %1365 = vmatpush1.bf16.msra.mxu0 0
      %1366 = vmatprep.subr.bf16.mxu0 0
      %1367 = vmatpush1.bf16.msra.mxu0 0
      %1368 = vmatprep.subr.bf16.mxu0 0
      %1369 = vmatpush1.bf16.msra.mxu0 0
      %1370 = vmatprep.subr.bf16.mxu0 0
      %1371 = vmatpush1.bf16.msra.mxu0 0
      %1372 = vmatprep.subr.bf16.mxu0 0
      %1373 = vmatpush1.bf16.msra.mxu0 0
      %1374 = vmatprep.subr.bf16.mxu0 0
      %1375 = vmatpush1.bf16.msra.mxu0 0
      %1376 = vmatprep.subr.bf16.mxu0 0
      %1377 = vmatpush1.bf16.msra.mxu0 0
      %1378 = vmatprep.subr.bf16.mxu0 0
      %1379 = vmatpush1.bf16.msra.mxu0 0
      %1380 = vmatprep.mubr.bf16.mxu0 0
      %1381 = vmatmul.mubr.bf16.gmra.mrb[0].mxu0 %v336
      %v1382 = vpop.f32.mrb[0].mxu0
      %v1383 = vadd.f32 %v1286, %v1382
      %v1384 = vpop.f32.mrb[0].mxu0
      %v1385 = vpop.f32.mrb[0].mxu0
      %v1386 = vadd.f32 %v1289, %v1385
      %v1387 = vpop.f32.mrb[0].mxu0
      %1388 = vmatprep.mubr.bf16.mxu0 0
      %1389 = vmatmul.mubr.bf16.gmra.mrb[0].mxu0 %v339
      %v1390 = vpop.f32.mrb[0].mxu0
      %v1391 = vadd.f32 %v1294, %v1390
      %v1392 = vpop.f32.mrb[0].mxu0
      %v1393 = vpop.f32.mrb[0].mxu0
      %v1394 = vadd.f32 %v1297, %v1393
      %v1395 = vpop.f32.mrb[0].mxu0
      %1396 = vmatprep.mubr.bf16.mxu0 0
      %1397 = vmatmul.mubr.bf16.gmra.mrb[0].mxu0 %v339
      %v1398 = vpop.f32.mrb[0].mxu0
      %v1399 = vadd.f32 %v1302, %v1398
      %v1400 = vpop.f32.mrb[0].mxu0
      %v1401 = vpop.f32.mrb[0].mxu0
      %v1402 = vadd.f32 %v1305, %v1401
      %v1403 = vpop.f32.mrb[0].mxu0
      %1404 = vmatprep.mubr.bf16.mxu0 0
      %1405 = vmatmul.mubr.bf16.gmra.mrb[0].mxu0 %v342
      %v1406 = vpop.f32.mrb[0].mxu0
      %v1407 = vadd.f32 %v1310, %v1406
      %v1408 = vpop.f32.mrb[0].mxu0
      %v1409 = vpop.f32.mrb[0].mxu0
      %v1410 = vadd.f32 %v1313, %v1409
      %v1411 = vpop.f32.mrb[0].mxu0
      %1412 = vmatprep.mubr.bf16.mxu0 0
      %1413 = vmatmul.mubr.bf16.gmra.mrb[0].mxu0 %v342
      %v1414 = vpop.f32.mrb[0].mxu0
      %v1415 = vadd.f32 %v1318, %v1414
      %v1416 = vpop.f32.mrb[0].mxu0
      %v1417 = vpop.f32.mrb[0].mxu0
      %v1418 = vadd.f32 %v1321, %v1417
      %v1419 = vpop.f32.mrb[0].mxu0
      %1420 = vmatprep.mubr.bf16.mxu0 0
      %1421 = vmatmul.mubr.bf16.gmra.mrb[0].mxu0 %v345
      %v1422 = vpop.f32.mrb[0].mxu0
      %v1423 = vadd.f32 %v1326, %v1422
      %v1424 = vpop.f32.mrb[0].mxu0
      %v1425 = vpop.f32.mrb[0].mxu0
      %v1426 = vadd.f32 %v1329, %v1425
      %v1427 = vpop.f32.mrb[0].mxu0
      %1428 = vmatprep.mubr.bf16.mxu0 0
      %1429 = vmatmul.mubr.bf16.gmra.mrb[0].mxu0 %v345
      %v1430 = vpop.f32.mrb[0].mxu0
      %v1431 = vadd.f32 %v1334, %v1430
      %v1432 = vpop.f32.mrb[0].mxu0
      %v1433 = vpop.f32.mrb[0].mxu0
      %v1434 = vadd.f32 %v1337, %v1433
      %v1435 = vpop.f32.mrb[0].mxu0
      %1436 = vmatprep.mubr.bf16.mxu0 0
      %1437 = vmatmul.mubr.bf16.gmra.mrb[0].mxu0 %v375
      %v1438 = vpop.f32.mrb[0].mxu0
      %v1439 = vadd.f32 %v1342, %v1438
      %v1440 = vpop.f32.mrb[0].mxu0
      %v1441 = vpop.f32.mrb[0].mxu0
      %v1442 = vadd.f32 %v1345, %v1441
      %v1443 = vpop.f32.mrb[0].mxu0
      %1444 = vdwg.mxu0
      %1445 = vst [vmem:[%s194] sm:$0xff] %v1383
      %1446 = vst [vmem:[%s194 + $0x8] sm:$0xff] %v1386
      %1447 = vst [vmem:[%s194 + $0x10] sm:$0xff] %v1391
      %1448 = vst [vmem:[%s194 + $0x18] sm:$0xff] %v1394
      %1449 = vst [vmem:[%s194 + $0x20] sm:$0xff] %v1399
      %1450 = vst [vmem:[%s194 + $0x28] sm:$0xff] %v1402
      %1451 = vst [vmem:[%s194 + $0x30] sm:$0xff] %v1407
      %1452 = vst [vmem:[%s194 + $0x38] sm:$0xff] %v1410
      %1453 = vst [vmem:[%s194 + $0x40] sm:$0xff] %v1415
      %1454 = vst [vmem:[%s194 + $0x48] sm:$0xff] %v1418
      %1455 = vst [vmem:[%s194 + $0x50] sm:$0xff] %v1423
      %1456 = vst [vmem:[%s194 + $0x58] sm:$0xff] %v1426
      %1457 = vst [vmem:[%s194 + $0x60] sm:$0xff] %v1431
      %1458 = vst [vmem:[%s194 + $0x68] sm:$0xff] %v1434
      %1459 = vst [vmem:[%s194 + $0x70] sm:$0xff] %v1439
      %1460 = vst [vmem:[%s194 + $0x78] sm:$0xff] %v1442
      %s1461 = smul.u32 8, %s19
      %p1462 = scmp.lt.s32.totalorder %s18, 1
      %s1463 = scalar_select %p1462, %s18, 1
      %p1464 = scmp.lt.s32.totalorder %s1461, 15
      %s1465 = scalar_select %p1464, %s1461, 15
      %s1466 = smul.addr %s1465, 2
      %s1467 = smul.addr %s1463, 32
      %s1468 = sadd.s32 %s1466, %s1467
      %s1469 = smul.addr %s1468, 8
      %s1470 = scalar_lea.vmem %s3, %s1469
      // Predicated region
      $region33: #{decoder_forward.9} parent=31 // pred_check
        %p1471 = pneg %p114
      $region34: #{decoder_forward.9} parent=31 // pred_check_branch
        %1473 = sbr.rel (%p1471) target = $region36
      $region35: #{decoder_forward.9} parent=31 // pred_region
        %s1474 = smul.u32 8, %s19
      $region36: #{decoder_forward.9} parent=31 // pred_fallthru
        _
    $region32: #{decoder_forward.9} parent=5 // pred_fallthru
      _
    %p1475 = scmp.le.s32.totalorder 2, %s9
    // Predicated region
    $region37: #{decoder_forward.9} parent=5 // pred_check
      %p1476 = pneg %p1475
    $region38: #{decoder_forward.9} parent=5 // pred_check_branch
      %1478 = sbr.rel (%p1476) target = $region40
    $region39: #{decoder_forward.9} parent=5 // pred_region
      %s1479 = ssub.s32 %s9, 2
      // Predicated region
      $region41: #{decoder_forward.9} parent=39 // pred_check
        %p1480 = pneg %p120
      $region42: #{decoder_forward.9} parent=39 // pred_check_branch
        %1482 = sbr.rel (%p1480) target = $region44
      $region43: #{decoder_forward.9} parent=39 // pred_region
        %s1483 = smul.u32 8, %s21
        %p1484 = scmp.lt.s32.totalorder %s20, 1
        %s1485 = scalar_select %p1484, %s20, 1
        %p1486 = scmp.lt.s32.totalorder %s1483, 15
        %s1487 = scalar_select %p1486, %s1483, 15
        %s1488 = smul.addr %s1487, 2
        %s1489 = smul.addr %s1485, 32
        %s1490 = sadd.s32 %s1488, %s1489
        %s1491 = smul.addr %s1490, 8
        %s1492 = scalar_lea.vmem %s3, %s1491
      $region44: #{decoder_forward.9} parent=39 // pred_fallthru
        _
    $region40: #{decoder_forward.9} parent=5 // pred_fallthru
      _
  $region6: #{decoder_forward.9} parent=0 // loop_footer
    %s13 = sadd.s32 1, %s9
  $region7: #{decoder_forward.9} parent=0 // loop_footer_branch
    %8 = sbr.rel target = $region3
  $region8: #{decoder_forward.9} parent=0 // loop_exit
    _

</llo_original>
